<compile_context>
chip_gen: v6e
topology: v6e:2x2x1
jax: 0.10.0
libtpu: 0.0.40
codegen_flags: <defaults>
</compile_context>

<pallas_src>
import math

import jax
import jax.numpy as jnp
from jax.experimental import pallas as pl
from jax.experimental.pallas import tpu as pltpu


def _make_lstm_kernel(T, B, H):
    """Build the single-shot LSTM+head kernel for static (T, B, H)."""

    def kernel(x_ref, wih_ref, b_ref,
               whh_i_ref, whh_f_ref, whh_g_ref, whh_o_ref,
               wout_ref, bout_ref, out_ref, hh_sc):
        # 1) Input projection for ALL timesteps in one matmul (off the
        #    recurrent chain):  (T*B, F) @ (F, 4H) + b  -> (T*B, 4H)
        xg = (jnp.dot(x_ref[...], wih_ref[...],
                      preferred_element_type=jnp.float32)
              + b_ref[...])
        # Split per gate ONCE, outside the time loop (static lane slices).
        xg_i = xg[:, 0 * H:1 * H]
        xg_f = xg[:, 1 * H:2 * H]
        xg_g = xg[:, 2 * H:3 * H]
        xg_o = xg[:, 3 * H:4 * H]

        h = jnp.zeros((B, H), jnp.float32)
        c = jnp.zeros((B, H), jnp.float32)

        # 2) Serial recurrence, fully unrolled (T small & static).  Per-gate
        #    (H,H) weight blocks keep gate tiles separate — no sub-vreg lane
        #    slicing of a (B,4H) gate vector on the critical path.
        for t in range(T):
            r0, r1 = t * B, (t + 1) * B
            pre_i = xg_i[r0:r1] + jnp.dot(
                h, whh_i_ref[...], preferred_element_type=jnp.float32)
            pre_f = xg_f[r0:r1] + jnp.dot(
                h, whh_f_ref[...], preferred_element_type=jnp.float32)
            pre_g = xg_g[r0:r1] + jnp.dot(
                h, whh_g_ref[...], preferred_element_type=jnp.float32)
            pre_o = xg_o[r0:r1] + jnp.dot(
                h, whh_o_ref[...], preferred_element_type=jnp.float32)

            i_g = jax.nn.sigmoid(pre_i)
            f_g = jax.nn.sigmoid(pre_f)
            g_g = jnp.tanh(pre_g)
            o_g = jax.nn.sigmoid(pre_o)

            c = f_g * c + i_g * g_g
            h = o_g * jnp.tanh(c)
            hh_sc[r0:r1, :] = h          # store h_t history (static slice)

        # 3) Batched Linear head: one (T*B,H)@(H,F_pad) matmul + bias, written
        #    as a lane-dense 128-wide slab (wrapper slices [:, :F]).
        out_ref[...] = (jnp.dot(hh_sc[...], wout_ref[...],
                                preferred_element_type=jnp.float32)
                        + bout_ref[...])

    return kernel


def my_lstm_network_forward(seq, params, *, batch_size=1,
                            return_last_timestamp=False):
    """Forward pass of MyLSTMNetwork (recurrent_layers=1, eval / no dropout).

    seq: 2D array (sequence_length, features), float32.
    params: dict with PyTorch-shaped weights:
        w_ih: (4H, F), w_hh: (4H, H), b_ih: (4H,), b_hh: (4H,)
        w_out: (F, H), b_out: (F,)
    """
    # TODO(synk): recurrent_layers>1, inter-layer dropout, and persistent
    # self._memory across calls are not implemented (defaults give zero
    # initial state and a single layer, so semantics match).
    features = params["w_ih"].shape[1]
    H = params["w_hh"].shape[1]

    x = jnp.asarray(seq, jnp.float32).reshape(-1, batch_size, features)
    T, B, F = x.shape
    TB = T * B
    x2 = x.reshape(TB, F)                       # time-major flatten (matches
                                                # seq.view(-1, hidden) later)

    FP = max(128, ((F + 127) // 128) * 128)     # lane-dense padded head width

    # ---- glue: reshape / split weights so the kernel never lane-slices on
    # ---- the recurrent critical path.
    wih_t = params["w_ih"].T.astype(jnp.float32)                  # (F, 4H)
    b = (params["b_ih"] + params["b_hh"]).reshape(1, 4 * H).astype(jnp.float32)
    whh = params["w_hh"].astype(jnp.float32)                      # (4H, H)
    whh_i = whh[0 * H:1 * H].T                                    # (H, H)
    whh_f = whh[1 * H:2 * H].T
    whh_g = whh[2 * H:3 * H].T
    whh_o = whh[3 * H:4 * H].T

    wout_pad = jnp.zeros((H, FP), jnp.float32).at[:, :F].set(
        params["w_out"].T.astype(jnp.float32))                    # (H, FP)
    bout_pad = jnp.zeros((1, FP), jnp.float32).at[:, :F].set(
        params["b_out"].reshape(1, F).astype(jnp.float32))        # (1, FP)

    kernel = _make_lstm_kernel(T, B, H)

    def full_spec(shape):
        return pl.BlockSpec(shape, lambda i, _s=len(shape): (0,) * _s)

    cost = pl.CostEstimate(
        flops=int(2 * TB * F * 4 * H        # input projection
                  + 8 * T * B * H * H       # recurrent gate matmuls
                  + 2 * TB * H * FP),       # linear head
        transcendentals=int(5 * TB * H),    # 3 sigmoid + 2 tanh per element
        bytes_accessed=int(4 * (x2.size + wih_t.size + b.size
                                + 4 * H * H + wout_pad.size + bout_pad.size
                                + TB * FP)),
    )

    out_pad = pl.pallas_call(
        kernel,
        out_shape=jax.ShapeDtypeStruct((TB, FP), jnp.float32),
        grid_spec=pltpu.PrefetchScalarGridSpec(
            num_scalar_prefetch=0,
            grid=(1,),                               # single step: all work
            in_specs=[                               # lives in VMEM, one DMA
                full_spec((TB, F)),                  # x (all timesteps)
                full_spec((F, 4 * H)),               # W_ih^T
                full_spec((1, 4 * H)),               # b_ih + b_hh
                full_spec((H, H)),                   # W_hh^T (gate i)
                full_spec((H, H)),                   # W_hh^T (gate f)
                full_spec((H, H)),                   # W_hh^T (gate g)
                full_spec((H, H)),                   # W_hh^T (gate o)
                full_spec((H, FP)),                  # W_out^T (zero-padded)
                full_spec((1, FP)),                  # b_out   (zero-padded)
            ],
            out_specs=full_spec((TB, FP)),
            scratch_shapes=[pltpu.VMEM((TB, H), jnp.float32)],   # h history
        ),
        compiler_params=pltpu.CompilerParams(
            dimension_semantics=("arbitrary",),
        ),
        cost_estimate=cost,
    )(x2, wih_t, b, whh_i, whh_f, whh_g, whh_o, wout_pad, bout_pad)

    output = out_pad[:, :F]                    # (T*B, features)
    if return_last_timestamp:
        return output[-1].reshape(1, -1)
    return output


def init_params(key, features, hidden):
    """Deterministic init mirroring PyTorch's U(-1/sqrt(H), 1/sqrt(H))."""
    bound = 1.0 / math.sqrt(hidden)
    ks = jax.random.split(key, 6)
    u = lambda k, shp: jax.random.uniform(k, shp, jnp.float32, -bound, bound)
    return {
        "w_ih": u(ks[0], (4 * hidden, features)),
        "w_hh": u(ks[1], (4 * hidden, hidden)),
        "b_ih": u(ks[2], (4 * hidden,)),
        "b_hh": u(ks[3], (4 * hidden,)),
        "w_out": u(ks[4], (features, hidden)),
        "b_out": u(ks[5], (features,)),
    }


def _reference_forward(seq, params, batch_size=1):
    """Pure-JAX reference (lax.scan LSTM) for correctness checking."""
    features = params["w_ih"].shape[1]
    hidden = params["w_hh"].shape[1]
    x = seq.reshape(-1, batch_size, features)
    H = hidden

    def step(carry, x_t):
        h, c = carry
        gates = x_t @ params["w_ih"].T + h @ params["w_hh"].T \
                + params["b_ih"] + params["b_hh"]
        i = jax.nn.sigmoid(gates[:, 0 * H:1 * H])
        f = jax.nn.sigmoid(gates[:, 1 * H:2 * H])
        g = jnp.tanh(gates[:, 2 * H:3 * H])
        o = jax.nn.sigmoid(gates[:, 3 * H:4 * H])
        c_new = f * c + i * g
        h_new = o * jnp.tanh(c_new)
        return (h_new, c_new), h_new

    h0 = jnp.zeros((batch_size, H), jnp.float32)
    c0 = jnp.zeros((batch_size, H), jnp.float32)
    _, hs = jax.lax.scan(step, (h0, c0), x)
    out = hs.reshape(-1, H) @ params["w_out"].T + params["b_out"]
    return out


if __name__ == "__main__":
    # Small shapes consistent with the module: features=4, hidden=32,
    # seq_len=8, batch_size=1 (the forward's default).
    FEATURES, HIDDEN, SEQ_LEN, BATCH = 4, 32, 8, 1

    key = jax.random.PRNGKey(0)
    k_params, k_seq = jax.random.split(key)
    params = init_params(k_params, FEATURES, HIDDEN)
    seq = jax.random.normal(k_seq, (SEQ_LEN, FEATURES), jnp.float32)

    out = my_lstm_network_forward(seq, params, batch_size=BATCH,
                                  return_last_timestamp=False)
    out = jax.block_until_ready(out)

    ref = _reference_forward(seq, params, batch_size=BATCH)
    assert out.shape == (SEQ_LEN * BATCH, FEATURES), out.shape
    assert jnp.allclose(out, ref, atol=1e-5, rtol=1e-5), \
        float(jnp.max(jnp.abs(out - ref)))

    # Also exercise return_last_timestamp=True path.
    last = jax.block_until_ready(
        my_lstm_network_forward(seq, params, batch_size=BATCH,
                                return_last_timestamp=True))
    assert last.shape == (1, FEATURES)
    assert jnp.allclose(last, ref[-1].reshape(1, -1), atol=1e-5, rtol=1e-5)

    print("KERNEL_OK")
</pallas_src>

<mosaic_0001>
module attributes {stable_mosaic.version = 11 : i64} {
  func.func @kernel(%arg0: i32, %arg1: memref<8x4xf32, #tpu.memory_space<vmem>>, %arg2: memref<4x128xf32, #tpu.memory_space<vmem>>, %arg3: memref<1x128xf32, #tpu.memory_space<vmem>>, %arg4: memref<32x32xf32, #tpu.memory_space<vmem>>, %arg5: memref<32x32xf32, #tpu.memory_space<vmem>>, %arg6: memref<32x32xf32, #tpu.memory_space<vmem>>, %arg7: memref<32x32xf32, #tpu.memory_space<vmem>>, %arg8: memref<32x128xf32, #tpu.memory_space<vmem>>, %arg9: memref<1x128xf32, #tpu.memory_space<vmem>>, %arg10: memref<8x128xf32, #tpu.memory_space<vmem>>, %arg11: memref<8x32xf32, #tpu.memory_space<vmem>>) attributes {dimension_semantics = [#tpu.dimension_semantics<arbitrary>], iteration_bounds = array<i64: 1>, scalar_prefetch = 0 : i64, scratch_operands = 1 : i64, tpu.core_type = #tpu.core_type<tc>, window_params = [{pipeline_mode = #tpu.pipeline_mode<synchronous>, transform_indices = @transform_0, window_bounds = array<i64: 8, 4>}, {pipeline_mode = #tpu.pipeline_mode<synchronous>, transform_indices = @transform_1, window_bounds = array<i64: 4, 128>}, {pipeline_mode = #tpu.pipeline_mode<synchronous>, transform_indices = @transform_2, window_bounds = array<i64: 1, 128>}, {pipeline_mode = #tpu.pipeline_mode<synchronous>, transform_indices = @transform_3, window_bounds = array<i64: 32, 32>}, {pipeline_mode = #tpu.pipeline_mode<synchronous>, transform_indices = @transform_4, window_bounds = array<i64: 32, 32>}, {pipeline_mode = #tpu.pipeline_mode<synchronous>, transform_indices = @transform_5, window_bounds = array<i64: 32, 32>}, {pipeline_mode = #tpu.pipeline_mode<synchronous>, transform_indices = @transform_6, window_bounds = array<i64: 32, 32>}, {pipeline_mode = #tpu.pipeline_mode<synchronous>, transform_indices = @transform_7, window_bounds = array<i64: 32, 128>}, {pipeline_mode = #tpu.pipeline_mode<synchronous>, transform_indices = @transform_8, window_bounds = array<i64: 1, 128>}, {pipeline_mode = #tpu.pipeline_mode<synchronous>, transform_indices = @transform_9, window_bounds = array<i64: 8, 128>}]} {
    %c0 = arith.constant 0 : index
    %c0_0 = arith.constant 0 : index
    %0 = vector.load %arg1[%c0, %c0_0] : memref<8x4xf32, #tpu.memory_space<vmem>>, vector<8x4xf32>
    %c0_1 = arith.constant 0 : index
    %c0_2 = arith.constant 0 : index
    %1 = vector.load %arg2[%c0_1, %c0_2] : memref<4x128xf32, #tpu.memory_space<vmem>>, vector<4x128xf32>
    %cst = arith.constant dense<0.000000e+00> : vector<8x128xf32>
    %2 = tpu.matmul %0, %1, %cst {dimension_numbers = #tpu.dot_dimension_numbers<[1], [0], [0], [1], [0, 0, 1, 1], [], []>} : vector<8x4xf32>, vector<4x128xf32>, vector<8x128xf32> -> vector<8x128xf32>
    %c0_3 = arith.constant 0 : index
    %c0_4 = arith.constant 0 : index
    %3 = vector.load %arg3[%c0_3, %c0_4] : memref<1x128xf32, #tpu.memory_space<vmem>>, vector<1x128xf32>
    %4 = vector.broadcast %3 : vector<1x128xf32> to vector<8x128xf32>
    %5 = arith.addf %2, %4 : vector<8x128xf32>
    %6 = vector.extract_strided_slice %5 {offsets = [0, 0], sizes = [8, 32], strides = [1, 1]} : vector<8x128xf32> to vector<8x32xf32>
    %7 = vector.extract_strided_slice %5 {offsets = [0, 32], sizes = [8, 32], strides = [1, 1]} : vector<8x128xf32> to vector<8x32xf32>
    %8 = vector.extract_strided_slice %5 {offsets = [0, 64], sizes = [8, 32], strides = [1, 1]} : vector<8x128xf32> to vector<8x32xf32>
    %9 = vector.extract_strided_slice %5 {offsets = [0, 96], sizes = [8, 32], strides = [1, 1]} : vector<8x128xf32> to vector<8x32xf32>
    %cst_5 = arith.constant 0.000000e+00 : f32
    %10 = vector.broadcast %cst_5 : f32 to vector<1x32xf32>
    %cst_6 = arith.constant 0.000000e+00 : f32
    %11 = vector.broadcast %cst_6 : f32 to vector<1x32xf32>
    %12 = vector.extract_strided_slice %6 {offsets = [0, 0], sizes = [1, 32], strides = [1, 1]} : vector<8x32xf32> to vector<1x32xf32>
    %c0_7 = arith.constant 0 : index
    %c0_8 = arith.constant 0 : index
    %13 = vector.load %arg4[%c0_7, %c0_8] : memref<32x32xf32, #tpu.memory_space<vmem>>, vector<32x32xf32>
    %cst_9 = arith.constant dense<0.000000e+00> : vector<1x32xf32>
    %14 = tpu.matmul %10, %13, %cst_9 {dimension_numbers = #tpu.dot_dimension_numbers<[1], [0], [0], [1], [0, 0, 1, 1], [], []>} : vector<1x32xf32>, vector<32x32xf32>, vector<1x32xf32> -> vector<1x32xf32>
    %15 = arith.addf %12, %14 : vector<1x32xf32>
    %16 = vector.extract_strided_slice %7 {offsets = [0, 0], sizes = [1, 32], strides = [1, 1]} : vector<8x32xf32> to vector<1x32xf32>
    %c0_10 = arith.constant 0 : index
    %c0_11 = arith.constant 0 : index
    %17 = vector.load %arg5[%c0_10, %c0_11] : memref<32x32xf32, #tpu.memory_space<vmem>>, vector<32x32xf32>
    %cst_12 = arith.constant dense<0.000000e+00> : vector<1x32xf32>
    %18 = tpu.matmul %10, %17, %cst_12 {dimension_numbers = #tpu.dot_dimension_numbers<[1], [0], [0], [1], [0, 0, 1, 1], [], []>} : vector<1x32xf32>, vector<32x32xf32>, vector<1x32xf32> -> vector<1x32xf32>
    %19 = arith.addf %16, %18 : vector<1x32xf32>
    %20 = vector.extract_strided_slice %8 {offsets = [0, 0], sizes = [1, 32], strides = [1, 1]} : vector<8x32xf32> to vector<1x32xf32>
    %c0_13 = arith.constant 0 : index
    %c0_14 = arith.constant 0 : index
    %21 = vector.load %arg6[%c0_13, %c0_14] : memref<32x32xf32, #tpu.memory_space<vmem>>, vector<32x32xf32>
    %cst_15 = arith.constant dense<0.000000e+00> : vector<1x32xf32>
    %22 = tpu.matmul %10, %21, %cst_15 {dimension_numbers = #tpu.dot_dimension_numbers<[1], [0], [0], [1], [0, 0, 1, 1], [], []>} : vector<1x32xf32>, vector<32x32xf32>, vector<1x32xf32> -> vector<1x32xf32>
    %23 = arith.addf %20, %22 : vector<1x32xf32>
    %24 = vector.extract_strided_slice %9 {offsets = [0, 0], sizes = [1, 32], strides = [1, 1]} : vector<8x32xf32> to vector<1x32xf32>
    %c0_16 = arith.constant 0 : index
    %c0_17 = arith.constant 0 : index
    %25 = vector.load %arg7[%c0_16, %c0_17] : memref<32x32xf32, #tpu.memory_space<vmem>>, vector<32x32xf32>
    %cst_18 = arith.constant dense<0.000000e+00> : vector<1x32xf32>
    %26 = tpu.matmul %10, %25, %cst_18 {dimension_numbers = #tpu.dot_dimension_numbers<[1], [0], [0], [1], [0, 0, 1, 1], [], []>} : vector<1x32xf32>, vector<32x32xf32>, vector<1x32xf32> -> vector<1x32xf32>
    %27 = arith.addf %24, %26 : vector<1x32xf32>
    %28 = arith.negf %15 : vector<1x32xf32>
    %29 = math.exp %28 : vector<1x32xf32>
    %cst_19 = arith.constant 1.000000e+00 : f32
    %30 = vector.broadcast %cst_19 : f32 to vector<1x32xf32>
    %31 = arith.addf %30, %29 : vector<1x32xf32>
    %32 = arith.divf %30, %31 : vector<1x32xf32>
    %33 = arith.negf %19 : vector<1x32xf32>
    %34 = math.exp %33 : vector<1x32xf32>
    %cst_20 = arith.constant 1.000000e+00 : f32
    %35 = vector.broadcast %cst_20 : f32 to vector<1x32xf32>
    %36 = arith.addf %35, %34 : vector<1x32xf32>
    %37 = arith.divf %35, %36 : vector<1x32xf32>
    %38 = math.tanh %23 : vector<1x32xf32>
    %39 = arith.negf %27 : vector<1x32xf32>
    %40 = math.exp %39 : vector<1x32xf32>
    %cst_21 = arith.constant 1.000000e+00 : f32
    %41 = vector.broadcast %cst_21 : f32 to vector<1x32xf32>
    %42 = arith.addf %41, %40 : vector<1x32xf32>
    %43 = arith.divf %41, %42 : vector<1x32xf32>
    %44 = arith.mulf %37, %11 : vector<1x32xf32>
    %45 = arith.mulf %32, %38 : vector<1x32xf32>
    %46 = arith.addf %44, %45 : vector<1x32xf32>
    %47 = math.tanh %46 : vector<1x32xf32>
    %48 = arith.mulf %43, %47 : vector<1x32xf32>
    %c0_22 = arith.constant 0 : index
    %c0_23 = arith.constant 0 : index
    %49 = vector.load %arg11[%c0_22, %c0_23] : memref<8x32xf32, #tpu.memory_space<vmem>>, vector<1x32xf32>
    tpu.vector_store %arg11[%c0_22, %c0_23], %48 {strides = array<i32>} : memref<8x32xf32, #tpu.memory_space<vmem>>, vector<1x32xf32>,
    %50 = vector.extract_strided_slice %6 {offsets = [1, 0], sizes = [1, 32], strides = [1, 1]} : vector<8x32xf32> to vector<1x32xf32>
    %c0_24 = arith.constant 0 : index
    %c0_25 = arith.constant 0 : index
    %51 = vector.load %arg4[%c0_24, %c0_25] : memref<32x32xf32, #tpu.memory_space<vmem>>, vector<32x32xf32>
    %cst_26 = arith.constant dense<0.000000e+00> : vector<1x32xf32>
    %52 = tpu.matmul %48, %51, %cst_26 {dimension_numbers = #tpu.dot_dimension_numbers<[1], [0], [0], [1], [0, 0, 1, 1], [], []>} : vector<1x32xf32>, vector<32x32xf32>, vector<1x32xf32> -> vector<1x32xf32>
    %53 = arith.addf %50, %52 : vector<1x32xf32>
    %54 = vector.extract_strided_slice %7 {offsets = [1, 0], sizes = [1, 32], strides = [1, 1]} : vector<8x32xf32> to vector<1x32xf32>
    %c0_27 = arith.constant 0 : index
    %c0_28 = arith.constant 0 : index
    %55 = vector.load %arg5[%c0_27, %c0_28] : memref<32x32xf32, #tpu.memory_space<vmem>>, vector<32x32xf32>
    %cst_29 = arith.constant dense<0.000000e+00> : vector<1x32xf32>
    %56 = tpu.matmul %48, %55, %cst_29 {dimension_numbers = #tpu.dot_dimension_numbers<[1], [0], [0], [1], [0, 0, 1, 1], [], []>} : vector<1x32xf32>, vector<32x32xf32>, vector<1x32xf32> -> vector<1x32xf32>
    %57 = arith.addf %54, %56 : vector<1x32xf32>
    %58 = vector.extract_strided_slice %8 {offsets = [1, 0], sizes = [1, 32], strides = [1, 1]} : vector<8x32xf32> to vector<1x32xf32>
    %c0_30 = arith.constant 0 : index
    %c0_31 = arith.constant 0 : index
    %59 = vector.load %arg6[%c0_30, %c0_31] : memref<32x32xf32, #tpu.memory_space<vmem>>, vector<32x32xf32>
    %cst_32 = arith.constant dense<0.000000e+00> : vector<1x32xf32>
    %60 = tpu.matmul %48, %59, %cst_32 {dimension_numbers = #tpu.dot_dimension_numbers<[1], [0], [0], [1], [0, 0, 1, 1], [], []>} : vector<1x32xf32>, vector<32x32xf32>, vector<1x32xf32> -> vector<1x32xf32>
    %61 = arith.addf %58, %60 : vector<1x32xf32>
    %62 = vector.extract_strided_slice %9 {offsets = [1, 0], sizes = [1, 32], strides = [1, 1]} : vector<8x32xf32> to vector<1x32xf32>
    %c0_33 = arith.constant 0 : index
    %c0_34 = arith.constant 0 : index
    %63 = vector.load %arg7[%c0_33, %c0_34] : memref<32x32xf32, #tpu.memory_space<vmem>>, vector<32x32xf32>
    %cst_35 = arith.constant dense<0.000000e+00> : vector<1x32xf32>
    %64 = tpu.matmul %48, %63, %cst_35 {dimension_numbers = #tpu.dot_dimension_numbers<[1], [0], [0], [1], [0, 0, 1, 1], [], []>} : vector<1x32xf32>, vector<32x32xf32>, vector<1x32xf32> -> vector<1x32xf32>
    %65 = arith.addf %62, %64 : vector<1x32xf32>
    %66 = arith.negf %53 : vector<1x32xf32>
    %67 = math.exp %66 : vector<1x32xf32>
    %cst_36 = arith.constant 1.000000e+00 : f32
    %68 = vector.broadcast %cst_36 : f32 to vector<1x32xf32>
    %69 = arith.addf %68, %67 : vector<1x32xf32>
    %70 = arith.divf %68, %69 : vector<1x32xf32>
    %71 = arith.negf %57 : vector<1x32xf32>
    %72 = math.exp %71 : vector<1x32xf32>
    %cst_37 = arith.constant 1.000000e+00 : f32
    %73 = vector.broadcast %cst_37 : f32 to vector<1x32xf32>
    %74 = arith.addf %73, %72 : vector<1x32xf32>
    %75 = arith.divf %73, %74 : vector<1x32xf32>
    %76 = math.tanh %61 : vector<1x32xf32>
    %77 = arith.negf %65 : vector<1x32xf32>
    %78 = math.exp %77 : vector<1x32xf32>
    %cst_38 = arith.constant 1.000000e+00 : f32
    %79 = vector.broadcast %cst_38 : f32 to vector<1x32xf32>
    %80 = arith.addf %79, %78 : vector<1x32xf32>
    %81 = arith.divf %79, %80 : vector<1x32xf32>
    %82 = arith.mulf %75, %46 : vector<1x32xf32>
    %83 = arith.mulf %70, %76 : vector<1x32xf32>
    %84 = arith.addf %82, %83 : vector<1x32xf32>
    %85 = math.tanh %84 : vector<1x32xf32>
    %86 = arith.mulf %81, %85 : vector<1x32xf32>
    %c1 = arith.constant 1 : index
    %c0_39 = arith.constant 0 : index
    %87 = vector.load %arg11[%c1, %c0_39] : memref<8x32xf32, #tpu.memory_space<vmem>>, vector<1x32xf32>
    tpu.vector_store %arg11[%c1, %c0_39], %86 {strides = array<i32>} : memref<8x32xf32, #tpu.memory_space<vmem>>, vector<1x32xf32>,
    %88 = vector.extract_strided_slice %6 {offsets = [2, 0], sizes = [1, 32], strides = [1, 1]} : vector<8x32xf32> to vector<1x32xf32>
    %c0_40 = arith.constant 0 : index
    %c0_41 = arith.constant 0 : index
    %89 = vector.load %arg4[%c0_40, %c0_41] : memref<32x32xf32, #tpu.memory_space<vmem>>, vector<32x32xf32>
    %cst_42 = arith.constant dense<0.000000e+00> : vector<1x32xf32>
    %90 = tpu.matmul %86, %89, %cst_42 {dimension_numbers = #tpu.dot_dimension_numbers<[1], [0], [0], [1], [0, 0, 1, 1], [], []>} : vector<1x32xf32>, vector<32x32xf32>, vector<1x32xf32> -> vector<1x32xf32>
    %91 = arith.addf %88, %90 : vector<1x32xf32>
    %92 = vector.extract_strided_slice %7 {offsets = [2, 0], sizes = [1, 32], strides = [1, 1]} : vector<8x32xf32> to vector<1x32xf32>
    %c0_43 = arith.constant 0 : index
    %c0_44 = arith.constant 0 : index
    %93 = vector.load %arg5[%c0_43, %c0_44] : memref<32x32xf32, #tpu.memory_space<vmem>>, vector<32x32xf32>
    %cst_45 = arith.constant dense<0.000000e+00> : vector<1x32xf32>
    %94 = tpu.matmul %86, %93, %cst_45 {dimension_numbers = #tpu.dot_dimension_numbers<[1], [0], [0], [1], [0, 0, 1, 1], [], []>} : vector<1x32xf32>, vector<32x32xf32>, vector<1x32xf32> -> vector<1x32xf32>
    %95 = arith.addf %92, %94 : vector<1x32xf32>
    %96 = vector.extract_strided_slice %8 {offsets = [2, 0], sizes = [1, 32], strides = [1, 1]} : vector<8x32xf32> to vector<1x32xf32>
    %c0_46 = arith.constant 0 : index
    %c0_47 = arith.constant 0 : index
    %97 = vector.load %arg6[%c0_46, %c0_47] : memref<32x32xf32, #tpu.memory_space<vmem>>, vector<32x32xf32>
    %cst_48 = arith.constant dense<0.000000e+00> : vector<1x32xf32>
    %98 = tpu.matmul %86, %97, %cst_48 {dimension_numbers = #tpu.dot_dimension_numbers<[1], [0], [0], [1], [0, 0, 1, 1], [], []>} : vector<1x32xf32>, vector<32x32xf32>, vector<1x32xf32> -> vector<1x32xf32>
    %99 = arith.addf %96, %98 : vector<1x32xf32>
    %100 = vector.extract_strided_slice %9 {offsets = [2, 0], sizes = [1, 32], strides = [1, 1]} : vector<8x32xf32> to vector<1x32xf32>
    %c0_49 = arith.constant 0 : index
    %c0_50 = arith.constant 0 : index
    %101 = vector.load %arg7[%c0_49, %c0_50] : memref<32x32xf32, #tpu.memory_space<vmem>>, vector<32x32xf32>
    %cst_51 = arith.constant dense<0.000000e+00> : vector<1x32xf32>
    %102 = tpu.matmul %86, %101, %cst_51 {dimension_numbers = #tpu.dot_dimension_numbers<[1], [0], [0], [1], [0, 0, 1, 1], [], []>} : vector<1x32xf32>, vector<32x32xf32>, vector<1x32xf32> -> vector<1x32xf32>
    %103 = arith.addf %100, %102 : vector<1x32xf32>
    %104 = arith.negf %91 : vector<1x32xf32>
    %105 = math.exp %104 : vector<1x32xf32>
    %cst_52 = arith.constant 1.000000e+00 : f32
    %106 = vector.broadcast %cst_52 : f32 to vector<1x32xf32>
    %107 = arith.addf %106, %105 : vector<1x32xf32>
    %108 = arith.divf %106, %107 : vector<1x32xf32>
    %109 = arith.negf %95 : vector<1x32xf32>
    %110 = math.exp %109 : vector<1x32xf32>
    %cst_53 = arith.constant 1.000000e+00 : f32
    %111 = vector.broadcast %cst_53 : f32 to vector<1x32xf32>
    %112 = arith.addf %111, %110 : vector<1x32xf32>
    %113 = arith.divf %111, %112 : vector<1x32xf32>
    %114 = math.tanh %99 : vector<1x32xf32>
    %115 = arith.negf %103 : vector<1x32xf32>
    %116 = math.exp %115 : vector<1x32xf32>
    %cst_54 = arith.constant 1.000000e+00 : f32
    %117 = vector.broadcast %cst_54 : f32 to vector<1x32xf32>
    %118 = arith.addf %117, %116 : vector<1x32xf32>
    %119 = arith.divf %117, %118 : vector<1x32xf32>
    %120 = arith.mulf %113, %84 : vector<1x32xf32>
    %121 = arith.mulf %108, %114 : vector<1x32xf32>
    %122 = arith.addf %120, %121 : vector<1x32xf32>
    %123 = math.tanh %122 : vector<1x32xf32>
    %124 = arith.mulf %119, %123 : vector<1x32xf32>
    %c2 = arith.constant 2 : index
    %c0_55 = arith.constant 0 : index
    %125 = vector.load %arg11[%c2, %c0_55] : memref<8x32xf32, #tpu.memory_space<vmem>>, vector<1x32xf32>
    tpu.vector_store %arg11[%c2, %c0_55], %124 {strides = array<i32>} : memref<8x32xf32, #tpu.memory_space<vmem>>, vector<1x32xf32>,
    %126 = vector.extract_strided_slice %6 {offsets = [3, 0], sizes = [1, 32], strides = [1, 1]} : vector<8x32xf32> to vector<1x32xf32>
    %c0_56 = arith.constant 0 : index
    %c0_57 = arith.constant 0 : index
    %127 = vector.load %arg4[%c0_56, %c0_57] : memref<32x32xf32, #tpu.memory_space<vmem>>, vector<32x32xf32>
    %cst_58 = arith.constant dense<0.000000e+00> : vector<1x32xf32>
    %128 = tpu.matmul %124, %127, %cst_58 {dimension_numbers = #tpu.dot_dimension_numbers<[1], [0], [0], [1], [0, 0, 1, 1], [], []>} : vector<1x32xf32>, vector<32x32xf32>, vector<1x32xf32> -> vector<1x32xf32>
    %129 = arith.addf %126, %128 : vector<1x32xf32>
    %130 = vector.extract_strided_slice %7 {offsets = [3, 0], sizes = [1, 32], strides = [1, 1]} : vector<8x32xf32> to vector<1x32xf32>
    %c0_59 = arith.constant 0 : index
    %c0_60 = arith.constant 0 : index
    %131 = vector.load %arg5[%c0_59, %c0_60] : memref<32x32xf32, #tpu.memory_space<vmem>>, vector<32x32xf32>
    %cst_61 = arith.constant dense<0.000000e+00> : vector<1x32xf32>
    %132 = tpu.matmul %124, %131, %cst_61 {dimension_numbers = #tpu.dot_dimension_numbers<[1], [0], [0], [1], [0, 0, 1, 1], [], []>} : vector<1x32xf32>, vector<32x32xf32>, vector<1x32xf32> -> vector<1x32xf32>
    %133 = arith.addf %130, %132 : vector<1x32xf32>
    %134 = vector.extract_strided_slice %8 {offsets = [3, 0], sizes = [1, 32], strides = [1, 1]} : vector<8x32xf32> to vector<1x32xf32>
    %c0_62 = arith.constant 0 : index
    %c0_63 = arith.constant 0 : index
    %135 = vector.load %arg6[%c0_62, %c0_63] : memref<32x32xf32, #tpu.memory_space<vmem>>, vector<32x32xf32>
    %cst_64 = arith.constant dense<0.000000e+00> : vector<1x32xf32>
    %136 = tpu.matmul %124, %135, %cst_64 {dimension_numbers = #tpu.dot_dimension_numbers<[1], [0], [0], [1], [0, 0, 1, 1], [], []>} : vector<1x32xf32>, vector<32x32xf32>, vector<1x32xf32> -> vector<1x32xf32>
    %137 = arith.addf %134, %136 : vector<1x32xf32>
    %138 = vector.extract_strided_slice %9 {offsets = [3, 0], sizes = [1, 32], strides = [1, 1]} : vector<8x32xf32> to vector<1x32xf32>
    %c0_65 = arith.constant 0 : index
    %c0_66 = arith.constant 0 : index
    %139 = vector.load %arg7[%c0_65, %c0_66] : memref<32x32xf32, #tpu.memory_space<vmem>>, vector<32x32xf32>
    %cst_67 = arith.constant dense<0.000000e+00> : vector<1x32xf32>
    %140 = tpu.matmul %124, %139, %cst_67 {dimension_numbers = #tpu.dot_dimension_numbers<[1], [0], [0], [1], [0, 0, 1, 1], [], []>} : vector<1x32xf32>, vector<32x32xf32>, vector<1x32xf32> -> vector<1x32xf32>
    %141 = arith.addf %138, %140 : vector<1x32xf32>
    %142 = arith.negf %129 : vector<1x32xf32>
    %143 = math.exp %142 : vector<1x32xf32>
    %cst_68 = arith.constant 1.000000e+00 : f32
    %144 = vector.broadcast %cst_68 : f32 to vector<1x32xf32>
    %145 = arith.addf %144, %143 : vector<1x32xf32>
    %146 = arith.divf %144, %145 : vector<1x32xf32>
    %147 = arith.negf %133 : vector<1x32xf32>
    %148 = math.exp %147 : vector<1x32xf32>
    %cst_69 = arith.constant 1.000000e+00 : f32
    %149 = vector.broadcast %cst_69 : f32 to vector<1x32xf32>
    %150 = arith.addf %149, %148 : vector<1x32xf32>
    %151 = arith.divf %149, %150 : vector<1x32xf32>
    %152 = math.tanh %137 : vector<1x32xf32>
    %153 = arith.negf %141 : vector<1x32xf32>
    %154 = math.exp %153 : vector<1x32xf32>
    %cst_70 = arith.constant 1.000000e+00 : f32
    %155 = vector.broadcast %cst_70 : f32 to vector<1x32xf32>
    %156 = arith.addf %155, %154 : vector<1x32xf32>
    %157 = arith.divf %155, %156 : vector<1x32xf32>
    %158 = arith.mulf %151, %122 : vector<1x32xf32>
    %159 = arith.mulf %146, %152 : vector<1x32xf32>
    %160 = arith.addf %158, %159 : vector<1x32xf32>
    %161 = math.tanh %160 : vector<1x32xf32>
    %162 = arith.mulf %157, %161 : vector<1x32xf32>
    %c3 = arith.constant 3 : index
    %c0_71 = arith.constant 0 : index
    %163 = vector.load %arg11[%c3, %c0_71] : memref<8x32xf32, #tpu.memory_space<vmem>>, vector<1x32xf32>
    tpu.vector_store %arg11[%c3, %c0_71], %162 {strides = array<i32>} : memref<8x32xf32, #tpu.memory_space<vmem>>, vector<1x32xf32>,
    %164 = vector.extract_strided_slice %6 {offsets = [4, 0], sizes = [1, 32], strides = [1, 1]} : vector<8x32xf32> to vector<1x32xf32>
    %c0_72 = arith.constant 0 : index
    %c0_73 = arith.constant 0 : index
    %165 = vector.load %arg4[%c0_72, %c0_73] : memref<32x32xf32, #tpu.memory_space<vmem>>, vector<32x32xf32>
    %cst_74 = arith.constant dense<0.000000e+00> : vector<1x32xf32>
    %166 = tpu.matmul %162, %165, %cst_74 {dimension_numbers = #tpu.dot_dimension_numbers<[1], [0], [0], [1], [0, 0, 1, 1], [], []>} : vector<1x32xf32>, vector<32x32xf32>, vector<1x32xf32> -> vector<1x32xf32>
    %167 = arith.addf %164, %166 : vector<1x32xf32>
    %168 = vector.extract_strided_slice %7 {offsets = [4, 0], sizes = [1, 32], strides = [1, 1]} : vector<8x32xf32> to vector<1x32xf32>
    %c0_75 = arith.constant 0 : index
    %c0_76 = arith.constant 0 : index
    %169 = vector.load %arg5[%c0_75, %c0_76] : memref<32x32xf32, #tpu.memory_space<vmem>>, vector<32x32xf32>
    %cst_77 = arith.constant dense<0.000000e+00> : vector<1x32xf32>
    %170 = tpu.matmul %162, %169, %cst_77 {dimension_numbers = #tpu.dot_dimension_numbers<[1], [0], [0], [1], [0, 0, 1, 1], [], []>} : vector<1x32xf32>, vector<32x32xf32>, vector<1x32xf32> -> vector<1x32xf32>
    %171 = arith.addf %168, %170 : vector<1x32xf32>
    %172 = vector.extract_strided_slice %8 {offsets = [4, 0], sizes = [1, 32], strides = [1, 1]} : vector<8x32xf32> to vector<1x32xf32>
    %c0_78 = arith.constant 0 : index
    %c0_79 = arith.constant 0 : index
    %173 = vector.load %arg6[%c0_78, %c0_79] : memref<32x32xf32, #tpu.memory_space<vmem>>, vector<32x32xf32>
    %cst_80 = arith.constant dense<0.000000e+00> : vector<1x32xf32>
    %174 = tpu.matmul %162, %173, %cst_80 {dimension_numbers = #tpu.dot_dimension_numbers<[1], [0], [0], [1], [0, 0, 1, 1], [], []>} : vector<1x32xf32>, vector<32x32xf32>, vector<1x32xf32> -> vector<1x32xf32>
    %175 = arith.addf %172, %174 : vector<1x32xf32>
    %176 = vector.extract_strided_slice %9 {offsets = [4, 0], sizes = [1, 32], strides = [1, 1]} : vector<8x32xf32> to vector<1x32xf32>
    %c0_81 = arith.constant 0 : index
    %c0_82 = arith.constant 0 : index
    %177 = vector.load %arg7[%c0_81, %c0_82] : memref<32x32xf32, #tpu.memory_space<vmem>>, vector<32x32xf32>
    %cst_83 = arith.constant dense<0.000000e+00> : vector<1x32xf32>
    %178 = tpu.matmul %162, %177, %cst_83 {dimension_numbers = #tpu.dot_dimension_numbers<[1], [0], [0], [1], [0, 0, 1, 1], [], []>} : vector<1x32xf32>, vector<32x32xf32>, vector<1x32xf32> -> vector<1x32xf32>
    %179 = arith.addf %176, %178 : vector<1x32xf32>
    %180 = arith.negf %167 : vector<1x32xf32>
    %181 = math.exp %180 : vector<1x32xf32>
    %cst_84 = arith.constant 1.000000e+00 : f32
    %182 = vector.broadcast %cst_84 : f32 to vector<1x32xf32>
    %183 = arith.addf %182, %181 : vector<1x32xf32>
    %184 = arith.divf %182, %183 : vector<1x32xf32>
    %185 = arith.negf %171 : vector<1x32xf32>
    %186 = math.exp %185 : vector<1x32xf32>
    %cst_85 = arith.constant 1.000000e+00 : f32
    %187 = vector.broadcast %cst_85 : f32 to vector<1x32xf32>
    %188 = arith.addf %187, %186 : vector<1x32xf32>
    %189 = arith.divf %187, %188 : vector<1x32xf32>
    %190 = math.tanh %175 : vector<1x32xf32>
    %191 = arith.negf %179 : vector<1x32xf32>
    %192 = math.exp %191 : vector<1x32xf32>
    %cst_86 = arith.constant 1.000000e+00 : f32
    %193 = vector.broadcast %cst_86 : f32 to vector<1x32xf32>
    %194 = arith.addf %193, %192 : vector<1x32xf32>
    %195 = arith.divf %193, %194 : vector<1x32xf32>
    %196 = arith.mulf %189, %160 : vector<1x32xf32>
    %197 = arith.mulf %184, %190 : vector<1x32xf32>
    %198 = arith.addf %196, %197 : vector<1x32xf32>
    %199 = math.tanh %198 : vector<1x32xf32>
    %200 = arith.mulf %195, %199 : vector<1x32xf32>
    %c4 = arith.constant 4 : index
    %c0_87 = arith.constant 0 : index
    %201 = vector.load %arg11[%c4, %c0_87] : memref<8x32xf32, #tpu.memory_space<vmem>>, vector<1x32xf32>
    tpu.vector_store %arg11[%c4, %c0_87], %200 {strides = array<i32>} : memref<8x32xf32, #tpu.memory_space<vmem>>, vector<1x32xf32>,
    %202 = vector.extract_strided_slice %6 {offsets = [5, 0], sizes = [1, 32], strides = [1, 1]} : vector<8x32xf32> to vector<1x32xf32>
    %c0_88 = arith.constant 0 : index
    %c0_89 = arith.constant 0 : index
    %203 = vector.load %arg4[%c0_88, %c0_89] : memref<32x32xf32, #tpu.memory_space<vmem>>, vector<32x32xf32>
    %cst_90 = arith.constant dense<0.000000e+00> : vector<1x32xf32>
    %204 = tpu.matmul %200, %203, %cst_90 {dimension_numbers = #tpu.dot_dimension_numbers<[1], [0], [0], [1], [0, 0, 1, 1], [], []>} : vector<1x32xf32>, vector<32x32xf32>, vector<1x32xf32> -> vector<1x32xf32>
    %205 = arith.addf %202, %204 : vector<1x32xf32>
    %206 = vector.extract_strided_slice %7 {offsets = [5, 0], sizes = [1, 32], strides = [1, 1]} : vector<8x32xf32> to vector<1x32xf32>
    %c0_91 = arith.constant 0 : index
    %c0_92 = arith.constant 0 : index
    %207 = vector.load %arg5[%c0_91, %c0_92] : memref<32x32xf32, #tpu.memory_space<vmem>>, vector<32x32xf32>
    %cst_93 = arith.constant dense<0.000000e+00> : vector<1x32xf32>
    %208 = tpu.matmul %200, %207, %cst_93 {dimension_numbers = #tpu.dot_dimension_numbers<[1], [0], [0], [1], [0, 0, 1, 1], [], []>} : vector<1x32xf32>, vector<32x32xf32>, vector<1x32xf32> -> vector<1x32xf32>
    %209 = arith.addf %206, %208 : vector<1x32xf32>
    %210 = vector.extract_strided_slice %8 {offsets = [5, 0], sizes = [1, 32], strides = [1, 1]} : vector<8x32xf32> to vector<1x32xf32>
    %c0_94 = arith.constant 0 : index
    %c0_95 = arith.constant 0 : index
    %211 = vector.load %arg6[%c0_94, %c0_95] : memref<32x32xf32, #tpu.memory_space<vmem>>, vector<32x32xf32>
    %cst_96 = arith.constant dense<0.000000e+00> : vector<1x32xf32>
    %212 = tpu.matmul %200, %211, %cst_96 {dimension_numbers = #tpu.dot_dimension_numbers<[1], [0], [0], [1], [0, 0, 1, 1], [], []>} : vector<1x32xf32>, vector<32x32xf32>, vector<1x32xf32> -> vector<1x32xf32>
    %213 = arith.addf %210, %212 : vector<1x32xf32>
    %214 = vector.extract_strided_slice %9 {offsets = [5, 0], sizes = [1, 32], strides = [1, 1]} : vector<8x32xf32> to vector<1x32xf32>
    %c0_97 = arith.constant 0 : index
    %c0_98 = arith.constant 0 : index
    %215 = vector.load %arg7[%c0_97, %c0_98] : memref<32x32xf32, #tpu.memory_space<vmem>>, vector<32x32xf32>
    %cst_99 = arith.constant dense<0.000000e+00> : vector<1x32xf32>
    %216 = tpu.matmul %200, %215, %cst_99 {dimension_numbers = #tpu.dot_dimension_numbers<[1], [0], [0], [1], [0, 0, 1, 1], [], []>} : vector<1x32xf32>, vector<32x32xf32>, vector<1x32xf32> -> vector<1x32xf32>
    %217 = arith.addf %214, %216 : vector<1x32xf32>
    %218 = arith.negf %205 : vector<1x32xf32>
    %219 = math.exp %218 : vector<1x32xf32>
    %cst_100 = arith.constant 1.000000e+00 : f32
    %220 = vector.broadcast %cst_100 : f32 to vector<1x32xf32>
    %221 = arith.addf %220, %219 : vector<1x32xf32>
    %222 = arith.divf %220, %221 : vector<1x32xf32>
    %223 = arith.negf %209 : vector<1x32xf32>
    %224 = math.exp %223 : vector<1x32xf32>
    %cst_101 = arith.constant 1.000000e+00 : f32
    %225 = vector.broadcast %cst_101 : f32 to vector<1x32xf32>
    %226 = arith.addf %225, %224 : vector<1x32xf32>
    %227 = arith.divf %225, %226 : vector<1x32xf32>
    %228 = math.tanh %213 : vector<1x32xf32>
    %229 = arith.negf %217 : vector<1x32xf32>
    %230 = math.exp %229 : vector<1x32xf32>
    %cst_102 = arith.constant 1.000000e+00 : f32
    %231 = vector.broadcast %cst_102 : f32 to vector<1x32xf32>
    %232 = arith.addf %231, %230 : vector<1x32xf32>
    %233 = arith.divf %231, %232 : vector<1x32xf32>
    %234 = arith.mulf %227, %198 : vector<1x32xf32>
    %235 = arith.mulf %222, %228 : vector<1x32xf32>
    %236 = arith.addf %234, %235 : vector<1x32xf32>
    %237 = math.tanh %236 : vector<1x32xf32>
    %238 = arith.mulf %233, %237 : vector<1x32xf32>
    %c5 = arith.constant 5 : index
    %c0_103 = arith.constant 0 : index
    %239 = vector.load %arg11[%c5, %c0_103] : memref<8x32xf32, #tpu.memory_space<vmem>>, vector<1x32xf32>
    tpu.vector_store %arg11[%c5, %c0_103], %238 {strides = array<i32>} : memref<8x32xf32, #tpu.memory_space<vmem>>, vector<1x32xf32>,
    %240 = vector.extract_strided_slice %6 {offsets = [6, 0], sizes = [1, 32], strides = [1, 1]} : vector<8x32xf32> to vector<1x32xf32>
    %c0_104 = arith.constant 0 : index
    %c0_105 = arith.constant 0 : index
    %241 = vector.load %arg4[%c0_104, %c0_105] : memref<32x32xf32, #tpu.memory_space<vmem>>, vector<32x32xf32>
    %cst_106 = arith.constant dense<0.000000e+00> : vector<1x32xf32>
    %242 = tpu.matmul %238, %241, %cst_106 {dimension_numbers = #tpu.dot_dimension_numbers<[1], [0], [0], [1], [0, 0, 1, 1], [], []>} : vector<1x32xf32>, vector<32x32xf32>, vector<1x32xf32> -> vector<1x32xf32>
    %243 = arith.addf %240, %242 : vector<1x32xf32>
    %244 = vector.extract_strided_slice %7 {offsets = [6, 0], sizes = [1, 32], strides = [1, 1]} : vector<8x32xf32> to vector<1x32xf32>
    %c0_107 = arith.constant 0 : index
    %c0_108 = arith.constant 0 : index
    %245 = vector.load %arg5[%c0_107, %c0_108] : memref<32x32xf32, #tpu.memory_space<vmem>>, vector<32x32xf32>
    %cst_109 = arith.constant dense<0.000000e+00> : vector<1x32xf32>
    %246 = tpu.matmul %238, %245, %cst_109 {dimension_numbers = #tpu.dot_dimension_numbers<[1], [0], [0], [1], [0, 0, 1, 1], [], []>} : vector<1x32xf32>, vector<32x32xf32>, vector<1x32xf32> -> vector<1x32xf32>
    %247 = arith.addf %244, %246 : vector<1x32xf32>
    %248 = vector.extract_strided_slice %8 {offsets = [6, 0], sizes = [1, 32], strides = [1, 1]} : vector<8x32xf32> to vector<1x32xf32>
    %c0_110 = arith.constant 0 : index
    %c0_111 = arith.constant 0 : index
    %249 = vector.load %arg6[%c0_110, %c0_111] : memref<32x32xf32, #tpu.memory_space<vmem>>, vector<32x32xf32>
    %cst_112 = arith.constant dense<0.000000e+00> : vector<1x32xf32>
    %250 = tpu.matmul %238, %249, %cst_112 {dimension_numbers = #tpu.dot_dimension_numbers<[1], [0], [0], [1], [0, 0, 1, 1], [], []>} : vector<1x32xf32>, vector<32x32xf32>, vector<1x32xf32> -> vector<1x32xf32>
    %251 = arith.addf %248, %250 : vector<1x32xf32>
    %252 = vector.extract_strided_slice %9 {offsets = [6, 0], sizes = [1, 32], strides = [1, 1]} : vector<8x32xf32> to vector<1x32xf32>
    %c0_113 = arith.constant 0 : index
    %c0_114 = arith.constant 0 : index
    %253 = vector.load %arg7[%c0_113, %c0_114] : memref<32x32xf32, #tpu.memory_space<vmem>>, vector<32x32xf32>
    %cst_115 = arith.constant dense<0.000000e+00> : vector<1x32xf32>
    %254 = tpu.matmul %238, %253, %cst_115 {dimension_numbers = #tpu.dot_dimension_numbers<[1], [0], [0], [1], [0, 0, 1, 1], [], []>} : vector<1x32xf32>, vector<32x32xf32>, vector<1x32xf32> -> vector<1x32xf32>
    %255 = arith.addf %252, %254 : vector<1x32xf32>
    %256 = arith.negf %243 : vector<1x32xf32>
    %257 = math.exp %256 : vector<1x32xf32>
    %cst_116 = arith.constant 1.000000e+00 : f32
    %258 = vector.broadcast %cst_116 : f32 to vector<1x32xf32>
    %259 = arith.addf %258, %257 : vector<1x32xf32>
    %260 = arith.divf %258, %259 : vector<1x32xf32>
    %261 = arith.negf %247 : vector<1x32xf32>
    %262 = math.exp %261 : vector<1x32xf32>
    %cst_117 = arith.constant 1.000000e+00 : f32
    %263 = vector.broadcast %cst_117 : f32 to vector<1x32xf32>
    %264 = arith.addf %263, %262 : vector<1x32xf32>
    %265 = arith.divf %263, %264 : vector<1x32xf32>
    %266 = math.tanh %251 : vector<1x32xf32>
    %267 = arith.negf %255 : vector<1x32xf32>
    %268 = math.exp %267 : vector<1x32xf32>
    %cst_118 = arith.constant 1.000000e+00 : f32
    %269 = vector.broadcast %cst_118 : f32 to vector<1x32xf32>
    %270 = arith.addf %269, %268 : vector<1x32xf32>
    %271 = arith.divf %269, %270 : vector<1x32xf32>
    %272 = arith.mulf %265, %236 : vector<1x32xf32>
    %273 = arith.mulf %260, %266 : vector<1x32xf32>
    %274 = arith.addf %272, %273 : vector<1x32xf32>
    %275 = math.tanh %274 : vector<1x32xf32>
    %276 = arith.mulf %271, %275 : vector<1x32xf32>
    %c6 = arith.constant 6 : index
    %c0_119 = arith.constant 0 : index
    %277 = vector.load %arg11[%c6, %c0_119] : memref<8x32xf32, #tpu.memory_space<vmem>>, vector<1x32xf32>
    tpu.vector_store %arg11[%c6, %c0_119], %276 {strides = array<i32>} : memref<8x32xf32, #tpu.memory_space<vmem>>, vector<1x32xf32>,
    %278 = vector.extract_strided_slice %6 {offsets = [7, 0], sizes = [1, 32], strides = [1, 1]} : vector<8x32xf32> to vector<1x32xf32>
    %c0_120 = arith.constant 0 : index
    %c0_121 = arith.constant 0 : index
    %279 = vector.load %arg4[%c0_120, %c0_121] : memref<32x32xf32, #tpu.memory_space<vmem>>, vector<32x32xf32>
    %cst_122 = arith.constant dense<0.000000e+00> : vector<1x32xf32>
    %280 = tpu.matmul %276, %279, %cst_122 {dimension_numbers = #tpu.dot_dimension_numbers<[1], [0], [0], [1], [0, 0, 1, 1], [], []>} : vector<1x32xf32>, vector<32x32xf32>, vector<1x32xf32> -> vector<1x32xf32>
    %281 = arith.addf %278, %280 : vector<1x32xf32>
    %282 = vector.extract_strided_slice %7 {offsets = [7, 0], sizes = [1, 32], strides = [1, 1]} : vector<8x32xf32> to vector<1x32xf32>
    %c0_123 = arith.constant 0 : index
    %c0_124 = arith.constant 0 : index
    %283 = vector.load %arg5[%c0_123, %c0_124] : memref<32x32xf32, #tpu.memory_space<vmem>>, vector<32x32xf32>
    %cst_125 = arith.constant dense<0.000000e+00> : vector<1x32xf32>
    %284 = tpu.matmul %276, %283, %cst_125 {dimension_numbers = #tpu.dot_dimension_numbers<[1], [0], [0], [1], [0, 0, 1, 1], [], []>} : vector<1x32xf32>, vector<32x32xf32>, vector<1x32xf32> -> vector<1x32xf32>
    %285 = arith.addf %282, %284 : vector<1x32xf32>
    %286 = vector.extract_strided_slice %8 {offsets = [7, 0], sizes = [1, 32], strides = [1, 1]} : vector<8x32xf32> to vector<1x32xf32>
    %c0_126 = arith.constant 0 : index
    %c0_127 = arith.constant 0 : index
    %287 = vector.load %arg6[%c0_126, %c0_127] : memref<32x32xf32, #tpu.memory_space<vmem>>, vector<32x32xf32>
    %cst_128 = arith.constant dense<0.000000e+00> : vector<1x32xf32>
    %288 = tpu.matmul %276, %287, %cst_128 {dimension_numbers = #tpu.dot_dimension_numbers<[1], [0], [0], [1], [0, 0, 1, 1], [], []>} : vector<1x32xf32>, vector<32x32xf32>, vector<1x32xf32> -> vector<1x32xf32>
    %289 = arith.addf %286, %288 : vector<1x32xf32>
    %290 = vector.extract_strided_slice %9 {offsets = [7, 0], sizes = [1, 32], strides = [1, 1]} : vector<8x32xf32> to vector<1x32xf32>
    %c0_129 = arith.constant 0 : index
    %c0_130 = arith.constant 0 : index
    %291 = vector.load %arg7[%c0_129, %c0_130] : memref<32x32xf32, #tpu.memory_space<vmem>>, vector<32x32xf32>
    %cst_131 = arith.constant dense<0.000000e+00> : vector<1x32xf32>
    %292 = tpu.matmul %276, %291, %cst_131 {dimension_numbers = #tpu.dot_dimension_numbers<[1], [0], [0], [1], [0, 0, 1, 1], [], []>} : vector<1x32xf32>, vector<32x32xf32>, vector<1x32xf32> -> vector<1x32xf32>
    %293 = arith.addf %290, %292 : vector<1x32xf32>
    %294 = arith.negf %281 : vector<1x32xf32>
    %295 = math.exp %294 : vector<1x32xf32>
    %cst_132 = arith.constant 1.000000e+00 : f32
    %296 = vector.broadcast %cst_132 : f32 to vector<1x32xf32>
    %297 = arith.addf %296, %295 : vector<1x32xf32>
    %298 = arith.divf %296, %297 : vector<1x32xf32>
    %299 = arith.negf %285 : vector<1x32xf32>
    %300 = math.exp %299 : vector<1x32xf32>
    %cst_133 = arith.constant 1.000000e+00 : f32
    %301 = vector.broadcast %cst_133 : f32 to vector<1x32xf32>
    %302 = arith.addf %301, %300 : vector<1x32xf32>
    %303 = arith.divf %301, %302 : vector<1x32xf32>
    %304 = math.tanh %289 : vector<1x32xf32>
    %305 = arith.negf %293 : vector<1x32xf32>
    %306 = math.exp %305 : vector<1x32xf32>
    %cst_134 = arith.constant 1.000000e+00 : f32
    %307 = vector.broadcast %cst_134 : f32 to vector<1x32xf32>
    %308 = arith.addf %307, %306 : vector<1x32xf32>
    %309 = arith.divf %307, %308 : vector<1x32xf32>
    %310 = arith.mulf %303, %274 : vector<1x32xf32>
    %311 = arith.mulf %298, %304 : vector<1x32xf32>
    %312 = arith.addf %310, %311 : vector<1x32xf32>
    %313 = math.tanh %312 : vector<1x32xf32>
    %314 = arith.mulf %309, %313 : vector<1x32xf32>
    %c7 = arith.constant 7 : index
    %c0_135 = arith.constant 0 : index
    %315 = vector.load %arg11[%c7, %c0_135] : memref<8x32xf32, #tpu.memory_space<vmem>>, vector<1x32xf32>
    tpu.vector_store %arg11[%c7, %c0_135], %314 {strides = array<i32>} : memref<8x32xf32, #tpu.memory_space<vmem>>, vector<1x32xf32>,
    %c0_136 = arith.constant 0 : index
    %c0_137 = arith.constant 0 : index
    %316 = vector.load %arg11[%c0_136, %c0_137] : memref<8x32xf32, #tpu.memory_space<vmem>>, vector<8x32xf32>
    %c0_138 = arith.constant 0 : index
    %c0_139 = arith.constant 0 : index
    %317 = vector.load %arg8[%c0_138, %c0_139] : memref<32x128xf32, #tpu.memory_space<vmem>>, vector<32x128xf32>
    %cst_140 = arith.constant dense<0.000000e+00> : vector<8x128xf32>
    %318 = tpu.matmul %316, %317, %cst_140 {dimension_numbers = #tpu.dot_dimension_numbers<[1], [0], [0], [1], [0, 0, 1, 1], [], []>} : vector<8x32xf32>, vector<32x128xf32>, vector<8x128xf32> -> vector<8x128xf32>
    %c0_141 = arith.constant 0 : index
    %c0_142 = arith.constant 0 : index
    %319 = vector.load %arg9[%c0_141, %c0_142] : memref<1x128xf32, #tpu.memory_space<vmem>>, vector<1x128xf32>
    %320 = vector.broadcast %319 : vector<1x128xf32> to vector<8x128xf32>
    %321 = arith.addf %318, %320 : vector<8x128xf32>
    %c0_143 = arith.constant 0 : index
    %c0_144 = arith.constant 0 : index
    %322 = vector.load %arg10[%c0_143, %c0_144] : memref<8x128xf32, #tpu.memory_space<vmem>>, vector<8x128xf32>
    tpu.vector_store %arg10[%c0_143, %c0_144], %321 {strides = array<i32>} : memref<8x128xf32, #tpu.memory_space<vmem>>, vector<8x128xf32>,
    return
  }
  func.func @transform_0(%arg0: i32) -> (i32, i32) {
    %c0_i32 = arith.constant 0 : i32
    %c0_i32_0 = arith.constant 0 : i32
    %c0_i32_1 = arith.constant 0 : i32
    return %c0_i32, %c0_i32_0 : i32, i32
  }
  func.func @transform_1(%arg0: i32) -> (i32, i32) {
    %c0_i32 = arith.constant 0 : i32
    %c0_i32_0 = arith.constant 0 : i32
    %c0_i32_1 = arith.constant 0 : i32
    return %c0_i32, %c0_i32_0 : i32, i32
  }
  func.func @transform_2(%arg0: i32) -> (i32, i32) {
    %c0_i32 = arith.constant 0 : i32
    %c0_i32_0 = arith.constant 0 : i32
    %c0_i32_1 = arith.constant 0 : i32
    return %c0_i32, %c0_i32_0 : i32, i32
  }
  func.func @transform_3(%arg0: i32) -> (i32, i32) {
    %c0_i32 = arith.constant 0 : i32
    %c0_i32_0 = arith.constant 0 : i32
    %c0_i32_1 = arith.constant 0 : i32
    return %c0_i32, %c0_i32_0 : i32, i32
  }
  func.func @transform_4(%arg0: i32) -> (i32, i32) {
    %c0_i32 = arith.constant 0 : i32
    %c0_i32_0 = arith.constant 0 : i32
    %c0_i32_1 = arith.constant 0 : i32
    return %c0_i32, %c0_i32_0 : i32, i32
  }
  func.func @transform_5(%arg0: i32) -> (i32, i32) {
    %c0_i32 = arith.constant 0 : i32
    %c0_i32_0 = arith.constant 0 : i32
    %c0_i32_1 = arith.constant 0 : i32
    return %c0_i32, %c0_i32_0 : i32, i32
  }
  func.func @transform_6(%arg0: i32) -> (i32, i32) {
    %c0_i32 = arith.constant 0 : i32
    %c0_i32_0 = arith.constant 0 : i32
    %c0_i32_1 = arith.constant 0 : i32
    return %c0_i32, %c0_i32_0 : i32, i32
  }
  func.func @transform_7(%arg0: i32) -> (i32, i32) {
    %c0_i32 = arith.constant 0 : i32
    %c0_i32_0 = arith.constant 0 : i32
    %c0_i32_1 = arith.constant 0 : i32
    return %c0_i32, %c0_i32_0 : i32, i32
  }
  func.func @transform_8(%arg0: i32) -> (i32, i32) {
    %c0_i32 = arith.constant 0 : i32
    %c0_i32_0 = arith.constant 0 : i32
    %c0_i32_1 = arith.constant 0 : i32
    return %c0_i32, %c0_i32_0 : i32, i32
  }
  func.func @transform_9(%arg0: i32) -> (i32, i32) {
    %c0_i32 = arith.constant 0 : i32
    %c0_i32_0 = arith.constant 0 : i32
    %c0_i32_1 = arith.constant 0 : i32
    return %c0_i32, %c0_i32_0 : i32, i32
  }
}

</mosaic_0001>

<llo_original>
// kernel: tpu_custom_call.1
$region0: #{tpu_custom_call.1}
  #allocation0 [shape = 'u32[]', space=smem, size = 0x4, offset = 0x4, fixed_abs, tag = 'smem constant byte address 0x4 - core index']
  #allocation1 [shape = 'u32[144,128]{1,0:T(1,128)}', space=vmem, size = 0x12000, scoped, tag = 'internal scratch']
  #allocation2 [shape = 'f32[8,32]{1,0:T(8,128)}', space=vmem, size = 0x1000, scoped, tag = 'scratch operand']
  %s0 = inlined_call_operand.vmem [shape: f32[8,4], index: 0, kind: input, shape index: {}]
  %s1 = inlined_call_operand.vmem [shape: f32[4,128], index: 1, kind: input, shape index: {}]
  %s2 = inlined_call_operand.vmem [shape: f32[1,128], index: 2, kind: input, shape index: {}]
  %s3 = inlined_call_operand.hbm [shape: f32[32,32], index: 3, kind: input, shape index: {}]
  %s4 = inlined_call_operand.hbm [shape: f32[32,32], index: 4, kind: input, shape index: {}]
  %s5 = inlined_call_operand.hbm [shape: f32[32,32], index: 5, kind: input, shape index: {}]
  %s6 = inlined_call_operand.hbm [shape: f32[32,32], index: 6, kind: input, shape index: {}]
  %s7 = inlined_call_operand.hbm [shape: f32[32,128], index: 7, kind: input, shape index: {}]
  %s8 = inlined_call_operand.vmem [shape: f32[1,128], index: 8, kind: input, shape index: {}]
  %s9 = inlined_call_operand.hbm [shape: f32[8,128], index: 9, kind: output, shape index: {}]
  %s10 = sld [smem:[#allocation0]]
  $region66: #{tpu_custom_call.1} parent=0
    _
  %s12 = ssub.s32 1, %s10
  %s13 = scalar_select 0, %s12, %s10
  $region1: #{tpu_custom_call.1} parent=0
    #allocation3 [shape = 'u8[16384]{0}', space=vmem, size = 0x4000, scoped, tag = 'input window, operand 3, single buffered']
    #allocation4 [shape = 's32[1]{0}', space=sflag, size = 0x4, scoped, tag = 'scoped memory for tpu_custom_call.1']
    #allocation5 [shape = 's32[1]{0}', space=sflag, size = 0x4, scoped, tag = 'scoped memory for tpu_custom_call.1']
    #allocation6 [shape = 'u8[16384]{0}', space=vmem, size = 0x4000, scoped, tag = 'input window, operand 4, single buffered']
    #allocation7 [shape = 's32[1]{0}', space=sflag, size = 0x4, scoped, tag = 'scoped memory for tpu_custom_call.1']
    #allocation8 [shape = 'u8[16384]{0}', space=vmem, size = 0x4000, scoped, tag = 'input window, operand 5, single buffered']
    #allocation9 [shape = 'u8[16384]{0}', space=vmem, size = 0x4000, scoped, tag = 'input window, operand 6, single buffered']
    #allocation10 [shape = 's32[1]{0}', space=sflag, size = 0x4, scoped, tag = 'scoped memory for tpu_custom_call.1']
    #allocation11 [shape = 'u8[16384]{0}', space=vmem, size = 0x4000, scoped, tag = 'input window, operand 7, single buffered']
    #allocation12 [shape = 'u8[4096]{0}', space=vmem, size = 0x1000, scoped, tag = 'output window, operand 0, single buffered']
    %14 = vsyncpa [#allocation4], 0
    %15 = vsyncpa [#allocation7], 0
    %16 = vsyncpa [#allocation10], 0
    %17 = vsyncpa [#allocation5], 0
    // Predicated region
    $region2: #{tpu_custom_call.1} parent=1 // pred_check
      _
    $region3: #{tpu_custom_call.1} parent=1 // pred_check_branch
      %19 = sbr.rel (0) target = $region5
    $region4: #{tpu_custom_call.1} parent=1 // pred_region
      _
    $region5: #{tpu_custom_call.1} parent=1 // pred_fallthru
      _
    // Predicated region
    $region6: #{tpu_custom_call.1} parent=1 // pred_check
      _
    $region7: #{tpu_custom_call.1} parent=1 // pred_check_branch
      %21 = sbr.rel (0) target = $region9
    $region8: #{tpu_custom_call.1} parent=1 // pred_region
      _
    $region9: #{tpu_custom_call.1} parent=1 // pred_fallthru
      _
    // Predicated region
    $region10: #{tpu_custom_call.1} parent=1 // pred_check
      _
    $region11: #{tpu_custom_call.1} parent=1 // pred_check_branch
      %23 = sbr.rel (0) target = $region13
    $region12: #{tpu_custom_call.1} parent=1 // pred_region
      _
    $region13: #{tpu_custom_call.1} parent=1 // pred_fallthru
      _
    // Predicated region
    $region14: #{tpu_custom_call.1} parent=1 // pred_check
      _
    $region15: #{tpu_custom_call.1} parent=1 // pred_check_branch
      %25 = sbr.rel (0) target = $region17
    $region16: #{tpu_custom_call.1} parent=1 // pred_region
      %s27 = ssub.s32 512, 512
      %28 = vsyncadd [#allocation4], %s27
      %s29 = sshll.u32 [#allocation3], 4
      %s30 = int_to_ptr.vmem [resolvable:$true] %s29
      %35 = dma.hbm_to_vmem [thread:$0]  %s3, 512, %s30, [#allocation4], 128, 128, 8
    $region17: #{tpu_custom_call.1} parent=1 // pred_fallthru
      _
    // Predicated region
    $region18: #{tpu_custom_call.1} parent=1 // pred_check
      _
    $region19: #{tpu_custom_call.1} parent=1 // pred_check_branch
      %37 = sbr.rel (0) target = $region21
    $region20: #{tpu_custom_call.1} parent=1 // pred_region
      %s39 = ssub.s32 512, 512
      %40 = vsyncadd [#allocation7], %s39
      %s41 = sshll.u32 [#allocation6], 4
      %s42 = int_to_ptr.vmem [resolvable:$true] %s41
      %47 = dma.hbm_to_vmem [thread:$0]  %s4, 512, %s42, [#allocation7], 128, 128, 8
    $region21: #{tpu_custom_call.1} parent=1 // pred_fallthru
      _
    // Predicated region
    $region22: #{tpu_custom_call.1} parent=1 // pred_check
      _
    $region23: #{tpu_custom_call.1} parent=1 // pred_check_branch
      %49 = sbr.rel (0) target = $region25
    $region24: #{tpu_custom_call.1} parent=1 // pred_region
      %s51 = ssub.s32 512, 512
      %52 = vsyncadd [#allocation7], %s51
      %s53 = sshll.u32 [#allocation8], 4
      %s54 = int_to_ptr.vmem [resolvable:$true] %s53
      %59 = dma.hbm_to_vmem [thread:$0]  %s5, 512, %s54, [#allocation7], 128, 128, 8
    $region25: #{tpu_custom_call.1} parent=1 // pred_fallthru
      _
    // Predicated region
    $region26: #{tpu_custom_call.1} parent=1 // pred_check
      _
    $region27: #{tpu_custom_call.1} parent=1 // pred_check_branch
      %61 = sbr.rel (0) target = $region29
    $region28: #{tpu_custom_call.1} parent=1 // pred_region
      %s63 = ssub.s32 512, 512
      %64 = vsyncadd [#allocation10], %s63
      %s65 = sshll.u32 [#allocation9], 4
      %s66 = int_to_ptr.vmem [resolvable:$true] %s65
      %71 = dma.hbm_to_vmem [thread:$0]  %s6, 512, %s66, [#allocation10], 128, 128, 8
    $region29: #{tpu_custom_call.1} parent=1 // pred_fallthru
      _
    // Predicated region
    $region30: #{tpu_custom_call.1} parent=1 // pred_check
      _
    $region31: #{tpu_custom_call.1} parent=1 // pred_check_branch
      %73 = sbr.rel (0) target = $region33
    $region32: #{tpu_custom_call.1} parent=1 // pred_region
      %s75 = ssub.s32 512, 512
      %76 = vsyncadd [#allocation10], %s75
      %s77 = sshll.u32 [#allocation11], 4
      %s78 = int_to_ptr.vmem [resolvable:$true] %s77
      %83 = dma.hbm_to_vmem [thread:$0]  %s7, 512, %s78, [#allocation10], 128, 128, 8
    $region33: #{tpu_custom_call.1} parent=1 // pred_fallthru
      _
    // Predicated region
    $region34: #{tpu_custom_call.1} parent=1 // pred_check
      _
    $region35: #{tpu_custom_call.1} parent=1 // pred_check_branch
      %85 = sbr.rel (0) target = $region37
    $region36: #{tpu_custom_call.1} parent=1 // pred_region
      _
    $region37: #{tpu_custom_call.1} parent=1 // pred_fallthru
      _
    // Predicated region
    $region38: #{tpu_custom_call.1} parent=1 // pred_check
      _
    $region39: #{tpu_custom_call.1} parent=1 // pred_check_branch
      %87 = sbr.rel (0) target = $region41
    $region40: #{tpu_custom_call.1} parent=1 // pred_region
      %88 = dma.done [#allocation4], 512
    $region41: #{tpu_custom_call.1} parent=1 // pred_fallthru
      _
    // Predicated region
    $region42: #{tpu_custom_call.1} parent=1 // pred_check
      _
    $region43: #{tpu_custom_call.1} parent=1 // pred_check_branch
      %90 = sbr.rel (0) target = $region45
    $region44: #{tpu_custom_call.1} parent=1 // pred_region
      %91 = dma.done [#allocation7], 512
    $region45: #{tpu_custom_call.1} parent=1 // pred_fallthru
      _
    // Predicated region
    $region46: #{tpu_custom_call.1} parent=1 // pred_check
      _
    $region47: #{tpu_custom_call.1} parent=1 // pred_check_branch
      %93 = sbr.rel (0) target = $region49
    $region48: #{tpu_custom_call.1} parent=1 // pred_region
      %94 = dma.done [#allocation7], 512
    $region49: #{tpu_custom_call.1} parent=1 // pred_fallthru
      _
    // Predicated region
    $region50: #{tpu_custom_call.1} parent=1 // pred_check
      _
    $region51: #{tpu_custom_call.1} parent=1 // pred_check_branch
      %96 = sbr.rel (0) target = $region53
    $region52: #{tpu_custom_call.1} parent=1 // pred_region
      %97 = dma.done [#allocation10], 512
    $region53: #{tpu_custom_call.1} parent=1 // pred_fallthru
      _
    // Predicated region
    $region54: #{tpu_custom_call.1} parent=1 // pred_check
      _
    $region55: #{tpu_custom_call.1} parent=1 // pred_check_branch
      %99 = sbr.rel (0) target = $region57
    $region56: #{tpu_custom_call.1} parent=1 // pred_region
      %100 = dma.done [#allocation10], 512
    $region57: #{tpu_custom_call.1} parent=1 // pred_fallthru
      _
    %v101 = vld [vmem:[%s0] sm:$0xff]
    %v102 = vld [vmem:[%s1] sm:$0xf]
    %v103 = vld [vmem:[%s2] sm:$0x1]
    %v105 = vlaneseq
    %v106 = vshrl.u32 %v105, 7
    %v107 = vsub.s32 0, %v106
    %v108 = vrot.slane %v103, %v107
    %vm110 = vcmask 31744
    %v112 = vsel %vm110, %v101, 0
    %vm114 = vcmask 1043456
    %v116 = vsel %vm114, %v102, 0
    %118 = vmatprep.subr.mxu0 0.0
    %119 = vmatpush1.msra.mxu0 0.0
    %120 = vmatprep.subr.mxu0 0.0
    %121 = vmatpush1.msra.mxu0 0.0
    %122 = vmatprep.subr.mxu0 0.0
    %123 = vmatpush1.msra.mxu0 0.0
    %124 = vmatprep.subr.mxu0 0.0
    %125 = vmatpush1.msra.mxu0 0.0
    %126 = vmatprep.subr.mxu0 0.0
    %127 = vmatpush1.msra.mxu0 0.0
    %128 = vmatprep.subr.mxu0 0.0
    %129 = vmatpush1.msra.mxu0 0.0
    %130 = vmatprep.subr.mxu0 0.0
    %131 = vmatpush1.msra.mxu0 0.0
    %132 = vmatprep.subr.mxu0 0.0
    %133 = vmatpush1.msra.mxu0 0.0
    %134 = vmatprep.subr.mxu0 0.0
    %135 = vmatpush1.msra.mxu0 0.0
    %136 = vmatprep.subr.mxu0 0.0
    %137 = vmatpush1.msra.mxu0 0.0
    %138 = vmatprep.subr.mxu0 0.0
    %139 = vmatpush1.msra.mxu0 0.0
    %140 = vmatprep.subr.mxu0 0.0
    %141 = vmatpush1.msra.mxu0 0.0
    %142 = vmatprep.subr.mxu0 0.0
    %143 = vmatpush1.msra.mxu0 0.0
    %144 = vmatprep.subr.mxu0 0.0
    %145 = vmatpush1.msra.mxu0 0.0
    %146 = vmatprep.subr.mxu0 0.0
    %147 = vmatpush1.msra.mxu0 0.0
    %148 = vmatprep.subr.mxu0 0.0
    %149 = vmatpush1.msra.mxu0 %v116
    %150 = vmatprep.subr.mxu0 0.0
    %151 = vmatpush2.msra.mxu0 0.0
    %152 = vmatprep.subr.mxu0 0.0
    %153 = vmatpush2.msra.mxu0 0.0
    %154 = vmatprep.subr.mxu0 0.0
    %155 = vmatpush2.msra.mxu0 0.0
    %156 = vmatprep.subr.mxu0 0.0
    %157 = vmatpush2.msra.mxu0 0.0
    %158 = vmatprep.subr.mxu0 0.0
    %159 = vmatpush2.msra.mxu0 0.0
    %160 = vmatprep.subr.mxu0 0.0
    %161 = vmatpush2.msra.mxu0 0.0
    %162 = vmatprep.subr.mxu0 0.0
    %163 = vmatpush2.msra.mxu0 0.0
    %164 = vmatprep.subr.mxu0 0.0
    %165 = vmatpush2.msra.mxu0 0.0
    %166 = vmatprep.subr.mxu0 0.0
    %167 = vmatpush2.msra.mxu0 0.0
    %168 = vmatprep.subr.mxu0 0.0
    %169 = vmatpush2.msra.mxu0 0.0
    %170 = vmatprep.subr.mxu0 0.0
    %171 = vmatpush2.msra.mxu0 0.0
    %172 = vmatprep.subr.mxu0 0.0
    %173 = vmatpush2.msra.mxu0 0.0
    %174 = vmatprep.subr.mxu0 0.0
    %175 = vmatpush2.msra.mxu0 0.0
    %176 = vmatprep.subr.mxu0 0.0
    %177 = vmatpush2.msra.mxu0 0.0
    %178 = vmatprep.subr.mxu0 0.0
    %179 = vmatpush2.msra.mxu0 0.0
    %180 = vmatprep.subr.mxu0 0.0
    %181 = vmatpush2.msra.mxu0 0.0
    %182 = vmatprep.mubr.f32.mxu0 0.0
    %183 = vmatmul.mubr.f32.gmra.mxu0 %v112
    %v184 = vpop.f32.mrf.mxu0
    %v185 = vadd.f32 %v108, %v184
    %v186 = vpop.f32.mrf.mxu0
    %187 = vdwg.mxu0
    %v188 = vld [vmem:[#allocation3] sm:$0xff]
    %v189 = vld [vmem:[#allocation3 + $0x8] sm:$0xff]
    %v190 = vld [vmem:[#allocation3 + $0x10] sm:$0xff]
    %v191 = vld [vmem:[#allocation3 + $0x18] sm:$0xff]
    %vm192 = vcmask 261120
    %v194 = vsel %vm192, 0.0, 0
    %196 = vmatprep.subr.mxu0 0.0
    %197 = vmatpush1.msra.mxu0 0.0
    %198 = vmatprep.subr.mxu0 0.0
    %199 = vmatpush1.msra.mxu0 0.0
    %200 = vmatprep.subr.mxu0 0.0
    %201 = vmatpush1.msra.mxu0 0.0
    %202 = vmatprep.subr.mxu0 0.0
    %203 = vmatpush1.msra.mxu0 0.0
    %204 = vmatprep.subr.mxu0 0.0
    %205 = vmatpush1.msra.mxu0 0.0
    %206 = vmatprep.subr.mxu0 0.0
    %207 = vmatpush1.msra.mxu0 0.0
    %208 = vmatprep.subr.mxu0 0.0
    %209 = vmatpush1.msra.mxu0 0.0
    %210 = vmatprep.subr.mxu0 0.0
    %211 = vmatpush1.msra.mxu0 0.0
    %212 = vmatprep.subr.mxu0 0.0
    %213 = vmatpush1.msra.mxu0 0.0
    %214 = vmatprep.subr.mxu0 0.0
    %215 = vmatpush1.msra.mxu0 0.0
    %216 = vmatprep.subr.mxu0 0.0
    %217 = vmatpush1.msra.mxu0 0.0
    %218 = vmatprep.subr.mxu0 0.0
    %219 = vmatpush1.msra.mxu0 0.0
    %220 = vmatprep.subr.mxu0 0.0
    %221 = vmatpush1.msra.mxu0 %v191
    %222 = vmatprep.subr.mxu0 0.0
    %223 = vmatpush1.msra.mxu0 %v190
    %224 = vmatprep.subr.mxu0 0.0
    %225 = vmatpush1.msra.mxu0 %v189
    %226 = vmatprep.subr.mxu0 0.0
    %227 = vmatpush1.msra.mxu0 %v188
    %228 = vmatprep.subr.mxu0 0.0
    %229 = vmatpush2.msra.mxu0 0.0
    %230 = vmatprep.subr.mxu0 0.0
    %231 = vmatpush2.msra.mxu0 0.0
    %232 = vmatprep.subr.mxu0 0.0
    %233 = vmatpush2.msra.mxu0 0.0
    %234 = vmatprep.subr.mxu0 0.0
    %235 = vmatpush2.msra.mxu0 0.0
    %236 = vmatprep.subr.mxu0 0.0
    %237 = vmatpush2.msra.mxu0 0.0
    %238 = vmatprep.subr.mxu0 0.0
    %239 = vmatpush2.msra.mxu0 0.0
    %240 = vmatprep.subr.mxu0 0.0
    %241 = vmatpush2.msra.mxu0 0.0
    %242 = vmatprep.subr.mxu0 0.0
    %243 = vmatpush2.msra.mxu0 0.0
    %244 = vmatprep.subr.mxu0 0.0
    %245 = vmatpush2.msra.mxu0 0.0
    %246 = vmatprep.subr.mxu0 0.0
    %247 = vmatpush2.msra.mxu0 0.0
    %248 = vmatprep.subr.mxu0 0.0
    %249 = vmatpush2.msra.mxu0 0.0
    %250 = vmatprep.subr.mxu0 0.0
    %251 = vmatpush2.msra.mxu0 0.0
    %252 = vmatprep.subr.mxu0 0.0
    %253 = vmatpush2.msra.mxu0 0.0
    %254 = vmatprep.subr.mxu0 0.0
    %255 = vmatpush2.msra.mxu0 0.0
    %256 = vmatprep.subr.mxu0 0.0
    %257 = vmatpush2.msra.mxu0 0.0
    %258 = vmatprep.subr.mxu0 0.0
    %259 = vmatpush2.msra.mxu0 0.0
    %260 = vmatprep.mubr.f32.mxu0 0.0
    %261 = vmatmul.mubr.f32.gmra.mxu0 %v194
    %v262 = vpop.f32.mrf.mxu0
    %v263 = vadd.f32 0.0, %v262
    %v264 = vpop.f32.mrf.mxu0
    %265 = vdwg.mxu0
    %v266 = vadd.f32 %v185, %v263
    %v267 = vld [vmem:[#allocation6] sm:$0xff]
    %v268 = vld [vmem:[#allocation6 + $0x8] sm:$0xff]
    %v269 = vld [vmem:[#allocation6 + $0x10] sm:$0xff]
    %v270 = vld [vmem:[#allocation6 + $0x18] sm:$0xff]
    %271 = vmatprep.subr.mxu0 0.0
    %272 = vmatpush1.msra.mxu0 0.0
    %273 = vmatprep.subr.mxu0 0.0
    %274 = vmatpush1.msra.mxu0 0.0
    %275 = vmatprep.subr.mxu0 0.0
    %276 = vmatpush1.msra.mxu0 0.0
    %277 = vmatprep.subr.mxu0 0.0
    %278 = vmatpush1.msra.mxu0 0.0
    %279 = vmatprep.subr.mxu0 0.0
    %280 = vmatpush1.msra.mxu0 0.0
    %281 = vmatprep.subr.mxu0 0.0
    %282 = vmatpush1.msra.mxu0 0.0
    %283 = vmatprep.subr.mxu0 0.0
    %284 = vmatpush1.msra.mxu0 0.0
    %285 = vmatprep.subr.mxu0 0.0
    %286 = vmatpush1.msra.mxu0 0.0
    %287 = vmatprep.subr.mxu0 0.0
    %288 = vmatpush1.msra.mxu0 0.0
    %289 = vmatprep.subr.mxu0 0.0
    %290 = vmatpush1.msra.mxu0 0.0
    %291 = vmatprep.subr.mxu0 0.0
    %292 = vmatpush1.msra.mxu0 0.0
    %293 = vmatprep.subr.mxu0 0.0
    %294 = vmatpush1.msra.mxu0 0.0
    %295 = vmatprep.subr.mxu0 0.0
    %296 = vmatpush1.msra.mxu0 %v270
    %297 = vmatprep.subr.mxu0 0.0
    %298 = vmatpush1.msra.mxu0 %v269
    %299 = vmatprep.subr.mxu0 0.0
    %300 = vmatpush1.msra.mxu0 %v268
    %301 = vmatprep.subr.mxu0 0.0
    %302 = vmatpush1.msra.mxu0 %v267
    %303 = vmatprep.subr.mxu0 0.0
    %304 = vmatpush2.msra.mxu0 0.0
    %305 = vmatprep.subr.mxu0 0.0
    %306 = vmatpush2.msra.mxu0 0.0
    %307 = vmatprep.subr.mxu0 0.0
    %308 = vmatpush2.msra.mxu0 0.0
    %309 = vmatprep.subr.mxu0 0.0
    %310 = vmatpush2.msra.mxu0 0.0
    %311 = vmatprep.subr.mxu0 0.0
    %312 = vmatpush2.msra.mxu0 0.0
    %313 = vmatprep.subr.mxu0 0.0
    %314 = vmatpush2.msra.mxu0 0.0
    %315 = vmatprep.subr.mxu0 0.0
    %316 = vmatpush2.msra.mxu0 0.0
    %317 = vmatprep.subr.mxu0 0.0
    %318 = vmatpush2.msra.mxu0 0.0
    %319 = vmatprep.subr.mxu0 0.0
    %320 = vmatpush2.msra.mxu0 0.0
    %321 = vmatprep.subr.mxu0 0.0
    %322 = vmatpush2.msra.mxu0 0.0
    %323 = vmatprep.subr.mxu0 0.0
    %324 = vmatpush2.msra.mxu0 0.0
    %325 = vmatprep.subr.mxu0 0.0
    %326 = vmatpush2.msra.mxu0 0.0
    %327 = vmatprep.subr.mxu0 0.0
    %328 = vmatpush2.msra.mxu0 0.0
    %329 = vmatprep.subr.mxu0 0.0
    %330 = vmatpush2.msra.mxu0 0.0
    %331 = vmatprep.subr.mxu0 0.0
    %332 = vmatpush2.msra.mxu0 0.0
    %333 = vmatprep.subr.mxu0 0.0
    %334 = vmatpush2.msra.mxu0 0.0
    %335 = vmatprep.mubr.f32.mxu0 0.0
    %336 = vmatmul.mubr.f32.gmra.mxu0 %v194
    %v337 = vpop.f32.mrf.mxu0
    %v338 = vadd.f32 0.0, %v337
    %v339 = vpop.f32.mrf.mxu0
    %340 = vdwg.mxu0
    %342 = vrot.lane.b32.xlu0 %v338, 32
    %v343 = vpop.permute.xlu0 %342
    %v345 = vadd.f32 %v185, %v343
    %v346 = vld [vmem:[#allocation8] sm:$0xff]
    %v347 = vld [vmem:[#allocation8 + $0x8] sm:$0xff]
    %v348 = vld [vmem:[#allocation8 + $0x10] sm:$0xff]
    %v349 = vld [vmem:[#allocation8 + $0x18] sm:$0xff]
    %350 = vmatprep.subr.mxu0 0.0
    %351 = vmatpush1.msra.mxu0 0.0
    %352 = vmatprep.subr.mxu0 0.0
    %353 = vmatpush1.msra.mxu0 0.0
    %354 = vmatprep.subr.mxu0 0.0
    %355 = vmatpush1.msra.mxu0 0.0
    %356 = vmatprep.subr.mxu0 0.0
    %357 = vmatpush1.msra.mxu0 0.0
    %358 = vmatprep.subr.mxu0 0.0
    %359 = vmatpush1.msra.mxu0 0.0
    %360 = vmatprep.subr.mxu0 0.0
    %361 = vmatpush1.msra.mxu0 0.0
    %362 = vmatprep.subr.mxu0 0.0
    %363 = vmatpush1.msra.mxu0 0.0
    %364 = vmatprep.subr.mxu0 0.0
    %365 = vmatpush1.msra.mxu0 0.0
    %366 = vmatprep.subr.mxu0 0.0
    %367 = vmatpush1.msra.mxu0 0.0
    %368 = vmatprep.subr.mxu0 0.0
    %369 = vmatpush1.msra.mxu0 0.0
    %370 = vmatprep.subr.mxu0 0.0
    %371 = vmatpush1.msra.mxu0 0.0
    %372 = vmatprep.subr.mxu0 0.0
    %373 = vmatpush1.msra.mxu0 0.0
    %374 = vmatprep.subr.mxu0 0.0
    %375 = vmatpush1.msra.mxu0 %v349
    %376 = vmatprep.subr.mxu0 0.0
    %377 = vmatpush1.msra.mxu0 %v348
    %378 = vmatprep.subr.mxu0 0.0
    %379 = vmatpush1.msra.mxu0 %v347
    %380 = vmatprep.subr.mxu0 0.0
    %381 = vmatpush1.msra.mxu0 %v346
    %382 = vmatprep.subr.mxu0 0.0
    %383 = vmatpush2.msra.mxu0 0.0
    %384 = vmatprep.subr.mxu0 0.0
    %385 = vmatpush2.msra.mxu0 0.0
    %386 = vmatprep.subr.mxu0 0.0
    %387 = vmatpush2.msra.mxu0 0.0
    %388 = vmatprep.subr.mxu0 0.0
    %389 = vmatpush2.msra.mxu0 0.0
    %390 = vmatprep.subr.mxu0 0.0
    %391 = vmatpush2.msra.mxu0 0.0
    %392 = vmatprep.subr.mxu0 0.0
    %393 = vmatpush2.msra.mxu0 0.0
    %394 = vmatprep.subr.mxu0 0.0
    %395 = vmatpush2.msra.mxu0 0.0
    %396 = vmatprep.subr.mxu0 0.0
    %397 = vmatpush2.msra.mxu0 0.0
    %398 = vmatprep.subr.mxu0 0.0
    %399 = vmatpush2.msra.mxu0 0.0
    %400 = vmatprep.subr.mxu0 0.0
    %401 = vmatpush2.msra.mxu0 0.0
    %402 = vmatprep.subr.mxu0 0.0
    %403 = vmatpush2.msra.mxu0 0.0
    %404 = vmatprep.subr.mxu0 0.0
    %405 = vmatpush2.msra.mxu0 0.0
    %406 = vmatprep.subr.mxu0 0.0
    %407 = vmatpush2.msra.mxu0 0.0
    %408 = vmatprep.subr.mxu0 0.0
    %409 = vmatpush2.msra.mxu0 0.0
    %410 = vmatprep.subr.mxu0 0.0
    %411 = vmatpush2.msra.mxu0 0.0
    %412 = vmatprep.subr.mxu0 0.0
    %413 = vmatpush2.msra.mxu0 0.0
    %414 = vmatprep.mubr.f32.mxu0 0.0
    %415 = vmatmul.mubr.f32.gmra.mxu0 %v194
    %v416 = vpop.f32.mrf.mxu0
    %v417 = vadd.f32 0.0, %v416
    %v418 = vpop.f32.mrf.mxu0
    %419 = vdwg.mxu0
    %421 = vrot.lane.b32.xlu0 %v417, 64
    %v422 = vpop.permute.xlu0 %421
    %v424 = vadd.f32 %v185, %v422
    %v425 = vld [vmem:[#allocation9] sm:$0xff]
    %v426 = vld [vmem:[#allocation9 + $0x8] sm:$0xff]
    %v427 = vld [vmem:[#allocation9 + $0x10] sm:$0xff]
    %v428 = vld [vmem:[#allocation9 + $0x18] sm:$0xff]
    %429 = vmatprep.subr.mxu0 0.0
    %430 = vmatpush1.msra.mxu0 0.0
    %431 = vmatprep.subr.mxu0 0.0
    %432 = vmatpush1.msra.mxu0 0.0
    %433 = vmatprep.subr.mxu0 0.0
    %434 = vmatpush1.msra.mxu0 0.0
    %435 = vmatprep.subr.mxu0 0.0
    %436 = vmatpush1.msra.mxu0 0.0
    %437 = vmatprep.subr.mxu0 0.0
    %438 = vmatpush1.msra.mxu0 0.0
    %439 = vmatprep.subr.mxu0 0.0
    %440 = vmatpush1.msra.mxu0 0.0
    %441 = vmatprep.subr.mxu0 0.0
    %442 = vmatpush1.msra.mxu0 0.0
    %443 = vmatprep.subr.mxu0 0.0
    %444 = vmatpush1.msra.mxu0 0.0
    %445 = vmatprep.subr.mxu0 0.0
    %446 = vmatpush1.msra.mxu0 0.0
    %447 = vmatprep.subr.mxu0 0.0
    %448 = vmatpush1.msra.mxu0 0.0
    %449 = vmatprep.subr.mxu0 0.0
    %450 = vmatpush1.msra.mxu0 0.0
    %451 = vmatprep.subr.mxu0 0.0
    %452 = vmatpush1.msra.mxu0 0.0
    %453 = vmatprep.subr.mxu0 0.0
    %454 = vmatpush1.msra.mxu0 %v428
    %455 = vmatprep.subr.mxu0 0.0
    %456 = vmatpush1.msra.mxu0 %v427
    %457 = vmatprep.subr.mxu0 0.0
    %458 = vmatpush1.msra.mxu0 %v426
    %459 = vmatprep.subr.mxu0 0.0
    %460 = vmatpush1.msra.mxu0 %v425
    %461 = vmatprep.subr.mxu0 0.0
    %462 = vmatpush2.msra.mxu0 0.0
    %463 = vmatprep.subr.mxu0 0.0
    %464 = vmatpush2.msra.mxu0 0.0
    %465 = vmatprep.subr.mxu0 0.0
    %466 = vmatpush2.msra.mxu0 0.0
    %467 = vmatprep.subr.mxu0 0.0
    %468 = vmatpush2.msra.mxu0 0.0
    %469 = vmatprep.subr.mxu0 0.0
    %470 = vmatpush2.msra.mxu0 0.0
    %471 = vmatprep.subr.mxu0 0.0
    %472 = vmatpush2.msra.mxu0 0.0
    %473 = vmatprep.subr.mxu0 0.0
    %474 = vmatpush2.msra.mxu0 0.0
    %475 = vmatprep.subr.mxu0 0.0
    %476 = vmatpush2.msra.mxu0 0.0
    %477 = vmatprep.subr.mxu0 0.0
    %478 = vmatpush2.msra.mxu0 0.0
    %479 = vmatprep.subr.mxu0 0.0
    %480 = vmatpush2.msra.mxu0 0.0
    %481 = vmatprep.subr.mxu0 0.0
    %482 = vmatpush2.msra.mxu0 0.0
    %483 = vmatprep.subr.mxu0 0.0
    %484 = vmatpush2.msra.mxu0 0.0
    %485 = vmatprep.subr.mxu0 0.0
    %486 = vmatpush2.msra.mxu0 0.0
    %487 = vmatprep.subr.mxu0 0.0
    %488 = vmatpush2.msra.mxu0 0.0
    %489 = vmatprep.subr.mxu0 0.0
    %490 = vmatpush2.msra.mxu0 0.0
    %491 = vmatprep.subr.mxu0 0.0
    %492 = vmatpush2.msra.mxu0 0.0
    %493 = vmatprep.mubr.f32.mxu0 0.0
    %494 = vmatmul.mubr.f32.gmra.mxu0 %v194
    %v495 = vpop.f32.mrf.mxu0
    %v496 = vadd.f32 0.0, %v495
    %v497 = vpop.f32.mrf.mxu0
    %498 = vdwg.mxu0
    %500 = vrot.lane.b32.xlu0 %v496, 96
    %v501 = vpop.permute.xlu0 %500
    %v503 = vadd.f32 %v185, %v501
    %v504 = vxor.u32 %v266, 2147483648
    %v505 = vmul.f32 %v504, 1.442695
    %v506 = vpow.pop %v505
    %v507 = vadd.f32 %v506, 1.0
    %v508 = vrcp.pop %v507
    %v509 = vmul.f32 1.0, %v508
    %v510 = vxor.u32 %v345, 2147483648
    %v511 = vmul.f32 %v510, 1.442695
    %v512 = vpow.pop %v511
    %v513 = vadd.f32 %v512, 1.0
    %v514 = vrcp.pop %v513
    %v515 = vmul.f32 1.0, %v514
    %v516 = vtanh.pop %v424
    %v517 = vxor.u32 %v503, 2147483648
    %v518 = vmul.f32 %v517, 1.442695
    %v519 = vpow.pop %v518
    %v520 = vadd.f32 %v519, 1.0
    %v521 = vrcp.pop %v520
    %v522 = vmul.f32 1.0, %v521
    %v523 = vmul.f32 %v515, 0.0
    %525 = vrot.lane.b32.xlu0 %v516, 64
    %v526 = vpop.permute.xlu0 %525
    %v528 = vmul.f32 %v509, %v526
    %530 = vrot.lane.b32.xlu0 %v528, 32
    %v531 = vpop.permute.xlu0 %530
    %v533 = vadd.f32 %v523, %v531
    %v534 = vtanh.pop %v533
    %536 = vrot.lane.b32.xlu0 %v534, 64
    %v537 = vpop.permute.xlu0 %536
    %v539 = vmul.f32 %v522, %v537
    %541 = vrot.lane.b32.xlu0 %v539, 32
    %v542 = vpop.permute.xlu0 %541
    %vm544 = vcmask 253952
    %545 = vst.msk [vmem:[#allocation2] sm:$0x1] %vm544, %v542
    %v546 = vld [vmem:[#allocation3] sm:$0xff]
    %v547 = vld [vmem:[#allocation3 + $0x8] sm:$0xff]
    %v548 = vld [vmem:[#allocation3 + $0x10] sm:$0xff]
    %v549 = vld [vmem:[#allocation3 + $0x18] sm:$0xff]
    %v550 = vsel %vm192, %v542, 0
    %552 = vmatprep.subr.mxu0 0.0
    %553 = vmatpush1.msra.mxu0 0.0
    %554 = vmatprep.subr.mxu0 0.0
    %555 = vmatpush1.msra.mxu0 0.0
    %556 = vmatprep.subr.mxu0 0.0
    %557 = vmatpush1.msra.mxu0 0.0
    %558 = vmatprep.subr.mxu0 0.0
    %559 = vmatpush1.msra.mxu0 0.0
    %560 = vmatprep.subr.mxu0 0.0
    %561 = vmatpush1.msra.mxu0 0.0
    %562 = vmatprep.subr.mxu0 0.0
    %563 = vmatpush1.msra.mxu0 0.0
    %564 = vmatprep.subr.mxu0 0.0
    %565 = vmatpush1.msra.mxu0 0.0
    %566 = vmatprep.subr.mxu0 0.0
    %567 = vmatpush1.msra.mxu0 0.0
    %568 = vmatprep.subr.mxu0 0.0
    %569 = vmatpush1.msra.mxu0 0.0
    %570 = vmatprep.subr.mxu0 0.0
    %571 = vmatpush1.msra.mxu0 0.0
    %572 = vmatprep.subr.mxu0 0.0
    %573 = vmatpush1.msra.mxu0 0.0
    %574 = vmatprep.subr.mxu0 0.0
    %575 = vmatpush1.msra.mxu0 0.0
    %576 = vmatprep.subr.mxu0 0.0
    %577 = vmatpush1.msra.mxu0 %v549
    %578 = vmatprep.subr.mxu0 0.0
    %579 = vmatpush1.msra.mxu0 %v548
    %580 = vmatprep.subr.mxu0 0.0
    %581 = vmatpush1.msra.mxu0 %v547
    %582 = vmatprep.subr.mxu0 0.0
    %583 = vmatpush1.msra.mxu0 %v546
    %584 = vmatprep.subr.mxu0 0.0
    %585 = vmatpush2.msra.mxu0 0.0
    %586 = vmatprep.subr.mxu0 0.0
    %587 = vmatpush2.msra.mxu0 0.0
    %588 = vmatprep.subr.mxu0 0.0
    %589 = vmatpush2.msra.mxu0 0.0
    %590 = vmatprep.subr.mxu0 0.0
    %591 = vmatpush2.msra.mxu0 0.0
    %592 = vmatprep.subr.mxu0 0.0
    %593 = vmatpush2.msra.mxu0 0.0
    %594 = vmatprep.subr.mxu0 0.0
    %595 = vmatpush2.msra.mxu0 0.0
    %596 = vmatprep.subr.mxu0 0.0
    %597 = vmatpush2.msra.mxu0 0.0
    %598 = vmatprep.subr.mxu0 0.0
    %599 = vmatpush2.msra.mxu0 0.0
    %600 = vmatprep.subr.mxu0 0.0
    %601 = vmatpush2.msra.mxu0 0.0
    %602 = vmatprep.subr.mxu0 0.0
    %603 = vmatpush2.msra.mxu0 0.0
    %604 = vmatprep.subr.mxu0 0.0
    %605 = vmatpush2.msra.mxu0 0.0
    %606 = vmatprep.subr.mxu0 0.0
    %607 = vmatpush2.msra.mxu0 0.0
    %608 = vmatprep.subr.mxu0 0.0
    %609 = vmatpush2.msra.mxu0 0.0
    %610 = vmatprep.subr.mxu0 0.0
    %611 = vmatpush2.msra.mxu0 0.0
    %612 = vmatprep.subr.mxu0 0.0
    %613 = vmatpush2.msra.mxu0 0.0
    %614 = vmatprep.subr.mxu0 0.0
    %615 = vmatpush2.msra.mxu0 0.0
    %616 = vmatprep.mubr.f32.mxu0 0.0
    %617 = vmatmul.mubr.f32.gmra.mxu0 %v550
    %v618 = vpop.f32.mrf.mxu0
    %v619 = vadd.f32 0.0, %v618
    %v620 = vpop.f32.mrf.mxu0
    %621 = vdwg.mxu0
    %v623 = vrot.slane %v619, 7
    %v625 = vadd.f32 %v185, %v623
    %v626 = vld [vmem:[#allocation6] sm:$0xff]
    %v627 = vld [vmem:[#allocation6 + $0x8] sm:$0xff]
    %v628 = vld [vmem:[#allocation6 + $0x10] sm:$0xff]
    %v629 = vld [vmem:[#allocation6 + $0x18] sm:$0xff]
    %630 = vmatprep.subr.mxu0 0.0
    %631 = vmatpush1.msra.mxu0 0.0
    %632 = vmatprep.subr.mxu0 0.0
    %633 = vmatpush1.msra.mxu0 0.0
    %634 = vmatprep.subr.mxu0 0.0
    %635 = vmatpush1.msra.mxu0 0.0
    %636 = vmatprep.subr.mxu0 0.0
    %637 = vmatpush1.msra.mxu0 0.0
    %638 = vmatprep.subr.mxu0 0.0
    %639 = vmatpush1.msra.mxu0 0.0
    %640 = vmatprep.subr.mxu0 0.0
    %641 = vmatpush1.msra.mxu0 0.0
    %642 = vmatprep.subr.mxu0 0.0
    %643 = vmatpush1.msra.mxu0 0.0
    %644 = vmatprep.subr.mxu0 0.0
    %645 = vmatpush1.msra.mxu0 0.0
    %646 = vmatprep.subr.mxu0 0.0
    %647 = vmatpush1.msra.mxu0 0.0
    %648 = vmatprep.subr.mxu0 0.0
    %649 = vmatpush1.msra.mxu0 0.0
    %650 = vmatprep.subr.mxu0 0.0
    %651 = vmatpush1.msra.mxu0 0.0
    %652 = vmatprep.subr.mxu0 0.0
    %653 = vmatpush1.msra.mxu0 0.0
    %654 = vmatprep.subr.mxu0 0.0
    %655 = vmatpush1.msra.mxu0 %v629
    %656 = vmatprep.subr.mxu0 0.0
    %657 = vmatpush1.msra.mxu0 %v628
    %658 = vmatprep.subr.mxu0 0.0
    %659 = vmatpush1.msra.mxu0 %v627
    %660 = vmatprep.subr.mxu0 0.0
    %661 = vmatpush1.msra.mxu0 %v626
    %662 = vmatprep.subr.mxu0 0.0
    %663 = vmatpush2.msra.mxu0 0.0
    %664 = vmatprep.subr.mxu0 0.0
    %665 = vmatpush2.msra.mxu0 0.0
    %666 = vmatprep.subr.mxu0 0.0
    %667 = vmatpush2.msra.mxu0 0.0
    %668 = vmatprep.subr.mxu0 0.0
    %669 = vmatpush2.msra.mxu0 0.0
    %670 = vmatprep.subr.mxu0 0.0
    %671 = vmatpush2.msra.mxu0 0.0
    %672 = vmatprep.subr.mxu0 0.0
    %673 = vmatpush2.msra.mxu0 0.0
    %674 = vmatprep.subr.mxu0 0.0
    %675 = vmatpush2.msra.mxu0 0.0
    %676 = vmatprep.subr.mxu0 0.0
    %677 = vmatpush2.msra.mxu0 0.0
    %678 = vmatprep.subr.mxu0 0.0
    %679 = vmatpush2.msra.mxu0 0.0
    %680 = vmatprep.subr.mxu0 0.0
    %681 = vmatpush2.msra.mxu0 0.0
    %682 = vmatprep.subr.mxu0 0.0
    %683 = vmatpush2.msra.mxu0 0.0
    %684 = vmatprep.subr.mxu0 0.0
    %685 = vmatpush2.msra.mxu0 0.0
    %686 = vmatprep.subr.mxu0 0.0
    %687 = vmatpush2.msra.mxu0 0.0
    %688 = vmatprep.subr.mxu0 0.0
    %689 = vmatpush2.msra.mxu0 0.0
    %690 = vmatprep.subr.mxu0 0.0
    %691 = vmatpush2.msra.mxu0 0.0
    %692 = vmatprep.subr.mxu0 0.0
    %693 = vmatpush2.msra.mxu0 0.0
    %694 = vmatprep.mubr.f32.mxu0 0.0
    %695 = vmatmul.mubr.f32.gmra.mxu0 %v550
    %v696 = vpop.f32.mrf.mxu0
    %v697 = vadd.f32 0.0, %v696
    %v698 = vpop.f32.mrf.mxu0
    %699 = vdwg.mxu0
    %v701 = vrot.slane %v697, 7
    %702 = vrot.lane.b32.xlu0 %v701, 32
    %v703 = vpop.permute.xlu0 %702
    %v705 = vadd.f32 %v185, %v703
    %v706 = vld [vmem:[#allocation8] sm:$0xff]
    %v707 = vld [vmem:[#allocation8 + $0x8] sm:$0xff]
    %v708 = vld [vmem:[#allocation8 + $0x10] sm:$0xff]
    %v709 = vld [vmem:[#allocation8 + $0x18] sm:$0xff]
    %710 = vmatprep.subr.mxu0 0.0
    %711 = vmatpush1.msra.mxu0 0.0
    %712 = vmatprep.subr.mxu0 0.0
    %713 = vmatpush1.msra.mxu0 0.0
    %714 = vmatprep.subr.mxu0 0.0
    %715 = vmatpush1.msra.mxu0 0.0
    %716 = vmatprep.subr.mxu0 0.0
    %717 = vmatpush1.msra.mxu0 0.0
    %718 = vmatprep.subr.mxu0 0.0
    %719 = vmatpush1.msra.mxu0 0.0
    %720 = vmatprep.subr.mxu0 0.0
    %721 = vmatpush1.msra.mxu0 0.0
    %722 = vmatprep.subr.mxu0 0.0
    %723 = vmatpush1.msra.mxu0 0.0
    %724 = vmatprep.subr.mxu0 0.0
    %725 = vmatpush1.msra.mxu0 0.0
    %726 = vmatprep.subr.mxu0 0.0
    %727 = vmatpush1.msra.mxu0 0.0
    %728 = vmatprep.subr.mxu0 0.0
    %729 = vmatpush1.msra.mxu0 0.0
    %730 = vmatprep.subr.mxu0 0.0
    %731 = vmatpush1.msra.mxu0 0.0
    %732 = vmatprep.subr.mxu0 0.0
    %733 = vmatpush1.msra.mxu0 0.0
    %734 = vmatprep.subr.mxu0 0.0
    %735 = vmatpush1.msra.mxu0 %v709
    %736 = vmatprep.subr.mxu0 0.0
    %737 = vmatpush1.msra.mxu0 %v708
    %738 = vmatprep.subr.mxu0 0.0
    %739 = vmatpush1.msra.mxu0 %v707
    %740 = vmatprep.subr.mxu0 0.0
    %741 = vmatpush1.msra.mxu0 %v706
    %742 = vmatprep.subr.mxu0 0.0
    %743 = vmatpush2.msra.mxu0 0.0
    %744 = vmatprep.subr.mxu0 0.0
    %745 = vmatpush2.msra.mxu0 0.0
    %746 = vmatprep.subr.mxu0 0.0
    %747 = vmatpush2.msra.mxu0 0.0
    %748 = vmatprep.subr.mxu0 0.0
    %749 = vmatpush2.msra.mxu0 0.0
    %750 = vmatprep.subr.mxu0 0.0
    %751 = vmatpush2.msra.mxu0 0.0
    %752 = vmatprep.subr.mxu0 0.0
    %753 = vmatpush2.msra.mxu0 0.0
    %754 = vmatprep.subr.mxu0 0.0
    %755 = vmatpush2.msra.mxu0 0.0
    %756 = vmatprep.subr.mxu0 0.0
    %757 = vmatpush2.msra.mxu0 0.0
    %758 = vmatprep.subr.mxu0 0.0
    %759 = vmatpush2.msra.mxu0 0.0
    %760 = vmatprep.subr.mxu0 0.0
    %761 = vmatpush2.msra.mxu0 0.0
    %762 = vmatprep.subr.mxu0 0.0
    %763 = vmatpush2.msra.mxu0 0.0
    %764 = vmatprep.subr.mxu0 0.0
    %765 = vmatpush2.msra.mxu0 0.0
    %766 = vmatprep.subr.mxu0 0.0
    %767 = vmatpush2.msra.mxu0 0.0
    %768 = vmatprep.subr.mxu0 0.0
    %769 = vmatpush2.msra.mxu0 0.0
    %770 = vmatprep.subr.mxu0 0.0
    %771 = vmatpush2.msra.mxu0 0.0
    %772 = vmatprep.subr.mxu0 0.0
    %773 = vmatpush2.msra.mxu0 0.0
    %774 = vmatprep.mubr.f32.mxu0 0.0
    %775 = vmatmul.mubr.f32.gmra.mxu0 %v550
    %v776 = vpop.f32.mrf.mxu0
    %v777 = vadd.f32 0.0, %v776
    %v778 = vpop.f32.mrf.mxu0
    %779 = vdwg.mxu0
    %v781 = vrot.slane %v777, 7
    %782 = vrot.lane.b32.xlu0 %v781, 64
    %v783 = vpop.permute.xlu0 %782
    %v785 = vadd.f32 %v185, %v783
    %v786 = vld [vmem:[#allocation9] sm:$0xff]
    %v787 = vld [vmem:[#allocation9 + $0x8] sm:$0xff]
    %v788 = vld [vmem:[#allocation9 + $0x10] sm:$0xff]
    %v789 = vld [vmem:[#allocation9 + $0x18] sm:$0xff]
    %790 = vmatprep.subr.mxu0 0.0
    %791 = vmatpush1.msra.mxu0 0.0
    %792 = vmatprep.subr.mxu0 0.0
    %793 = vmatpush1.msra.mxu0 0.0
    %794 = vmatprep.subr.mxu0 0.0
    %795 = vmatpush1.msra.mxu0 0.0
    %796 = vmatprep.subr.mxu0 0.0
    %797 = vmatpush1.msra.mxu0 0.0
    %798 = vmatprep.subr.mxu0 0.0
    %799 = vmatpush1.msra.mxu0 0.0
    %800 = vmatprep.subr.mxu0 0.0
    %801 = vmatpush1.msra.mxu0 0.0
    %802 = vmatprep.subr.mxu0 0.0
    %803 = vmatpush1.msra.mxu0 0.0
    %804 = vmatprep.subr.mxu0 0.0
    %805 = vmatpush1.msra.mxu0 0.0
    %806 = vmatprep.subr.mxu0 0.0
    %807 = vmatpush1.msra.mxu0 0.0
    %808 = vmatprep.subr.mxu0 0.0
    %809 = vmatpush1.msra.mxu0 0.0
    %810 = vmatprep.subr.mxu0 0.0
    %811 = vmatpush1.msra.mxu0 0.0
    %812 = vmatprep.subr.mxu0 0.0
    %813 = vmatpush1.msra.mxu0 0.0
    %814 = vmatprep.subr.mxu0 0.0
    %815 = vmatpush1.msra.mxu0 %v789
    %816 = vmatprep.subr.mxu0 0.0
    %817 = vmatpush1.msra.mxu0 %v788
    %818 = vmatprep.subr.mxu0 0.0
    %819 = vmatpush1.msra.mxu0 %v787
    %820 = vmatprep.subr.mxu0 0.0
    %821 = vmatpush1.msra.mxu0 %v786
    %822 = vmatprep.subr.mxu0 0.0
    %823 = vmatpush2.msra.mxu0 0.0
    %824 = vmatprep.subr.mxu0 0.0
    %825 = vmatpush2.msra.mxu0 0.0
    %826 = vmatprep.subr.mxu0 0.0
    %827 = vmatpush2.msra.mxu0 0.0
    %828 = vmatprep.subr.mxu0 0.0
    %829 = vmatpush2.msra.mxu0 0.0
    %830 = vmatprep.subr.mxu0 0.0
    %831 = vmatpush2.msra.mxu0 0.0
    %832 = vmatprep.subr.mxu0 0.0
    %833 = vmatpush2.msra.mxu0 0.0
    %834 = vmatprep.subr.mxu0 0.0
    %835 = vmatpush2.msra.mxu0 0.0
    %836 = vmatprep.subr.mxu0 0.0
    %837 = vmatpush2.msra.mxu0 0.0
    %838 = vmatprep.subr.mxu0 0.0
    %839 = vmatpush2.msra.mxu0 0.0
    %840 = vmatprep.subr.mxu0 0.0
    %841 = vmatpush2.msra.mxu0 0.0
    %842 = vmatprep.subr.mxu0 0.0
    %843 = vmatpush2.msra.mxu0 0.0
    %844 = vmatprep.subr.mxu0 0.0
    %845 = vmatpush2.msra.mxu0 0.0
    %846 = vmatprep.subr.mxu0 0.0
    %847 = vmatpush2.msra.mxu0 0.0
    %848 = vmatprep.subr.mxu0 0.0
    %849 = vmatpush2.msra.mxu0 0.0
    %850 = vmatprep.subr.mxu0 0.0
    %851 = vmatpush2.msra.mxu0 0.0
    %852 = vmatprep.subr.mxu0 0.0
    %853 = vmatpush2.msra.mxu0 0.0
    %854 = vmatprep.mubr.f32.mxu0 0.0
    %855 = vmatmul.mubr.f32.gmra.mxu0 %v550
    %v856 = vpop.f32.mrf.mxu0
    %v857 = vadd.f32 0.0, %v856
    %v858 = vpop.f32.mrf.mxu0
    %859 = vdwg.mxu0
    %v861 = vrot.slane %v857, 7
    %862 = vrot.lane.b32.xlu0 %v861, 96
    %v863 = vpop.permute.xlu0 %862
    %v865 = vadd.f32 %v185, %v863
    %v866 = vxor.u32 %v625, 2147483648
    %v867 = vmul.f32 %v866, 1.442695
    %v868 = vpow.pop %v867
    %v869 = vadd.f32 %v868, 1.0
    %v870 = vrcp.pop %v869
    %v871 = vmul.f32 1.0, %v870
    %v872 = vxor.u32 %v705, 2147483648
    %v873 = vmul.f32 %v872, 1.442695
    %v874 = vpow.pop %v873
    %v875 = vadd.f32 %v874, 1.0
    %v876 = vrcp.pop %v875
    %v877 = vmul.f32 1.0, %v876
    %v878 = vtanh.pop %v785
    %v879 = vxor.u32 %v865, 2147483648
    %v880 = vmul.f32 %v879, 1.442695
    %v881 = vpow.pop %v880
    %v882 = vadd.f32 %v881, 1.0
    %v883 = vrcp.pop %v882
    %v884 = vmul.f32 1.0, %v883
    %v886 = vrot.slane %v533, 7
    %v888 = vmul.f32 %v877, %v886
    %890 = vrot.lane.b32.xlu0 %v878, 64
    %v891 = vpop.permute.xlu0 %890
    %v893 = vmul.f32 %v871, %v891
    %895 = vrot.lane.b32.xlu0 %v893, 32
    %v896 = vpop.permute.xlu0 %895
    %v898 = vadd.f32 %v888, %v896
    %v899 = vtanh.pop %v898
    %901 = vrot.lane.b32.xlu0 %v899, 64
    %v902 = vpop.permute.xlu0 %901
    %v904 = vmul.f32 %v884, %v902
    %906 = vrot.lane.b32.xlu0 %v904, 32
    %v907 = vpop.permute.xlu0 %906
    %vm909 = vcmask 254977
    %910 = vst.msk [vmem:[#allocation2] sm:$0x2] %vm909, %v907
    %v911 = vld [vmem:[#allocation3] sm:$0xff]
    %v912 = vld [vmem:[#allocation3 + $0x8] sm:$0xff]
    %v913 = vld [vmem:[#allocation3 + $0x10] sm:$0xff]
    %v914 = vld [vmem:[#allocation3 + $0x18] sm:$0xff]
    %v915 = vrot.slane %v904, 1
    %916 = vrot.lane.b32.xlu0 %v915, 32
    %v917 = vpop.permute.xlu0 %916
    %v918 = vsel %vm192, %v917, 0
    %920 = vmatprep.subr.mxu0 0.0
    %921 = vmatpush1.msra.mxu0 0.0
    %922 = vmatprep.subr.mxu0 0.0
    %923 = vmatpush1.msra.mxu0 0.0
    %924 = vmatprep.subr.mxu0 0.0
    %925 = vmatpush1.msra.mxu0 0.0
    %926 = vmatprep.subr.mxu0 0.0
    %927 = vmatpush1.msra.mxu0 0.0
    %928 = vmatprep.subr.mxu0 0.0
    %929 = vmatpush1.msra.mxu0 0.0
    %930 = vmatprep.subr.mxu0 0.0
    %931 = vmatpush1.msra.mxu0 0.0
    %932 = vmatprep.subr.mxu0 0.0
    %933 = vmatpush1.msra.mxu0 0.0
    %934 = vmatprep.subr.mxu0 0.0
    %935 = vmatpush1.msra.mxu0 0.0
    %936 = vmatprep.subr.mxu0 0.0
    %937 = vmatpush1.msra.mxu0 0.0
    %938 = vmatprep.subr.mxu0 0.0
    %939 = vmatpush1.msra.mxu0 0.0
    %940 = vmatprep.subr.mxu0 0.0
    %941 = vmatpush1.msra.mxu0 0.0
    %942 = vmatprep.subr.mxu0 0.0
    %943 = vmatpush1.msra.mxu0 0.0
    %944 = vmatprep.subr.mxu0 0.0
    %945 = vmatpush1.msra.mxu0 %v914
    %946 = vmatprep.subr.mxu0 0.0
    %947 = vmatpush1.msra.mxu0 %v913
    %948 = vmatprep.subr.mxu0 0.0
    %949 = vmatpush1.msra.mxu0 %v912
    %950 = vmatprep.subr.mxu0 0.0
    %951 = vmatpush1.msra.mxu0 %v911
    %952 = vmatprep.subr.mxu0 0.0
    %953 = vmatpush2.msra.mxu0 0.0
    %954 = vmatprep.subr.mxu0 0.0
    %955 = vmatpush2.msra.mxu0 0.0
    %956 = vmatprep.subr.mxu0 0.0
    %957 = vmatpush2.msra.mxu0 0.0
    %958 = vmatprep.subr.mxu0 0.0
    %959 = vmatpush2.msra.mxu0 0.0
    %960 = vmatprep.subr.mxu0 0.0
    %961 = vmatpush2.msra.mxu0 0.0
    %962 = vmatprep.subr.mxu0 0.0
    %963 = vmatpush2.msra.mxu0 0.0
    %964 = vmatprep.subr.mxu0 0.0
    %965 = vmatpush2.msra.mxu0 0.0
    %966 = vmatprep.subr.mxu0 0.0
    %967 = vmatpush2.msra.mxu0 0.0
    %968 = vmatprep.subr.mxu0 0.0
    %969 = vmatpush2.msra.mxu0 0.0
    %970 = vmatprep.subr.mxu0 0.0
    %971 = vmatpush2.msra.mxu0 0.0
    %972 = vmatprep.subr.mxu0 0.0
    %973 = vmatpush2.msra.mxu0 0.0
    %974 = vmatprep.subr.mxu0 0.0
    %975 = vmatpush2.msra.mxu0 0.0
    %976 = vmatprep.subr.mxu0 0.0
    %977 = vmatpush2.msra.mxu0 0.0
    %978 = vmatprep.subr.mxu0 0.0
    %979 = vmatpush2.msra.mxu0 0.0
    %980 = vmatprep.subr.mxu0 0.0
    %981 = vmatpush2.msra.mxu0 0.0
    %982 = vmatprep.subr.mxu0 0.0
    %983 = vmatpush2.msra.mxu0 0.0
    %984 = vmatprep.mubr.f32.mxu0 0.0
    %985 = vmatmul.mubr.f32.gmra.mxu0 %v918
    %v986 = vpop.f32.mrf.mxu0
    %v987 = vadd.f32 0.0, %v986
    %v988 = vpop.f32.mrf.mxu0
    %989 = vdwg.mxu0
    %v991 = vrot.slane %v987, 6
    %v993 = vadd.f32 %v185, %v991
    %v994 = vld [vmem:[#allocation6] sm:$0xff]
    %v995 = vld [vmem:[#allocation6 + $0x8] sm:$0xff]
    %v996 = vld [vmem:[#allocation6 + $0x10] sm:$0xff]
    %v997 = vld [vmem:[#allocation6 + $0x18] sm:$0xff]
    %998 = vmatprep.subr.mxu0 0.0
    %999 = vmatpush1.msra.mxu0 0.0
    %1000 = vmatprep.subr.mxu0 0.0
    %1001 = vmatpush1.msra.mxu0 0.0
    %1002 = vmatprep.subr.mxu0 0.0
    %1003 = vmatpush1.msra.mxu0 0.0
    %1004 = vmatprep.subr.mxu0 0.0
    %1005 = vmatpush1.msra.mxu0 0.0
    %1006 = vmatprep.subr.mxu0 0.0
    %1007 = vmatpush1.msra.mxu0 0.0
    %1008 = vmatprep.subr.mxu0 0.0
    %1009 = vmatpush1.msra.mxu0 0.0
    %1010 = vmatprep.subr.mxu0 0.0
    %1011 = vmatpush1.msra.mxu0 0.0
    %1012 = vmatprep.subr.mxu0 0.0
    %1013 = vmatpush1.msra.mxu0 0.0
    %1014 = vmatprep.subr.mxu0 0.0
    %1015 = vmatpush1.msra.mxu0 0.0
    %1016 = vmatprep.subr.mxu0 0.0
    %1017 = vmatpush1.msra.mxu0 0.0
    %1018 = vmatprep.subr.mxu0 0.0
    %1019 = vmatpush1.msra.mxu0 0.0
    %1020 = vmatprep.subr.mxu0 0.0
    %1021 = vmatpush1.msra.mxu0 0.0
    %1022 = vmatprep.subr.mxu0 0.0
    %1023 = vmatpush1.msra.mxu0 %v997
    %1024 = vmatprep.subr.mxu0 0.0
    %1025 = vmatpush1.msra.mxu0 %v996
    %1026 = vmatprep.subr.mxu0 0.0
    %1027 = vmatpush1.msra.mxu0 %v995
    %1028 = vmatprep.subr.mxu0 0.0
    %1029 = vmatpush1.msra.mxu0 %v994
    %1030 = vmatprep.subr.mxu0 0.0
    %1031 = vmatpush2.msra.mxu0 0.0
    %1032 = vmatprep.subr.mxu0 0.0
    %1033 = vmatpush2.msra.mxu0 0.0
    %1034 = vmatprep.subr.mxu0 0.0
    %1035 = vmatpush2.msra.mxu0 0.0
    %1036 = vmatprep.subr.mxu0 0.0
    %1037 = vmatpush2.msra.mxu0 0.0
    %1038 = vmatprep.subr.mxu0 0.0
    %1039 = vmatpush2.msra.mxu0 0.0
    %1040 = vmatprep.subr.mxu0 0.0
    %1041 = vmatpush2.msra.mxu0 0.0
    %1042 = vmatprep.subr.mxu0 0.0
    %1043 = vmatpush2.msra.mxu0 0.0
    %1044 = vmatprep.subr.mxu0 0.0
    %1045 = vmatpush2.msra.mxu0 0.0
    %1046 = vmatprep.subr.mxu0 0.0
    %1047 = vmatpush2.msra.mxu0 0.0
    %1048 = vmatprep.subr.mxu0 0.0
    %1049 = vmatpush2.msra.mxu0 0.0
    %1050 = vmatprep.subr.mxu0 0.0
    %1051 = vmatpush2.msra.mxu0 0.0
    %1052 = vmatprep.subr.mxu0 0.0
    %1053 = vmatpush2.msra.mxu0 0.0
    %1054 = vmatprep.subr.mxu0 0.0
    %1055 = vmatpush2.msra.mxu0 0.0
    %1056 = vmatprep.subr.mxu0 0.0
    %1057 = vmatpush2.msra.mxu0 0.0
    %1058 = vmatprep.subr.mxu0 0.0
    %1059 = vmatpush2.msra.mxu0 0.0
    %1060 = vmatprep.subr.mxu0 0.0
    %1061 = vmatpush2.msra.mxu0 0.0
    %1062 = vmatprep.mubr.f32.mxu0 0.0
    %1063 = vmatmul.mubr.f32.gmra.mxu0 %v918
    %v1064 = vpop.f32.mrf.mxu0
    %v1065 = vadd.f32 0.0, %v1064
    %v1066 = vpop.f32.mrf.mxu0
    %1067 = vdwg.mxu0
    %v1069 = vrot.slane %v1065, 6
    %1070 = vrot.lane.b32.xlu0 %v1069, 32
    %v1071 = vpop.permute.xlu0 %1070
    %v1073 = vadd.f32 %v185, %v1071
    %v1074 = vld [vmem:[#allocation8] sm:$0xff]
    %v1075 = vld [vmem:[#allocation8 + $0x8] sm:$0xff]
    %v1076 = vld [vmem:[#allocation8 + $0x10] sm:$0xff]
    %v1077 = vld [vmem:[#allocation8 + $0x18] sm:$0xff]
    %1078 = vmatprep.subr.mxu0 0.0
    %1079 = vmatpush1.msra.mxu0 0.0
    %1080 = vmatprep.subr.mxu0 0.0
    %1081 = vmatpush1.msra.mxu0 0.0
    %1082 = vmatprep.subr.mxu0 0.0
    %1083 = vmatpush1.msra.mxu0 0.0
    %1084 = vmatprep.subr.mxu0 0.0
    %1085 = vmatpush1.msra.mxu0 0.0
    %1086 = vmatprep.subr.mxu0 0.0
    %1087 = vmatpush1.msra.mxu0 0.0
    %1088 = vmatprep.subr.mxu0 0.0
    %1089 = vmatpush1.msra.mxu0 0.0
    %1090 = vmatprep.subr.mxu0 0.0
    %1091 = vmatpush1.msra.mxu0 0.0
    %1092 = vmatprep.subr.mxu0 0.0
    %1093 = vmatpush1.msra.mxu0 0.0
    %1094 = vmatprep.subr.mxu0 0.0
    %1095 = vmatpush1.msra.mxu0 0.0
    %1096 = vmatprep.subr.mxu0 0.0
    %1097 = vmatpush1.msra.mxu0 0.0
    %1098 = vmatprep.subr.mxu0 0.0
    %1099 = vmatpush1.msra.mxu0 0.0
    %1100 = vmatprep.subr.mxu0 0.0
    %1101 = vmatpush1.msra.mxu0 0.0
    %1102 = vmatprep.subr.mxu0 0.0
    %1103 = vmatpush1.msra.mxu0 %v1077
    %1104 = vmatprep.subr.mxu0 0.0
    %1105 = vmatpush1.msra.mxu0 %v1076
    %1106 = vmatprep.subr.mxu0 0.0
    %1107 = vmatpush1.msra.mxu0 %v1075
    %1108 = vmatprep.subr.mxu0 0.0
    %1109 = vmatpush1.msra.mxu0 %v1074
    %1110 = vmatprep.subr.mxu0 0.0
    %1111 = vmatpush2.msra.mxu0 0.0
    %1112 = vmatprep.subr.mxu0 0.0
    %1113 = vmatpush2.msra.mxu0 0.0
    %1114 = vmatprep.subr.mxu0 0.0
    %1115 = vmatpush2.msra.mxu0 0.0
    %1116 = vmatprep.subr.mxu0 0.0
    %1117 = vmatpush2.msra.mxu0 0.0
    %1118 = vmatprep.subr.mxu0 0.0
    %1119 = vmatpush2.msra.mxu0 0.0
    %1120 = vmatprep.subr.mxu0 0.0
    %1121 = vmatpush2.msra.mxu0 0.0
    %1122 = vmatprep.subr.mxu0 0.0
    %1123 = vmatpush2.msra.mxu0 0.0
    %1124 = vmatprep.subr.mxu0 0.0
    %1125 = vmatpush2.msra.mxu0 0.0
    %1126 = vmatprep.subr.mxu0 0.0
    %1127 = vmatpush2.msra.mxu0 0.0
    %1128 = vmatprep.subr.mxu0 0.0
    %1129 = vmatpush2.msra.mxu0 0.0
    %1130 = vmatprep.subr.mxu0 0.0
    %1131 = vmatpush2.msra.mxu0 0.0
    %1132 = vmatprep.subr.mxu0 0.0
    %1133 = vmatpush2.msra.mxu0 0.0
    %1134 = vmatprep.subr.mxu0 0.0
    %1135 = vmatpush2.msra.mxu0 0.0
    %1136 = vmatprep.subr.mxu0 0.0
    %1137 = vmatpush2.msra.mxu0 0.0
    %1138 = vmatprep.subr.mxu0 0.0
    %1139 = vmatpush2.msra.mxu0 0.0
    %1140 = vmatprep.subr.mxu0 0.0
    %1141 = vmatpush2.msra.mxu0 0.0
    %1142 = vmatprep.mubr.f32.mxu0 0.0
    %1143 = vmatmul.mubr.f32.gmra.mxu0 %v918
    %v1144 = vpop.f32.mrf.mxu0
    %v1145 = vadd.f32 0.0, %v1144
    %v1146 = vpop.f32.mrf.mxu0
    %1147 = vdwg.mxu0
    %v1149 = vrot.slane %v1145, 6
    %1150 = vrot.lane.b32.xlu0 %v1149, 64
    %v1151 = vpop.permute.xlu0 %1150
    %v1153 = vadd.f32 %v185, %v1151
    %v1154 = vld [vmem:[#allocation9] sm:$0xff]
    %v1155 = vld [vmem:[#allocation9 + $0x8] sm:$0xff]
    %v1156 = vld [vmem:[#allocation9 + $0x10] sm:$0xff]
    %v1157 = vld [vmem:[#allocation9 + $0x18] sm:$0xff]
    %1158 = vmatprep.subr.mxu0 0.0
    %1159 = vmatpush1.msra.mxu0 0.0
    %1160 = vmatprep.subr.mxu0 0.0
    %1161 = vmatpush1.msra.mxu0 0.0
    %1162 = vmatprep.subr.mxu0 0.0
    %1163 = vmatpush1.msra.mxu0 0.0
    %1164 = vmatprep.subr.mxu0 0.0
    %1165 = vmatpush1.msra.mxu0 0.0
    %1166 = vmatprep.subr.mxu0 0.0
    %1167 = vmatpush1.msra.mxu0 0.0
    %1168 = vmatprep.subr.mxu0 0.0
    %1169 = vmatpush1.msra.mxu0 0.0
    %1170 = vmatprep.subr.mxu0 0.0
    %1171 = vmatpush1.msra.mxu0 0.0
    %1172 = vmatprep.subr.mxu0 0.0
    %1173 = vmatpush1.msra.mxu0 0.0
    %1174 = vmatprep.subr.mxu0 0.0
    %1175 = vmatpush1.msra.mxu0 0.0
    %1176 = vmatprep.subr.mxu0 0.0
    %1177 = vmatpush1.msra.mxu0 0.0
    %1178 = vmatprep.subr.mxu0 0.0
    %1179 = vmatpush1.msra.mxu0 0.0
    %1180 = vmatprep.subr.mxu0 0.0
    %1181 = vmatpush1.msra.mxu0 0.0
    %1182 = vmatprep.subr.mxu0 0.0
    %1183 = vmatpush1.msra.mxu0 %v1157
    %1184 = vmatprep.subr.mxu0 0.0
    %1185 = vmatpush1.msra.mxu0 %v1156
    %1186 = vmatprep.subr.mxu0 0.0
    %1187 = vmatpush1.msra.mxu0 %v1155
    %1188 = vmatprep.subr.mxu0 0.0
    %1189 = vmatpush1.msra.mxu0 %v1154
    %1190 = vmatprep.subr.mxu0 0.0
    %1191 = vmatpush2.msra.mxu0 0.0
    %1192 = vmatprep.subr.mxu0 0.0
    %1193 = vmatpush2.msra.mxu0 0.0
    %1194 = vmatprep.subr.mxu0 0.0
    %1195 = vmatpush2.msra.mxu0 0.0
    %1196 = vmatprep.subr.mxu0 0.0
    %1197 = vmatpush2.msra.mxu0 0.0
    %1198 = vmatprep.subr.mxu0 0.0
    %1199 = vmatpush2.msra.mxu0 0.0
    %1200 = vmatprep.subr.mxu0 0.0
    %1201 = vmatpush2.msra.mxu0 0.0
    %1202 = vmatprep.subr.mxu0 0.0
    %1203 = vmatpush2.msra.mxu0 0.0
    %1204 = vmatprep.subr.mxu0 0.0
    %1205 = vmatpush2.msra.mxu0 0.0
    %1206 = vmatprep.subr.mxu0 0.0
    %1207 = vmatpush2.msra.mxu0 0.0
    %1208 = vmatprep.subr.mxu0 0.0
    %1209 = vmatpush2.msra.mxu0 0.0
    %1210 = vmatprep.subr.mxu0 0.0
    %1211 = vmatpush2.msra.mxu0 0.0
    %1212 = vmatprep.subr.mxu0 0.0
    %1213 = vmatpush2.msra.mxu0 0.0
    %1214 = vmatprep.subr.mxu0 0.0
    %1215 = vmatpush2.msra.mxu0 0.0
    %1216 = vmatprep.subr.mxu0 0.0
    %1217 = vmatpush2.msra.mxu0 0.0
    %1218 = vmatprep.subr.mxu0 0.0
    %1219 = vmatpush2.msra.mxu0 0.0
    %1220 = vmatprep.subr.mxu0 0.0
    %1221 = vmatpush2.msra.mxu0 0.0
    %1222 = vmatprep.mubr.f32.mxu0 0.0
    %1223 = vmatmul.mubr.f32.gmra.mxu0 %v918
    %v1224 = vpop.f32.mrf.mxu0
    %v1225 = vadd.f32 0.0, %v1224
    %v1226 = vpop.f32.mrf.mxu0
    %1227 = vdwg.mxu0
    %v1229 = vrot.slane %v1225, 6
    %1230 = vrot.lane.b32.xlu0 %v1229, 96
    %v1231 = vpop.permute.xlu0 %1230
    %v1233 = vadd.f32 %v185, %v1231
    %v1234 = vxor.u32 %v993, 2147483648
    %v1235 = vmul.f32 %v1234, 1.442695
    %v1236 = vpow.pop %v1235
    %v1237 = vadd.f32 %v1236, 1.0
    %v1238 = vrcp.pop %v1237
    %v1239 = vmul.f32 1.0, %v1238
    %v1240 = vxor.u32 %v1073, 2147483648
    %v1241 = vmul.f32 %v1240, 1.442695
    %v1242 = vpow.pop %v1241
    %v1243 = vadd.f32 %v1242, 1.0
    %v1244 = vrcp.pop %v1243
    %v1245 = vmul.f32 1.0, %v1244
    %v1246 = vtanh.pop %v1153
    %v1247 = vxor.u32 %v1233, 2147483648
    %v1248 = vmul.f32 %v1247, 1.442695
    %v1249 = vpow.pop %v1248
    %v1250 = vadd.f32 %v1249, 1.0
    %v1251 = vrcp.pop %v1250
    %v1252 = vmul.f32 1.0, %v1251
    %v1254 = vrot.slane %v898, 7
    %v1256 = vmul.f32 %v1245, %v1254
    %1258 = vrot.lane.b32.xlu0 %v1246, 64
    %v1259 = vpop.permute.xlu0 %1258
    %v1261 = vmul.f32 %v1239, %v1259
    %1263 = vrot.lane.b32.xlu0 %v1261, 32
    %v1264 = vpop.permute.xlu0 %1263
    %v1266 = vadd.f32 %v1256, %v1264
    %v1267 = vtanh.pop %v1266
    %1269 = vrot.lane.b32.xlu0 %v1267, 64
    %v1270 = vpop.permute.xlu0 %1269
    %v1272 = vmul.f32 %v1252, %v1270
    %1274 = vrot.lane.b32.xlu0 %v1272, 32
    %v1275 = vpop.permute.xlu0 %1274
    %vm1277 = vcmask 256002
    %1278 = vst.msk [vmem:[#allocation2] sm:$0x4] %vm1277, %v1275
    %v1279 = vld [vmem:[#allocation3] sm:$0xff]
    %v1280 = vld [vmem:[#allocation3 + $0x8] sm:$0xff]
    %v1281 = vld [vmem:[#allocation3 + $0x10] sm:$0xff]
    %v1282 = vld [vmem:[#allocation3 + $0x18] sm:$0xff]
    %v1283 = vrot.slane %v1272, 2
    %1284 = vrot.lane.b32.xlu0 %v1283, 32
    %v1285 = vpop.permute.xlu0 %1284
    %v1286 = vsel %vm192, %v1285, 0
    %1288 = vmatprep.subr.mxu0 0.0
    %1289 = vmatpush1.msra.mxu0 0.0
    %1290 = vmatprep.subr.mxu0 0.0
    %1291 = vmatpush1.msra.mxu0 0.0
    %1292 = vmatprep.subr.mxu0 0.0
    %1293 = vmatpush1.msra.mxu0 0.0
    %1294 = vmatprep.subr.mxu0 0.0
    %1295 = vmatpush1.msra.mxu0 0.0
    %1296 = vmatprep.subr.mxu0 0.0
    %1297 = vmatpush1.msra.mxu0 0.0
    %1298 = vmatprep.subr.mxu0 0.0
    %1299 = vmatpush1.msra.mxu0 0.0
    %1300 = vmatprep.subr.mxu0 0.0
    %1301 = vmatpush1.msra.mxu0 0.0
    %1302 = vmatprep.subr.mxu0 0.0
    %1303 = vmatpush1.msra.mxu0 0.0
    %1304 = vmatprep.subr.mxu0 0.0
    %1305 = vmatpush1.msra.mxu0 0.0
    %1306 = vmatprep.subr.mxu0 0.0
    %1307 = vmatpush1.msra.mxu0 0.0
    %1308 = vmatprep.subr.mxu0 0.0
    %1309 = vmatpush1.msra.mxu0 0.0
    %1310 = vmatprep.subr.mxu0 0.0
    %1311 = vmatpush1.msra.mxu0 0.0
    %1312 = vmatprep.subr.mxu0 0.0
    %1313 = vmatpush1.msra.mxu0 %v1282
    %1314 = vmatprep.subr.mxu0 0.0
    %1315 = vmatpush1.msra.mxu0 %v1281
    %1316 = vmatprep.subr.mxu0 0.0
    %1317 = vmatpush1.msra.mxu0 %v1280
    %1318 = vmatprep.subr.mxu0 0.0
    %1319 = vmatpush1.msra.mxu0 %v1279
    %1320 = vmatprep.subr.mxu0 0.0
    %1321 = vmatpush2.msra.mxu0 0.0
    %1322 = vmatprep.subr.mxu0 0.0
    %1323 = vmatpush2.msra.mxu0 0.0
    %1324 = vmatprep.subr.mxu0 0.0
    %1325 = vmatpush2.msra.mxu0 0.0
    %1326 = vmatprep.subr.mxu0 0.0
    %1327 = vmatpush2.msra.mxu0 0.0
    %1328 = vmatprep.subr.mxu0 0.0
    %1329 = vmatpush2.msra.mxu0 0.0
    %1330 = vmatprep.subr.mxu0 0.0
    %1331 = vmatpush2.msra.mxu0 0.0
    %1332 = vmatprep.subr.mxu0 0.0
    %1333 = vmatpush2.msra.mxu0 0.0
    %1334 = vmatprep.subr.mxu0 0.0
    %1335 = vmatpush2.msra.mxu0 0.0
    %1336 = vmatprep.subr.mxu0 0.0
    %1337 = vmatpush2.msra.mxu0 0.0
    %1338 = vmatprep.subr.mxu0 0.0
    %1339 = vmatpush2.msra.mxu0 0.0
    %1340 = vmatprep.subr.mxu0 0.0
    %1341 = vmatpush2.msra.mxu0 0.0
    %1342 = vmatprep.subr.mxu0 0.0
    %1343 = vmatpush2.msra.mxu0 0.0
    %1344 = vmatprep.subr.mxu0 0.0
    %1345 = vmatpush2.msra.mxu0 0.0
    %1346 = vmatprep.subr.mxu0 0.0
    %1347 = vmatpush2.msra.mxu0 0.0
    %1348 = vmatprep.subr.mxu0 0.0
    %1349 = vmatpush2.msra.mxu0 0.0
    %1350 = vmatprep.subr.mxu0 0.0
    %1351 = vmatpush2.msra.mxu0 0.0
    %1352 = vmatprep.mubr.f32.mxu0 0.0
    %1353 = vmatmul.mubr.f32.gmra.mxu0 %v1286
    %v1354 = vpop.f32.mrf.mxu0
    %v1355 = vadd.f32 0.0, %v1354
    %v1356 = vpop.f32.mrf.mxu0
    %1357 = vdwg.mxu0
    %v1359 = vrot.slane %v1355, 5
    %v1361 = vadd.f32 %v185, %v1359
    %v1362 = vld [vmem:[#allocation6] sm:$0xff]
    %v1363 = vld [vmem:[#allocation6 + $0x8] sm:$0xff]
    %v1364 = vld [vmem:[#allocation6 + $0x10] sm:$0xff]
    %v1365 = vld [vmem:[#allocation6 + $0x18] sm:$0xff]
    %1366 = vmatprep.subr.mxu0 0.0
    %1367 = vmatpush1.msra.mxu0 0.0
    %1368 = vmatprep.subr.mxu0 0.0
    %1369 = vmatpush1.msra.mxu0 0.0
    %1370 = vmatprep.subr.mxu0 0.0
    %1371 = vmatpush1.msra.mxu0 0.0
    %1372 = vmatprep.subr.mxu0 0.0
    %1373 = vmatpush1.msra.mxu0 0.0
    %1374 = vmatprep.subr.mxu0 0.0
    %1375 = vmatpush1.msra.mxu0 0.0
    %1376 = vmatprep.subr.mxu0 0.0
    %1377 = vmatpush1.msra.mxu0 0.0
    %1378 = vmatprep.subr.mxu0 0.0
    %1379 = vmatpush1.msra.mxu0 0.0
    %1380 = vmatprep.subr.mxu0 0.0
    %1381 = vmatpush1.msra.mxu0 0.0
    %1382 = vmatprep.subr.mxu0 0.0
    %1383 = vmatpush1.msra.mxu0 0.0
    %1384 = vmatprep.subr.mxu0 0.0
    %1385 = vmatpush1.msra.mxu0 0.0
    %1386 = vmatprep.subr.mxu0 0.0
    %1387 = vmatpush1.msra.mxu0 0.0
    %1388 = vmatprep.subr.mxu0 0.0
    %1389 = vmatpush1.msra.mxu0 0.0
    %1390 = vmatprep.subr.mxu0 0.0
    %1391 = vmatpush1.msra.mxu0 %v1365
    %1392 = vmatprep.subr.mxu0 0.0
    %1393 = vmatpush1.msra.mxu0 %v1364
    %1394 = vmatprep.subr.mxu0 0.0
    %1395 = vmatpush1.msra.mxu0 %v1363
    %1396 = vmatprep.subr.mxu0 0.0
    %1397 = vmatpush1.msra.mxu0 %v1362
    %1398 = vmatprep.subr.mxu0 0.0
    %1399 = vmatpush2.msra.mxu0 0.0
    %1400 = vmatprep.subr.mxu0 0.0
    %1401 = vmatpush2.msra.mxu0 0.0
    %1402 = vmatprep.subr.mxu0 0.0
    %1403 = vmatpush2.msra.mxu0 0.0
    %1404 = vmatprep.subr.mxu0 0.0
    %1405 = vmatpush2.msra.mxu0 0.0
    %1406 = vmatprep.subr.mxu0 0.0
    %1407 = vmatpush2.msra.mxu0 0.0
    %1408 = vmatprep.subr.mxu0 0.0
    %1409 = vmatpush2.msra.mxu0 0.0
    %1410 = vmatprep.subr.mxu0 0.0
    %1411 = vmatpush2.msra.mxu0 0.0
    %1412 = vmatprep.subr.mxu0 0.0
    %1413 = vmatpush2.msra.mxu0 0.0
    %1414 = vmatprep.subr.mxu0 0.0
    %1415 = vmatpush2.msra.mxu0 0.0
    %1416 = vmatprep.subr.mxu0 0.0
    %1417 = vmatpush2.msra.mxu0 0.0
    %1418 = vmatprep.subr.mxu0 0.0
    %1419 = vmatpush2.msra.mxu0 0.0
    %1420 = vmatprep.subr.mxu0 0.0
    %1421 = vmatpush2.msra.mxu0 0.0
    %1422 = vmatprep.subr.mxu0 0.0
    %1423 = vmatpush2.msra.mxu0 0.0
    %1424 = vmatprep.subr.mxu0 0.0
    %1425 = vmatpush2.msra.mxu0 0.0
    %1426 = vmatprep.subr.mxu0 0.0
    %1427 = vmatpush2.msra.mxu0 0.0
    %1428 = vmatprep.subr.mxu0 0.0
    %1429 = vmatpush2.msra.mxu0 0.0
    %1430 = vmatprep.mubr.f32.mxu0 0.0
    %1431 = vmatmul.mubr.f32.gmra.mxu0 %v1286
    %v1432 = vpop.f32.mrf.mxu0
    %v1433 = vadd.f32 0.0, %v1432
    %v1434 = vpop.f32.mrf.mxu0
    %1435 = vdwg.mxu0
    %v1437 = vrot.slane %v1433, 5
    %1438 = vrot.lane.b32.xlu0 %v1437, 32
    %v1439 = vpop.permute.xlu0 %1438
    %v1441 = vadd.f32 %v185, %v1439
    %v1442 = vld [vmem:[#allocation8] sm:$0xff]
    %v1443 = vld [vmem:[#allocation8 + $0x8] sm:$0xff]
    %v1444 = vld [vmem:[#allocation8 + $0x10] sm:$0xff]
    %v1445 = vld [vmem:[#allocation8 + $0x18] sm:$0xff]
    %1446 = vmatprep.subr.mxu0 0.0
    %1447 = vmatpush1.msra.mxu0 0.0
    %1448 = vmatprep.subr.mxu0 0.0
    %1449 = vmatpush1.msra.mxu0 0.0
    %1450 = vmatprep.subr.mxu0 0.0
    %1451 = vmatpush1.msra.mxu0 0.0
    %1452 = vmatprep.subr.mxu0 0.0
    %1453 = vmatpush1.msra.mxu0 0.0
    %1454 = vmatprep.subr.mxu0 0.0
    %1455 = vmatpush1.msra.mxu0 0.0
    %1456 = vmatprep.subr.mxu0 0.0
    %1457 = vmatpush1.msra.mxu0 0.0
    %1458 = vmatprep.subr.mxu0 0.0
    %1459 = vmatpush1.msra.mxu0 0.0
    %1460 = vmatprep.subr.mxu0 0.0
    %1461 = vmatpush1.msra.mxu0 0.0
    %1462 = vmatprep.subr.mxu0 0.0
    %1463 = vmatpush1.msra.mxu0 0.0
    %1464 = vmatprep.subr.mxu0 0.0
    %1465 = vmatpush1.msra.mxu0 0.0
    %1466 = vmatprep.subr.mxu0 0.0
    %1467 = vmatpush1.msra.mxu0 0.0
    %1468 = vmatprep.subr.mxu0 0.0
    %1469 = vmatpush1.msra.mxu0 0.0
    %1470 = vmatprep.subr.mxu0 0.0
    %1471 = vmatpush1.msra.mxu0 %v1445
    %1472 = vmatprep.subr.mxu0 0.0
    %1473 = vmatpush1.msra.mxu0 %v1444
    %1474 = vmatprep.subr.mxu0 0.0
    %1475 = vmatpush1.msra.mxu0 %v1443
    %1476 = vmatprep.subr.mxu0 0.0
    %1477 = vmatpush1.msra.mxu0 %v1442
    %1478 = vmatprep.subr.mxu0 0.0
    %1479 = vmatpush2.msra.mxu0 0.0
    %1480 = vmatprep.subr.mxu0 0.0
    %1481 = vmatpush2.msra.mxu0 0.0
    %1482 = vmatprep.subr.mxu0 0.0
    %1483 = vmatpush2.msra.mxu0 0.0
    %1484 = vmatprep.subr.mxu0 0.0
    %1485 = vmatpush2.msra.mxu0 0.0
    %1486 = vmatprep.subr.mxu0 0.0
    %1487 = vmatpush2.msra.mxu0 0.0
    %1488 = vmatprep.subr.mxu0 0.0
    %1489 = vmatpush2.msra.mxu0 0.0
    %1490 = vmatprep.subr.mxu0 0.0
    %1491 = vmatpush2.msra.mxu0 0.0
    %1492 = vmatprep.subr.mxu0 0.0
    %1493 = vmatpush2.msra.mxu0 0.0
    %1494 = vmatprep.subr.mxu0 0.0
    %1495 = vmatpush2.msra.mxu0 0.0
    %1496 = vmatprep.subr.mxu0 0.0
    %1497 = vmatpush2.msra.mxu0 0.0
    %1498 = vmatprep.subr.mxu0 0.0
    %1499 = vmatpush2.msra.mxu0 0.0
    %1500 = vmatprep.subr.mxu0 0.0
    %1501 = vmatpush2.msra.mxu0 0.0
    %1502 = vmatprep.subr.mxu0 0.0
    %1503 = vmatpush2.msra.mxu0 0.0
    %1504 = vmatprep.subr.mxu0 0.0
    %1505 = vmatpush2.msra.mxu0 0.0
    %1506 = vmatprep.subr.mxu0 0.0
    %1507 = vmatpush2.msra.mxu0 0.0
    %1508 = vmatprep.subr.mxu0 0.0
    %1509 = vmatpush2.msra.mxu0 0.0
    %1510 = vmatprep.mubr.f32.mxu0 0.0
    %1511 = vmatmul.mubr.f32.gmra.mxu0 %v1286
    %v1512 = vpop.f32.mrf.mxu0
    %v1513 = vadd.f32 0.0, %v1512
    %v1514 = vpop.f32.mrf.mxu0
    %1515 = vdwg.mxu0
    %v1517 = vrot.slane %v1513, 5
    %1518 = vrot.lane.b32.xlu0 %v1517, 64
    %v1519 = vpop.permute.xlu0 %1518
    %v1521 = vadd.f32 %v185, %v1519
    %v1522 = vld [vmem:[#allocation9] sm:$0xff]
    %v1523 = vld [vmem:[#allocation9 + $0x8] sm:$0xff]
    %v1524 = vld [vmem:[#allocation9 + $0x10] sm:$0xff]
    %v1525 = vld [vmem:[#allocation9 + $0x18] sm:$0xff]
    %1526 = vmatprep.subr.mxu0 0.0
    %1527 = vmatpush1.msra.mxu0 0.0
    %1528 = vmatprep.subr.mxu0 0.0
    %1529 = vmatpush1.msra.mxu0 0.0
    %1530 = vmatprep.subr.mxu0 0.0
    %1531 = vmatpush1.msra.mxu0 0.0
    %1532 = vmatprep.subr.mxu0 0.0
    %1533 = vmatpush1.msra.mxu0 0.0
    %1534 = vmatprep.subr.mxu0 0.0
    %1535 = vmatpush1.msra.mxu0 0.0
    %1536 = vmatprep.subr.mxu0 0.0
    %1537 = vmatpush1.msra.mxu0 0.0
    %1538 = vmatprep.subr.mxu0 0.0
    %1539 = vmatpush1.msra.mxu0 0.0
    %1540 = vmatprep.subr.mxu0 0.0
    %1541 = vmatpush1.msra.mxu0 0.0
    %1542 = vmatprep.subr.mxu0 0.0
    %1543 = vmatpush1.msra.mxu0 0.0
    %1544 = vmatprep.subr.mxu0 0.0
    %1545 = vmatpush1.msra.mxu0 0.0
    %1546 = vmatprep.subr.mxu0 0.0
    %1547 = vmatpush1.msra.mxu0 0.0
    %1548 = vmatprep.subr.mxu0 0.0
    %1549 = vmatpush1.msra.mxu0 0.0
    %1550 = vmatprep.subr.mxu0 0.0
    %1551 = vmatpush1.msra.mxu0 %v1525
    %1552 = vmatprep.subr.mxu0 0.0
    %1553 = vmatpush1.msra.mxu0 %v1524
    %1554 = vmatprep.subr.mxu0 0.0
    %1555 = vmatpush1.msra.mxu0 %v1523
    %1556 = vmatprep.subr.mxu0 0.0
    %1557 = vmatpush1.msra.mxu0 %v1522
    %1558 = vmatprep.subr.mxu0 0.0
    %1559 = vmatpush2.msra.mxu0 0.0
    %1560 = vmatprep.subr.mxu0 0.0
    %1561 = vmatpush2.msra.mxu0 0.0
    %1562 = vmatprep.subr.mxu0 0.0
    %1563 = vmatpush2.msra.mxu0 0.0
    %1564 = vmatprep.subr.mxu0 0.0
    %1565 = vmatpush2.msra.mxu0 0.0
    %1566 = vmatprep.subr.mxu0 0.0
    %1567 = vmatpush2.msra.mxu0 0.0
    %1568 = vmatprep.subr.mxu0 0.0
    %1569 = vmatpush2.msra.mxu0 0.0
    %1570 = vmatprep.subr.mxu0 0.0
    %1571 = vmatpush2.msra.mxu0 0.0
    %1572 = vmatprep.subr.mxu0 0.0
    %1573 = vmatpush2.msra.mxu0 0.0
    %1574 = vmatprep.subr.mxu0 0.0
    %1575 = vmatpush2.msra.mxu0 0.0
    %1576 = vmatprep.subr.mxu0 0.0
    %1577 = vmatpush2.msra.mxu0 0.0
    %1578 = vmatprep.subr.mxu0 0.0
    %1579 = vmatpush2.msra.mxu0 0.0
    %1580 = vmatprep.subr.mxu0 0.0
    %1581 = vmatpush2.msra.mxu0 0.0
    %1582 = vmatprep.subr.mxu0 0.0
    %1583 = vmatpush2.msra.mxu0 0.0
    %1584 = vmatprep.subr.mxu0 0.0
    %1585 = vmatpush2.msra.mxu0 0.0
    %1586 = vmatprep.subr.mxu0 0.0
    %1587 = vmatpush2.msra.mxu0 0.0
    %1588 = vmatprep.subr.mxu0 0.0
    %1589 = vmatpush2.msra.mxu0 0.0
    %1590 = vmatprep.mubr.f32.mxu0 0.0
    %1591 = vmatmul.mubr.f32.gmra.mxu0 %v1286
    %v1592 = vpop.f32.mrf.mxu0
    %v1593 = vadd.f32 0.0, %v1592
    %v1594 = vpop.f32.mrf.mxu0
    %1595 = vdwg.mxu0
    %v1597 = vrot.slane %v1593, 5
    %1598 = vrot.lane.b32.xlu0 %v1597, 96
    %v1599 = vpop.permute.xlu0 %1598
    %v1601 = vadd.f32 %v185, %v1599
    %v1602 = vxor.u32 %v1361, 2147483648
    %v1603 = vmul.f32 %v1602, 1.442695
    %v1604 = vpow.pop %v1603
    %v1605 = vadd.f32 %v1604, 1.0
    %v1606 = vrcp.pop %v1605
    %v1607 = vmul.f32 1.0, %v1606
    %v1608 = vxor.u32 %v1441, 2147483648
    %v1609 = vmul.f32 %v1608, 1.442695
    %v1610 = vpow.pop %v1609
    %v1611 = vadd.f32 %v1610, 1.0
    %v1612 = vrcp.pop %v1611
    %v1613 = vmul.f32 1.0, %v1612
    %v1614 = vtanh.pop %v1521
    %v1615 = vxor.u32 %v1601, 2147483648
    %v1616 = vmul.f32 %v1615, 1.442695
    %v1617 = vpow.pop %v1616
    %v1618 = vadd.f32 %v1617, 1.0
    %v1619 = vrcp.pop %v1618
    %v1620 = vmul.f32 1.0, %v1619
    %v1622 = vrot.slane %v1266, 7
    %v1624 = vmul.f32 %v1613, %v1622
    %1626 = vrot.lane.b32.xlu0 %v1614, 64
    %v1627 = vpop.permute.xlu0 %1626
    %v1629 = vmul.f32 %v1607, %v1627
    %1631 = vrot.lane.b32.xlu0 %v1629, 32
    %v1632 = vpop.permute.xlu0 %1631
    %v1634 = vadd.f32 %v1624, %v1632
    %v1635 = vtanh.pop %v1634
    %1637 = vrot.lane.b32.xlu0 %v1635, 64
    %v1638 = vpop.permute.xlu0 %1637
    %v1640 = vmul.f32 %v1620, %v1638
    %1642 = vrot.lane.b32.xlu0 %v1640, 32
    %v1643 = vpop.permute.xlu0 %1642
    %vm1645 = vcmask 257027
    %1646 = vst.msk [vmem:[#allocation2] sm:$0x8] %vm1645, %v1643
    %v1647 = vld [vmem:[#allocation3] sm:$0xff]
    %v1648 = vld [vmem:[#allocation3 + $0x8] sm:$0xff]
    %v1649 = vld [vmem:[#allocation3 + $0x10] sm:$0xff]
    %v1650 = vld [vmem:[#allocation3 + $0x18] sm:$0xff]
    %v1651 = vrot.slane %v1640, 3
    %1652 = vrot.lane.b32.xlu0 %v1651, 32
    %v1653 = vpop.permute.xlu0 %1652
    %v1654 = vsel %vm192, %v1653, 0
    %1656 = vmatprep.subr.mxu0 0.0
    %1657 = vmatpush1.msra.mxu0 0.0
    %1658 = vmatprep.subr.mxu0 0.0
    %1659 = vmatpush1.msra.mxu0 0.0
    %1660 = vmatprep.subr.mxu0 0.0
    %1661 = vmatpush1.msra.mxu0 0.0
    %1662 = vmatprep.subr.mxu0 0.0
    %1663 = vmatpush1.msra.mxu0 0.0
    %1664 = vmatprep.subr.mxu0 0.0
    %1665 = vmatpush1.msra.mxu0 0.0
    %1666 = vmatprep.subr.mxu0 0.0
    %1667 = vmatpush1.msra.mxu0 0.0
    %1668 = vmatprep.subr.mxu0 0.0
    %1669 = vmatpush1.msra.mxu0 0.0
    %1670 = vmatprep.subr.mxu0 0.0
    %1671 = vmatpush1.msra.mxu0 0.0
    %1672 = vmatprep.subr.mxu0 0.0
    %1673 = vmatpush1.msra.mxu0 0.0
    %1674 = vmatprep.subr.mxu0 0.0
    %1675 = vmatpush1.msra.mxu0 0.0
    %1676 = vmatprep.subr.mxu0 0.0
    %1677 = vmatpush1.msra.mxu0 0.0
    %1678 = vmatprep.subr.mxu0 0.0
    %1679 = vmatpush1.msra.mxu0 0.0
    %1680 = vmatprep.subr.mxu0 0.0
    %1681 = vmatpush1.msra.mxu0 %v1650
    %1682 = vmatprep.subr.mxu0 0.0
    %1683 = vmatpush1.msra.mxu0 %v1649
    %1684 = vmatprep.subr.mxu0 0.0
    %1685 = vmatpush1.msra.mxu0 %v1648
    %1686 = vmatprep.subr.mxu0 0.0
    %1687 = vmatpush1.msra.mxu0 %v1647
    %1688 = vmatprep.subr.mxu0 0.0
    %1689 = vmatpush2.msra.mxu0 0.0
    %1690 = vmatprep.subr.mxu0 0.0
    %1691 = vmatpush2.msra.mxu0 0.0
    %1692 = vmatprep.subr.mxu0 0.0
    %1693 = vmatpush2.msra.mxu0 0.0
    %1694 = vmatprep.subr.mxu0 0.0
    %1695 = vmatpush2.msra.mxu0 0.0
    %1696 = vmatprep.subr.mxu0 0.0
    %1697 = vmatpush2.msra.mxu0 0.0
    %1698 = vmatprep.subr.mxu0 0.0
    %1699 = vmatpush2.msra.mxu0 0.0
    %1700 = vmatprep.subr.mxu0 0.0
    %1701 = vmatpush2.msra.mxu0 0.0
    %1702 = vmatprep.subr.mxu0 0.0
    %1703 = vmatpush2.msra.mxu0 0.0
    %1704 = vmatprep.subr.mxu0 0.0
    %1705 = vmatpush2.msra.mxu0 0.0
    %1706 = vmatprep.subr.mxu0 0.0
    %1707 = vmatpush2.msra.mxu0 0.0
    %1708 = vmatprep.subr.mxu0 0.0
    %1709 = vmatpush2.msra.mxu0 0.0
    %1710 = vmatprep.subr.mxu0 0.0
    %1711 = vmatpush2.msra.mxu0 0.0
    %1712 = vmatprep.subr.mxu0 0.0
    %1713 = vmatpush2.msra.mxu0 0.0
    %1714 = vmatprep.subr.mxu0 0.0
    %1715 = vmatpush2.msra.mxu0 0.0
    %1716 = vmatprep.subr.mxu0 0.0
    %1717 = vmatpush2.msra.mxu0 0.0
    %1718 = vmatprep.subr.mxu0 0.0
    %1719 = vmatpush2.msra.mxu0 0.0
    %1720 = vmatprep.mubr.f32.mxu0 0.0
    %1721 = vmatmul.mubr.f32.gmra.mxu0 %v1654
    %v1722 = vpop.f32.mrf.mxu0
    %v1723 = vadd.f32 0.0, %v1722
    %v1724 = vpop.f32.mrf.mxu0
    %1725 = vdwg.mxu0
    %v1727 = vrot.slane %v1723, 4
    %v1729 = vadd.f32 %v185, %v1727
    %v1730 = vld [vmem:[#allocation6] sm:$0xff]
    %v1731 = vld [vmem:[#allocation6 + $0x8] sm:$0xff]
    %v1732 = vld [vmem:[#allocation6 + $0x10] sm:$0xff]
    %v1733 = vld [vmem:[#allocation6 + $0x18] sm:$0xff]
    %1734 = vmatprep.subr.mxu0 0.0
    %1735 = vmatpush1.msra.mxu0 0.0
    %1736 = vmatprep.subr.mxu0 0.0
    %1737 = vmatpush1.msra.mxu0 0.0
    %1738 = vmatprep.subr.mxu0 0.0
    %1739 = vmatpush1.msra.mxu0 0.0
    %1740 = vmatprep.subr.mxu0 0.0
    %1741 = vmatpush1.msra.mxu0 0.0
    %1742 = vmatprep.subr.mxu0 0.0
    %1743 = vmatpush1.msra.mxu0 0.0
    %1744 = vmatprep.subr.mxu0 0.0
    %1745 = vmatpush1.msra.mxu0 0.0
    %1746 = vmatprep.subr.mxu0 0.0
    %1747 = vmatpush1.msra.mxu0 0.0
    %1748 = vmatprep.subr.mxu0 0.0
    %1749 = vmatpush1.msra.mxu0 0.0
    %1750 = vmatprep.subr.mxu0 0.0
    %1751 = vmatpush1.msra.mxu0 0.0
    %1752 = vmatprep.subr.mxu0 0.0
    %1753 = vmatpush1.msra.mxu0 0.0
    %1754 = vmatprep.subr.mxu0 0.0
    %1755 = vmatpush1.msra.mxu0 0.0
    %1756 = vmatprep.subr.mxu0 0.0
    %1757 = vmatpush1.msra.mxu0 0.0
    %1758 = vmatprep.subr.mxu0 0.0
    %1759 = vmatpush1.msra.mxu0 %v1733
    %1760 = vmatprep.subr.mxu0 0.0
    %1761 = vmatpush1.msra.mxu0 %v1732
    %1762 = vmatprep.subr.mxu0 0.0
    %1763 = vmatpush1.msra.mxu0 %v1731
    %1764 = vmatprep.subr.mxu0 0.0
    %1765 = vmatpush1.msra.mxu0 %v1730
    %1766 = vmatprep.subr.mxu0 0.0
    %1767 = vmatpush2.msra.mxu0 0.0
    %1768 = vmatprep.subr.mxu0 0.0
    %1769 = vmatpush2.msra.mxu0 0.0
    %1770 = vmatprep.subr.mxu0 0.0
    %1771 = vmatpush2.msra.mxu0 0.0
    %1772 = vmatprep.subr.mxu0 0.0
    %1773 = vmatpush2.msra.mxu0 0.0
    %1774 = vmatprep.subr.mxu0 0.0
    %1775 = vmatpush2.msra.mxu0 0.0
    %1776 = vmatprep.subr.mxu0 0.0
    %1777 = vmatpush2.msra.mxu0 0.0
    %1778 = vmatprep.subr.mxu0 0.0
    %1779 = vmatpush2.msra.mxu0 0.0
    %1780 = vmatprep.subr.mxu0 0.0
    %1781 = vmatpush2.msra.mxu0 0.0
    %1782 = vmatprep.subr.mxu0 0.0
    %1783 = vmatpush2.msra.mxu0 0.0
    %1784 = vmatprep.subr.mxu0 0.0
    %1785 = vmatpush2.msra.mxu0 0.0
    %1786 = vmatprep.subr.mxu0 0.0
    %1787 = vmatpush2.msra.mxu0 0.0
    %1788 = vmatprep.subr.mxu0 0.0
    %1789 = vmatpush2.msra.mxu0 0.0
    %1790 = vmatprep.subr.mxu0 0.0
    %1791 = vmatpush2.msra.mxu0 0.0
    %1792 = vmatprep.subr.mxu0 0.0
    %1793 = vmatpush2.msra.mxu0 0.0
    %1794 = vmatprep.subr.mxu0 0.0
    %1795 = vmatpush2.msra.mxu0 0.0
    %1796 = vmatprep.subr.mxu0 0.0
    %1797 = vmatpush2.msra.mxu0 0.0
    %1798 = vmatprep.mubr.f32.mxu0 0.0
    %1799 = vmatmul.mubr.f32.gmra.mxu0 %v1654
    %v1800 = vpop.f32.mrf.mxu0
    %v1801 = vadd.f32 0.0, %v1800
    %v1802 = vpop.f32.mrf.mxu0
    %1803 = vdwg.mxu0
    %v1805 = vrot.slane %v1801, 4
    %1806 = vrot.lane.b32.xlu0 %v1805, 32
    %v1807 = vpop.permute.xlu0 %1806
    %v1809 = vadd.f32 %v185, %v1807
    %v1810 = vld [vmem:[#allocation8] sm:$0xff]
    %v1811 = vld [vmem:[#allocation8 + $0x8] sm:$0xff]
    %v1812 = vld [vmem:[#allocation8 + $0x10] sm:$0xff]
    %v1813 = vld [vmem:[#allocation8 + $0x18] sm:$0xff]
    %1814 = vmatprep.subr.mxu0 0.0
    %1815 = vmatpush1.msra.mxu0 0.0
    %1816 = vmatprep.subr.mxu0 0.0
    %1817 = vmatpush1.msra.mxu0 0.0
    %1818 = vmatprep.subr.mxu0 0.0
    %1819 = vmatpush1.msra.mxu0 0.0
    %1820 = vmatprep.subr.mxu0 0.0
    %1821 = vmatpush1.msra.mxu0 0.0
    %1822 = vmatprep.subr.mxu0 0.0
    %1823 = vmatpush1.msra.mxu0 0.0
    %1824 = vmatprep.subr.mxu0 0.0
    %1825 = vmatpush1.msra.mxu0 0.0
    %1826 = vmatprep.subr.mxu0 0.0
    %1827 = vmatpush1.msra.mxu0 0.0
    %1828 = vmatprep.subr.mxu0 0.0
    %1829 = vmatpush1.msra.mxu0 0.0
    %1830 = vmatprep.subr.mxu0 0.0
    %1831 = vmatpush1.msra.mxu0 0.0
    %1832 = vmatprep.subr.mxu0 0.0
    %1833 = vmatpush1.msra.mxu0 0.0
    %1834 = vmatprep.subr.mxu0 0.0
    %1835 = vmatpush1.msra.mxu0 0.0
    %1836 = vmatprep.subr.mxu0 0.0
    %1837 = vmatpush1.msra.mxu0 0.0
    %1838 = vmatprep.subr.mxu0 0.0
    %1839 = vmatpush1.msra.mxu0 %v1813
    %1840 = vmatprep.subr.mxu0 0.0
    %1841 = vmatpush1.msra.mxu0 %v1812
    %1842 = vmatprep.subr.mxu0 0.0
    %1843 = vmatpush1.msra.mxu0 %v1811
    %1844 = vmatprep.subr.mxu0 0.0
    %1845 = vmatpush1.msra.mxu0 %v1810
    %1846 = vmatprep.subr.mxu0 0.0
    %1847 = vmatpush2.msra.mxu0 0.0
    %1848 = vmatprep.subr.mxu0 0.0
    %1849 = vmatpush2.msra.mxu0 0.0
    %1850 = vmatprep.subr.mxu0 0.0
    %1851 = vmatpush2.msra.mxu0 0.0
    %1852 = vmatprep.subr.mxu0 0.0
    %1853 = vmatpush2.msra.mxu0 0.0
    %1854 = vmatprep.subr.mxu0 0.0
    %1855 = vmatpush2.msra.mxu0 0.0
    %1856 = vmatprep.subr.mxu0 0.0
    %1857 = vmatpush2.msra.mxu0 0.0
    %1858 = vmatprep.subr.mxu0 0.0
    %1859 = vmatpush2.msra.mxu0 0.0
    %1860 = vmatprep.subr.mxu0 0.0
    %1861 = vmatpush2.msra.mxu0 0.0
    %1862 = vmatprep.subr.mxu0 0.0
    %1863 = vmatpush2.msra.mxu0 0.0
    %1864 = vmatprep.subr.mxu0 0.0
    %1865 = vmatpush2.msra.mxu0 0.0
    %1866 = vmatprep.subr.mxu0 0.0
    %1867 = vmatpush2.msra.mxu0 0.0
    %1868 = vmatprep.subr.mxu0 0.0
    %1869 = vmatpush2.msra.mxu0 0.0
    %1870 = vmatprep.subr.mxu0 0.0
    %1871 = vmatpush2.msra.mxu0 0.0
    %1872 = vmatprep.subr.mxu0 0.0
    %1873 = vmatpush2.msra.mxu0 0.0
    %1874 = vmatprep.subr.mxu0 0.0
    %1875 = vmatpush2.msra.mxu0 0.0
    %1876 = vmatprep.subr.mxu0 0.0
    %1877 = vmatpush2.msra.mxu0 0.0
    %1878 = vmatprep.mubr.f32.mxu0 0.0
    %1879 = vmatmul.mubr.f32.gmra.mxu0 %v1654
    %v1880 = vpop.f32.mrf.mxu0
    %v1881 = vadd.f32 0.0, %v1880
    %v1882 = vpop.f32.mrf.mxu0
    %1883 = vdwg.mxu0
    %v1885 = vrot.slane %v1881, 4
    %1886 = vrot.lane.b32.xlu0 %v1885, 64
    %v1887 = vpop.permute.xlu0 %1886
    %v1889 = vadd.f32 %v185, %v1887
    %v1890 = vld [vmem:[#allocation9] sm:$0xff]
    %v1891 = vld [vmem:[#allocation9 + $0x8] sm:$0xff]
    %v1892 = vld [vmem:[#allocation9 + $0x10] sm:$0xff]
    %v1893 = vld [vmem:[#allocation9 + $0x18] sm:$0xff]
    %1894 = vmatprep.subr.mxu0 0.0
    %1895 = vmatpush1.msra.mxu0 0.0
    %1896 = vmatprep.subr.mxu0 0.0
    %1897 = vmatpush1.msra.mxu0 0.0
    %1898 = vmatprep.subr.mxu0 0.0
    %1899 = vmatpush1.msra.mxu0 0.0
    %1900 = vmatprep.subr.mxu0 0.0
    %1901 = vmatpush1.msra.mxu0 0.0
    %1902 = vmatprep.subr.mxu0 0.0
    %1903 = vmatpush1.msra.mxu0 0.0
    %1904 = vmatprep.subr.mxu0 0.0
    %1905 = vmatpush1.msra.mxu0 0.0
    %1906 = vmatprep.subr.mxu0 0.0
    %1907 = vmatpush1.msra.mxu0 0.0
    %1908 = vmatprep.subr.mxu0 0.0
    %1909 = vmatpush1.msra.mxu0 0.0
    %1910 = vmatprep.subr.mxu0 0.0
    %1911 = vmatpush1.msra.mxu0 0.0
    %1912 = vmatprep.subr.mxu0 0.0
    %1913 = vmatpush1.msra.mxu0 0.0
    %1914 = vmatprep.subr.mxu0 0.0
    %1915 = vmatpush1.msra.mxu0 0.0
    %1916 = vmatprep.subr.mxu0 0.0
    %1917 = vmatpush1.msra.mxu0 0.0
    %1918 = vmatprep.subr.mxu0 0.0
    %1919 = vmatpush1.msra.mxu0 %v1893
    %1920 = vmatprep.subr.mxu0 0.0
    %1921 = vmatpush1.msra.mxu0 %v1892
    %1922 = vmatprep.subr.mxu0 0.0
    %1923 = vmatpush1.msra.mxu0 %v1891
    %1924 = vmatprep.subr.mxu0 0.0
    %1925 = vmatpush1.msra.mxu0 %v1890
    %1926 = vmatprep.subr.mxu0 0.0
    %1927 = vmatpush2.msra.mxu0 0.0
    %1928 = vmatprep.subr.mxu0 0.0
    %1929 = vmatpush2.msra.mxu0 0.0
    %1930 = vmatprep.subr.mxu0 0.0
    %1931 = vmatpush2.msra.mxu0 0.0
    %1932 = vmatprep.subr.mxu0 0.0
    %1933 = vmatpush2.msra.mxu0 0.0
    %1934 = vmatprep.subr.mxu0 0.0
    %1935 = vmatpush2.msra.mxu0 0.0
    %1936 = vmatprep.subr.mxu0 0.0
    %1937 = vmatpush2.msra.mxu0 0.0
    %1938 = vmatprep.subr.mxu0 0.0
    %1939 = vmatpush2.msra.mxu0 0.0
    %1940 = vmatprep.subr.mxu0 0.0
    %1941 = vmatpush2.msra.mxu0 0.0
    %1942 = vmatprep.subr.mxu0 0.0
    %1943 = vmatpush2.msra.mxu0 0.0
    %1944 = vmatprep.subr.mxu0 0.0
    %1945 = vmatpush2.msra.mxu0 0.0
    %1946 = vmatprep.subr.mxu0 0.0
    %1947 = vmatpush2.msra.mxu0 0.0
    %1948 = vmatprep.subr.mxu0 0.0
    %1949 = vmatpush2.msra.mxu0 0.0
    %1950 = vmatprep.subr.mxu0 0.0
    %1951 = vmatpush2.msra.mxu0 0.0
    %1952 = vmatprep.subr.mxu0 0.0
    %1953 = vmatpush2.msra.mxu0 0.0
    %1954 = vmatprep.subr.mxu0 0.0
    %1955 = vmatpush2.msra.mxu0 0.0
    %1956 = vmatprep.subr.mxu0 0.0
    %1957 = vmatpush2.msra.mxu0 0.0
    %1958 = vmatprep.mubr.f32.mxu0 0.0
    %1959 = vmatmul.mubr.f32.gmra.mxu0 %v1654
    %v1960 = vpop.f32.mrf.mxu0
    %v1961 = vadd.f32 0.0, %v1960
    %v1962 = vpop.f32.mrf.mxu0
    %1963 = vdwg.mxu0
    %v1965 = vrot.slane %v1961, 4
    %1966 = vrot.lane.b32.xlu0 %v1965, 96
    %v1967 = vpop.permute.xlu0 %1966
    %v1969 = vadd.f32 %v185, %v1967
    %v1970 = vxor.u32 %v1729, 2147483648
    %v1971 = vmul.f32 %v1970, 1.442695
    %v1972 = vpow.pop %v1971
    %v1973 = vadd.f32 %v1972, 1.0
    %v1974 = vrcp.pop %v1973
    %v1975 = vmul.f32 1.0, %v1974
    %v1976 = vxor.u32 %v1809, 2147483648
    %v1977 = vmul.f32 %v1976, 1.442695
    %v1978 = vpow.pop %v1977
    %v1979 = vadd.f32 %v1978, 1.0
    %v1980 = vrcp.pop %v1979
    %v1981 = vmul.f32 1.0, %v1980
    %v1982 = vtanh.pop %v1889
    %v1983 = vxor.u32 %v1969, 2147483648
    %v1984 = vmul.f32 %v1983, 1.442695
    %v1985 = vpow.pop %v1984
    %v1986 = vadd.f32 %v1985, 1.0
    %v1987 = vrcp.pop %v1986
    %v1988 = vmul.f32 1.0, %v1987
    %v1990 = vrot.slane %v1634, 7
    %v1992 = vmul.f32 %v1981, %v1990
    %1994 = vrot.lane.b32.xlu0 %v1982, 64
    %v1995 = vpop.permute.xlu0 %1994
    %v1997 = vmul.f32 %v1975, %v1995
    %1999 = vrot.lane.b32.xlu0 %v1997, 32
    %v2000 = vpop.permute.xlu0 %1999
    %v2002 = vadd.f32 %v1992, %v2000
    %v2003 = vtanh.pop %v2002
    %2005 = vrot.lane.b32.xlu0 %v2003, 64
    %v2006 = vpop.permute.xlu0 %2005
    %v2008 = vmul.f32 %v1988, %v2006
    %2010 = vrot.lane.b32.xlu0 %v2008, 32
    %v2011 = vpop.permute.xlu0 %2010
    %vm2013 = vcmask 258052
    %2014 = vst.msk [vmem:[#allocation2] sm:$0x10] %vm2013, %v2011
    %v2015 = vld [vmem:[#allocation3] sm:$0xff]
    %v2016 = vld [vmem:[#allocation3 + $0x8] sm:$0xff]
    %v2017 = vld [vmem:[#allocation3 + $0x10] sm:$0xff]
    %v2018 = vld [vmem:[#allocation3 + $0x18] sm:$0xff]
    %v2019 = vrot.slane %v2008, 4
    %2020 = vrot.lane.b32.xlu0 %v2019, 32
    %v2021 = vpop.permute.xlu0 %2020
    %v2022 = vsel %vm192, %v2021, 0
    %2024 = vmatprep.subr.mxu0 0.0
    %2025 = vmatpush1.msra.mxu0 0.0
    %2026 = vmatprep.subr.mxu0 0.0
    %2027 = vmatpush1.msra.mxu0 0.0
    %2028 = vmatprep.subr.mxu0 0.0
    %2029 = vmatpush1.msra.mxu0 0.0
    %2030 = vmatprep.subr.mxu0 0.0
    %2031 = vmatpush1.msra.mxu0 0.0
    %2032 = vmatprep.subr.mxu0 0.0
    %2033 = vmatpush1.msra.mxu0 0.0
    %2034 = vmatprep.subr.mxu0 0.0
    %2035 = vmatpush1.msra.mxu0 0.0
    %2036 = vmatprep.subr.mxu0 0.0
    %2037 = vmatpush1.msra.mxu0 0.0
    %2038 = vmatprep.subr.mxu0 0.0
    %2039 = vmatpush1.msra.mxu0 0.0
    %2040 = vmatprep.subr.mxu0 0.0
    %2041 = vmatpush1.msra.mxu0 0.0
    %2042 = vmatprep.subr.mxu0 0.0
    %2043 = vmatpush1.msra.mxu0 0.0
    %2044 = vmatprep.subr.mxu0 0.0
    %2045 = vmatpush1.msra.mxu0 0.0
    %2046 = vmatprep.subr.mxu0 0.0
    %2047 = vmatpush1.msra.mxu0 0.0
    %2048 = vmatprep.subr.mxu0 0.0
    %2049 = vmatpush1.msra.mxu0 %v2018
    %2050 = vmatprep.subr.mxu0 0.0
    %2051 = vmatpush1.msra.mxu0 %v2017
    %2052 = vmatprep.subr.mxu0 0.0
    %2053 = vmatpush1.msra.mxu0 %v2016
    %2054 = vmatprep.subr.mxu0 0.0
    %2055 = vmatpush1.msra.mxu0 %v2015
    %2056 = vmatprep.subr.mxu0 0.0
    %2057 = vmatpush2.msra.mxu0 0.0
    %2058 = vmatprep.subr.mxu0 0.0
    %2059 = vmatpush2.msra.mxu0 0.0
    %2060 = vmatprep.subr.mxu0 0.0
    %2061 = vmatpush2.msra.mxu0 0.0
    %2062 = vmatprep.subr.mxu0 0.0
    %2063 = vmatpush2.msra.mxu0 0.0
    %2064 = vmatprep.subr.mxu0 0.0
    %2065 = vmatpush2.msra.mxu0 0.0
    %2066 = vmatprep.subr.mxu0 0.0
    %2067 = vmatpush2.msra.mxu0 0.0
    %2068 = vmatprep.subr.mxu0 0.0
    %2069 = vmatpush2.msra.mxu0 0.0
    %2070 = vmatprep.subr.mxu0 0.0
    %2071 = vmatpush2.msra.mxu0 0.0
    %2072 = vmatprep.subr.mxu0 0.0
    %2073 = vmatpush2.msra.mxu0 0.0
    %2074 = vmatprep.subr.mxu0 0.0
    %2075 = vmatpush2.msra.mxu0 0.0
    %2076 = vmatprep.subr.mxu0 0.0
    %2077 = vmatpush2.msra.mxu0 0.0
    %2078 = vmatprep.subr.mxu0 0.0
    %2079 = vmatpush2.msra.mxu0 0.0
    %2080 = vmatprep.subr.mxu0 0.0
    %2081 = vmatpush2.msra.mxu0 0.0
    %2082 = vmatprep.subr.mxu0 0.0
    %2083 = vmatpush2.msra.mxu0 0.0
    %2084 = vmatprep.subr.mxu0 0.0
    %2085 = vmatpush2.msra.mxu0 0.0
    %2086 = vmatprep.subr.mxu0 0.0
    %2087 = vmatpush2.msra.mxu0 0.0
    %2088 = vmatprep.mubr.f32.mxu0 0.0
    %2089 = vmatmul.mubr.f32.gmra.mxu0 %v2022
    %v2090 = vpop.f32.mrf.mxu0
    %v2091 = vadd.f32 0.0, %v2090
    %v2092 = vpop.f32.mrf.mxu0
    %2093 = vdwg.mxu0
    %v2095 = vrot.slane %v2091, 3
    %v2097 = vadd.f32 %v185, %v2095
    %v2098 = vld [vmem:[#allocation6] sm:$0xff]
    %v2099 = vld [vmem:[#allocation6 + $0x8] sm:$0xff]
    %v2100 = vld [vmem:[#allocation6 + $0x10] sm:$0xff]
    %v2101 = vld [vmem:[#allocation6 + $0x18] sm:$0xff]
    %2102 = vmatprep.subr.mxu0 0.0
    %2103 = vmatpush1.msra.mxu0 0.0
    %2104 = vmatprep.subr.mxu0 0.0
    %2105 = vmatpush1.msra.mxu0 0.0
    %2106 = vmatprep.subr.mxu0 0.0
    %2107 = vmatpush1.msra.mxu0 0.0
    %2108 = vmatprep.subr.mxu0 0.0
    %2109 = vmatpush1.msra.mxu0 0.0
    %2110 = vmatprep.subr.mxu0 0.0
    %2111 = vmatpush1.msra.mxu0 0.0
    %2112 = vmatprep.subr.mxu0 0.0
    %2113 = vmatpush1.msra.mxu0 0.0
    %2114 = vmatprep.subr.mxu0 0.0
    %2115 = vmatpush1.msra.mxu0 0.0
    %2116 = vmatprep.subr.mxu0 0.0
    %2117 = vmatpush1.msra.mxu0 0.0
    %2118 = vmatprep.subr.mxu0 0.0
    %2119 = vmatpush1.msra.mxu0 0.0
    %2120 = vmatprep.subr.mxu0 0.0
    %2121 = vmatpush1.msra.mxu0 0.0
    %2122 = vmatprep.subr.mxu0 0.0
    %2123 = vmatpush1.msra.mxu0 0.0
    %2124 = vmatprep.subr.mxu0 0.0
    %2125 = vmatpush1.msra.mxu0 0.0
    %2126 = vmatprep.subr.mxu0 0.0
    %2127 = vmatpush1.msra.mxu0 %v2101
    %2128 = vmatprep.subr.mxu0 0.0
    %2129 = vmatpush1.msra.mxu0 %v2100
    %2130 = vmatprep.subr.mxu0 0.0
    %2131 = vmatpush1.msra.mxu0 %v2099
    %2132 = vmatprep.subr.mxu0 0.0
    %2133 = vmatpush1.msra.mxu0 %v2098
    %2134 = vmatprep.subr.mxu0 0.0
    %2135 = vmatpush2.msra.mxu0 0.0
    %2136 = vmatprep.subr.mxu0 0.0
    %2137 = vmatpush2.msra.mxu0 0.0
    %2138 = vmatprep.subr.mxu0 0.0
    %2139 = vmatpush2.msra.mxu0 0.0
    %2140 = vmatprep.subr.mxu0 0.0
    %2141 = vmatpush2.msra.mxu0 0.0
    %2142 = vmatprep.subr.mxu0 0.0
    %2143 = vmatpush2.msra.mxu0 0.0
    %2144 = vmatprep.subr.mxu0 0.0
    %2145 = vmatpush2.msra.mxu0 0.0
    %2146 = vmatprep.subr.mxu0 0.0
    %2147 = vmatpush2.msra.mxu0 0.0
    %2148 = vmatprep.subr.mxu0 0.0
    %2149 = vmatpush2.msra.mxu0 0.0
    %2150 = vmatprep.subr.mxu0 0.0
    %2151 = vmatpush2.msra.mxu0 0.0
    %2152 = vmatprep.subr.mxu0 0.0
    %2153 = vmatpush2.msra.mxu0 0.0
    %2154 = vmatprep.subr.mxu0 0.0
    %2155 = vmatpush2.msra.mxu0 0.0
    %2156 = vmatprep.subr.mxu0 0.0
    %2157 = vmatpush2.msra.mxu0 0.0
    %2158 = vmatprep.subr.mxu0 0.0
    %2159 = vmatpush2.msra.mxu0 0.0
    %2160 = vmatprep.subr.mxu0 0.0
    %2161 = vmatpush2.msra.mxu0 0.0
    %2162 = vmatprep.subr.mxu0 0.0
    %2163 = vmatpush2.msra.mxu0 0.0
    %2164 = vmatprep.subr.mxu0 0.0
    %2165 = vmatpush2.msra.mxu0 0.0
    %2166 = vmatprep.mubr.f32.mxu0 0.0
    %2167 = vmatmul.mubr.f32.gmra.mxu0 %v2022
    %v2168 = vpop.f32.mrf.mxu0
    %v2169 = vadd.f32 0.0, %v2168
    %v2170 = vpop.f32.mrf.mxu0
    %2171 = vdwg.mxu0
    %v2173 = vrot.slane %v2169, 3
    %2174 = vrot.lane.b32.xlu0 %v2173, 32
    %v2175 = vpop.permute.xlu0 %2174
    %v2177 = vadd.f32 %v185, %v2175
    %v2178 = vld [vmem:[#allocation8] sm:$0xff]
    %v2179 = vld [vmem:[#allocation8 + $0x8] sm:$0xff]
    %v2180 = vld [vmem:[#allocation8 + $0x10] sm:$0xff]
    %v2181 = vld [vmem:[#allocation8 + $0x18] sm:$0xff]
    %2182 = vmatprep.subr.mxu0 0.0
    %2183 = vmatpush1.msra.mxu0 0.0
    %2184 = vmatprep.subr.mxu0 0.0
    %2185 = vmatpush1.msra.mxu0 0.0
    %2186 = vmatprep.subr.mxu0 0.0
    %2187 = vmatpush1.msra.mxu0 0.0
    %2188 = vmatprep.subr.mxu0 0.0
    %2189 = vmatpush1.msra.mxu0 0.0
    %2190 = vmatprep.subr.mxu0 0.0
    %2191 = vmatpush1.msra.mxu0 0.0
    %2192 = vmatprep.subr.mxu0 0.0
    %2193 = vmatpush1.msra.mxu0 0.0
    %2194 = vmatprep.subr.mxu0 0.0
    %2195 = vmatpush1.msra.mxu0 0.0
    %2196 = vmatprep.subr.mxu0 0.0
    %2197 = vmatpush1.msra.mxu0 0.0
    %2198 = vmatprep.subr.mxu0 0.0
    %2199 = vmatpush1.msra.mxu0 0.0
    %2200 = vmatprep.subr.mxu0 0.0
    %2201 = vmatpush1.msra.mxu0 0.0
    %2202 = vmatprep.subr.mxu0 0.0
    %2203 = vmatpush1.msra.mxu0 0.0
    %2204 = vmatprep.subr.mxu0 0.0
    %2205 = vmatpush1.msra.mxu0 0.0
    %2206 = vmatprep.subr.mxu0 0.0
    %2207 = vmatpush1.msra.mxu0 %v2181
    %2208 = vmatprep.subr.mxu0 0.0
    %2209 = vmatpush1.msra.mxu0 %v2180
    %2210 = vmatprep.subr.mxu0 0.0
    %2211 = vmatpush1.msra.mxu0 %v2179
    %2212 = vmatprep.subr.mxu0 0.0
    %2213 = vmatpush1.msra.mxu0 %v2178
    %2214 = vmatprep.subr.mxu0 0.0
    %2215 = vmatpush2.msra.mxu0 0.0
    %2216 = vmatprep.subr.mxu0 0.0
    %2217 = vmatpush2.msra.mxu0 0.0
    %2218 = vmatprep.subr.mxu0 0.0
    %2219 = vmatpush2.msra.mxu0 0.0
    %2220 = vmatprep.subr.mxu0 0.0
    %2221 = vmatpush2.msra.mxu0 0.0
    %2222 = vmatprep.subr.mxu0 0.0
    %2223 = vmatpush2.msra.mxu0 0.0
    %2224 = vmatprep.subr.mxu0 0.0
    %2225 = vmatpush2.msra.mxu0 0.0
    %2226 = vmatprep.subr.mxu0 0.0
    %2227 = vmatpush2.msra.mxu0 0.0
    %2228 = vmatprep.subr.mxu0 0.0
    %2229 = vmatpush2.msra.mxu0 0.0
    %2230 = vmatprep.subr.mxu0 0.0
    %2231 = vmatpush2.msra.mxu0 0.0
    %2232 = vmatprep.subr.mxu0 0.0
    %2233 = vmatpush2.msra.mxu0 0.0
    %2234 = vmatprep.subr.mxu0 0.0
    %2235 = vmatpush2.msra.mxu0 0.0
    %2236 = vmatprep.subr.mxu0 0.0
    %2237 = vmatpush2.msra.mxu0 0.0
    %2238 = vmatprep.subr.mxu0 0.0
    %2239 = vmatpush2.msra.mxu0 0.0
    %2240 = vmatprep.subr.mxu0 0.0
    %2241 = vmatpush2.msra.mxu0 0.0
    %2242 = vmatprep.subr.mxu0 0.0
    %2243 = vmatpush2.msra.mxu0 0.0
    %2244 = vmatprep.subr.mxu0 0.0
    %2245 = vmatpush2.msra.mxu0 0.0
    %2246 = vmatprep.mubr.f32.mxu0 0.0
    %2247 = vmatmul.mubr.f32.gmra.mxu0 %v2022
    %v2248 = vpop.f32.mrf.mxu0
    %v2249 = vadd.f32 0.0, %v2248
    %v2250 = vpop.f32.mrf.mxu0
    %2251 = vdwg.mxu0
    %v2253 = vrot.slane %v2249, 3
    %2254 = vrot.lane.b32.xlu0 %v2253, 64
    %v2255 = vpop.permute.xlu0 %2254
    %v2257 = vadd.f32 %v185, %v2255
    %v2258 = vld [vmem:[#allocation9] sm:$0xff]
    %v2259 = vld [vmem:[#allocation9 + $0x8] sm:$0xff]
    %v2260 = vld [vmem:[#allocation9 + $0x10] sm:$0xff]
    %v2261 = vld [vmem:[#allocation9 + $0x18] sm:$0xff]
    %2262 = vmatprep.subr.mxu0 0.0
    %2263 = vmatpush1.msra.mxu0 0.0
    %2264 = vmatprep.subr.mxu0 0.0
    %2265 = vmatpush1.msra.mxu0 0.0
    %2266 = vmatprep.subr.mxu0 0.0
    %2267 = vmatpush1.msra.mxu0 0.0
    %2268 = vmatprep.subr.mxu0 0.0
    %2269 = vmatpush1.msra.mxu0 0.0
    %2270 = vmatprep.subr.mxu0 0.0
    %2271 = vmatpush1.msra.mxu0 0.0
    %2272 = vmatprep.subr.mxu0 0.0
    %2273 = vmatpush1.msra.mxu0 0.0
    %2274 = vmatprep.subr.mxu0 0.0
    %2275 = vmatpush1.msra.mxu0 0.0
    %2276 = vmatprep.subr.mxu0 0.0
    %2277 = vmatpush1.msra.mxu0 0.0
    %2278 = vmatprep.subr.mxu0 0.0
    %2279 = vmatpush1.msra.mxu0 0.0
    %2280 = vmatprep.subr.mxu0 0.0
    %2281 = vmatpush1.msra.mxu0 0.0
    %2282 = vmatprep.subr.mxu0 0.0
    %2283 = vmatpush1.msra.mxu0 0.0
    %2284 = vmatprep.subr.mxu0 0.0
    %2285 = vmatpush1.msra.mxu0 0.0
    %2286 = vmatprep.subr.mxu0 0.0
    %2287 = vmatpush1.msra.mxu0 %v2261
    %2288 = vmatprep.subr.mxu0 0.0
    %2289 = vmatpush1.msra.mxu0 %v2260
    %2290 = vmatprep.subr.mxu0 0.0
    %2291 = vmatpush1.msra.mxu0 %v2259
    %2292 = vmatprep.subr.mxu0 0.0
    %2293 = vmatpush1.msra.mxu0 %v2258
    %2294 = vmatprep.subr.mxu0 0.0
    %2295 = vmatpush2.msra.mxu0 0.0
    %2296 = vmatprep.subr.mxu0 0.0
    %2297 = vmatpush2.msra.mxu0 0.0
    %2298 = vmatprep.subr.mxu0 0.0
    %2299 = vmatpush2.msra.mxu0 0.0
    %2300 = vmatprep.subr.mxu0 0.0
    %2301 = vmatpush2.msra.mxu0 0.0
    %2302 = vmatprep.subr.mxu0 0.0
    %2303 = vmatpush2.msra.mxu0 0.0
    %2304 = vmatprep.subr.mxu0 0.0
    %2305 = vmatpush2.msra.mxu0 0.0
    %2306 = vmatprep.subr.mxu0 0.0
    %2307 = vmatpush2.msra.mxu0 0.0
    %2308 = vmatprep.subr.mxu0 0.0
    %2309 = vmatpush2.msra.mxu0 0.0
    %2310 = vmatprep.subr.mxu0 0.0
    %2311 = vmatpush2.msra.mxu0 0.0
    %2312 = vmatprep.subr.mxu0 0.0
    %2313 = vmatpush2.msra.mxu0 0.0
    %2314 = vmatprep.subr.mxu0 0.0
    %2315 = vmatpush2.msra.mxu0 0.0
    %2316 = vmatprep.subr.mxu0 0.0
    %2317 = vmatpush2.msra.mxu0 0.0
    %2318 = vmatprep.subr.mxu0 0.0
    %2319 = vmatpush2.msra.mxu0 0.0
    %2320 = vmatprep.subr.mxu0 0.0
    %2321 = vmatpush2.msra.mxu0 0.0
    %2322 = vmatprep.subr.mxu0 0.0
    %2323 = vmatpush2.msra.mxu0 0.0
    %2324 = vmatprep.subr.mxu0 0.0
    %2325 = vmatpush2.msra.mxu0 0.0
    %2326 = vmatprep.mubr.f32.mxu0 0.0
    %2327 = vmatmul.mubr.f32.gmra.mxu0 %v2022
    %v2328 = vpop.f32.mrf.mxu0
    %v2329 = vadd.f32 0.0, %v2328
    %v2330 = vpop.f32.mrf.mxu0
    %2331 = vdwg.mxu0
    %v2333 = vrot.slane %v2329, 3
    %2334 = vrot.lane.b32.xlu0 %v2333, 96
    %v2335 = vpop.permute.xlu0 %2334
    %v2337 = vadd.f32 %v185, %v2335
    %v2338 = vxor.u32 %v2097, 2147483648
    %v2339 = vmul.f32 %v2338, 1.442695
    %v2340 = vpow.pop %v2339
    %v2341 = vadd.f32 %v2340, 1.0
    %v2342 = vrcp.pop %v2341
    %v2343 = vmul.f32 1.0, %v2342
    %v2344 = vxor.u32 %v2177, 2147483648
    %v2345 = vmul.f32 %v2344, 1.442695
    %v2346 = vpow.pop %v2345
    %v2347 = vadd.f32 %v2346, 1.0
    %v2348 = vrcp.pop %v2347
    %v2349 = vmul.f32 1.0, %v2348
    %v2350 = vtanh.pop %v2257
    %v2351 = vxor.u32 %v2337, 2147483648
    %v2352 = vmul.f32 %v2351, 1.442695
    %v2353 = vpow.pop %v2352
    %v2354 = vadd.f32 %v2353, 1.0
    %v2355 = vrcp.pop %v2354
    %v2356 = vmul.f32 1.0, %v2355
    %v2358 = vrot.slane %v2002, 7
    %v2360 = vmul.f32 %v2349, %v2358
    %2362 = vrot.lane.b32.xlu0 %v2350, 64
    %v2363 = vpop.permute.xlu0 %2362
    %v2365 = vmul.f32 %v2343, %v2363
    %2367 = vrot.lane.b32.xlu0 %v2365, 32
    %v2368 = vpop.permute.xlu0 %2367
    %v2370 = vadd.f32 %v2360, %v2368
    %v2371 = vtanh.pop %v2370
    %2373 = vrot.lane.b32.xlu0 %v2371, 64
    %v2374 = vpop.permute.xlu0 %2373
    %v2376 = vmul.f32 %v2356, %v2374
    %2378 = vrot.lane.b32.xlu0 %v2376, 32
    %v2379 = vpop.permute.xlu0 %2378
    %vm2381 = vcmask 259077
    %2382 = vst.msk [vmem:[#allocation2] sm:$0x20] %vm2381, %v2379
    %v2383 = vld [vmem:[#allocation3] sm:$0xff]
    %v2384 = vld [vmem:[#allocation3 + $0x8] sm:$0xff]
    %v2385 = vld [vmem:[#allocation3 + $0x10] sm:$0xff]
    %v2386 = vld [vmem:[#allocation3 + $0x18] sm:$0xff]
    %v2387 = vrot.slane %v2376, 5
    %2388 = vrot.lane.b32.xlu0 %v2387, 32
    %v2389 = vpop.permute.xlu0 %2388
    %v2390 = vsel %vm192, %v2389, 0
    %2392 = vmatprep.subr.mxu0 0.0
    %2393 = vmatpush1.msra.mxu0 0.0
    %2394 = vmatprep.subr.mxu0 0.0
    %2395 = vmatpush1.msra.mxu0 0.0
    %2396 = vmatprep.subr.mxu0 0.0
    %2397 = vmatpush1.msra.mxu0 0.0
    %2398 = vmatprep.subr.mxu0 0.0
    %2399 = vmatpush1.msra.mxu0 0.0
    %2400 = vmatprep.subr.mxu0 0.0
    %2401 = vmatpush1.msra.mxu0 0.0
    %2402 = vmatprep.subr.mxu0 0.0
    %2403 = vmatpush1.msra.mxu0 0.0
    %2404 = vmatprep.subr.mxu0 0.0
    %2405 = vmatpush1.msra.mxu0 0.0
    %2406 = vmatprep.subr.mxu0 0.0
    %2407 = vmatpush1.msra.mxu0 0.0
    %2408 = vmatprep.subr.mxu0 0.0
    %2409 = vmatpush1.msra.mxu0 0.0
    %2410 = vmatprep.subr.mxu0 0.0
    %2411 = vmatpush1.msra.mxu0 0.0
    %2412 = vmatprep.subr.mxu0 0.0
    %2413 = vmatpush1.msra.mxu0 0.0
    %2414 = vmatprep.subr.mxu0 0.0
    %2415 = vmatpush1.msra.mxu0 0.0
    %2416 = vmatprep.subr.mxu0 0.0
    %2417 = vmatpush1.msra.mxu0 %v2386
    %2418 = vmatprep.subr.mxu0 0.0
    %2419 = vmatpush1.msra.mxu0 %v2385
    %2420 = vmatprep.subr.mxu0 0.0
    %2421 = vmatpush1.msra.mxu0 %v2384
    %2422 = vmatprep.subr.mxu0 0.0
    %2423 = vmatpush1.msra.mxu0 %v2383
    %2424 = vmatprep.subr.mxu0 0.0
    %2425 = vmatpush2.msra.mxu0 0.0
    %2426 = vmatprep.subr.mxu0 0.0
    %2427 = vmatpush2.msra.mxu0 0.0
    %2428 = vmatprep.subr.mxu0 0.0
    %2429 = vmatpush2.msra.mxu0 0.0
    %2430 = vmatprep.subr.mxu0 0.0
    %2431 = vmatpush2.msra.mxu0 0.0
    %2432 = vmatprep.subr.mxu0 0.0
    %2433 = vmatpush2.msra.mxu0 0.0
    %2434 = vmatprep.subr.mxu0 0.0
    %2435 = vmatpush2.msra.mxu0 0.0
    %2436 = vmatprep.subr.mxu0 0.0
    %2437 = vmatpush2.msra.mxu0 0.0
    %2438 = vmatprep.subr.mxu0 0.0
    %2439 = vmatpush2.msra.mxu0 0.0
    %2440 = vmatprep.subr.mxu0 0.0
    %2441 = vmatpush2.msra.mxu0 0.0
    %2442 = vmatprep.subr.mxu0 0.0
    %2443 = vmatpush2.msra.mxu0 0.0
    %2444 = vmatprep.subr.mxu0 0.0
    %2445 = vmatpush2.msra.mxu0 0.0
    %2446 = vmatprep.subr.mxu0 0.0
    %2447 = vmatpush2.msra.mxu0 0.0
    %2448 = vmatprep.subr.mxu0 0.0
    %2449 = vmatpush2.msra.mxu0 0.0
    %2450 = vmatprep.subr.mxu0 0.0
    %2451 = vmatpush2.msra.mxu0 0.0
    %2452 = vmatprep.subr.mxu0 0.0
    %2453 = vmatpush2.msra.mxu0 0.0
    %2454 = vmatprep.subr.mxu0 0.0
    %2455 = vmatpush2.msra.mxu0 0.0
    %2456 = vmatprep.mubr.f32.mxu0 0.0
    %2457 = vmatmul.mubr.f32.gmra.mxu0 %v2390
    %v2458 = vpop.f32.mrf.mxu0
    %v2459 = vadd.f32 0.0, %v2458
    %v2460 = vpop.f32.mrf.mxu0
    %2461 = vdwg.mxu0
    %v2463 = vrot.slane %v2459, 2
    %v2465 = vadd.f32 %v185, %v2463
    %v2466 = vld [vmem:[#allocation6] sm:$0xff]
    %v2467 = vld [vmem:[#allocation6 + $0x8] sm:$0xff]
    %v2468 = vld [vmem:[#allocation6 + $0x10] sm:$0xff]
    %v2469 = vld [vmem:[#allocation6 + $0x18] sm:$0xff]
    %2470 = vmatprep.subr.mxu0 0.0
    %2471 = vmatpush1.msra.mxu0 0.0
    %2472 = vmatprep.subr.mxu0 0.0
    %2473 = vmatpush1.msra.mxu0 0.0
    %2474 = vmatprep.subr.mxu0 0.0
    %2475 = vmatpush1.msra.mxu0 0.0
    %2476 = vmatprep.subr.mxu0 0.0
    %2477 = vmatpush1.msra.mxu0 0.0
    %2478 = vmatprep.subr.mxu0 0.0
    %2479 = vmatpush1.msra.mxu0 0.0
    %2480 = vmatprep.subr.mxu0 0.0
    %2481 = vmatpush1.msra.mxu0 0.0
    %2482 = vmatprep.subr.mxu0 0.0
    %2483 = vmatpush1.msra.mxu0 0.0
    %2484 = vmatprep.subr.mxu0 0.0
    %2485 = vmatpush1.msra.mxu0 0.0
    %2486 = vmatprep.subr.mxu0 0.0
    %2487 = vmatpush1.msra.mxu0 0.0
    %2488 = vmatprep.subr.mxu0 0.0
    %2489 = vmatpush1.msra.mxu0 0.0
    %2490 = vmatprep.subr.mxu0 0.0
    %2491 = vmatpush1.msra.mxu0 0.0
    %2492 = vmatprep.subr.mxu0 0.0
    %2493 = vmatpush1.msra.mxu0 0.0
    %2494 = vmatprep.subr.mxu0 0.0
    %2495 = vmatpush1.msra.mxu0 %v2469
    %2496 = vmatprep.subr.mxu0 0.0
    %2497 = vmatpush1.msra.mxu0 %v2468
    %2498 = vmatprep.subr.mxu0 0.0
    %2499 = vmatpush1.msra.mxu0 %v2467
    %2500 = vmatprep.subr.mxu0 0.0
    %2501 = vmatpush1.msra.mxu0 %v2466
    %2502 = vmatprep.subr.mxu0 0.0
    %2503 = vmatpush2.msra.mxu0 0.0
    %2504 = vmatprep.subr.mxu0 0.0
    %2505 = vmatpush2.msra.mxu0 0.0
    %2506 = vmatprep.subr.mxu0 0.0
    %2507 = vmatpush2.msra.mxu0 0.0
    %2508 = vmatprep.subr.mxu0 0.0
    %2509 = vmatpush2.msra.mxu0 0.0
    %2510 = vmatprep.subr.mxu0 0.0
    %2511 = vmatpush2.msra.mxu0 0.0
    %2512 = vmatprep.subr.mxu0 0.0
    %2513 = vmatpush2.msra.mxu0 0.0
    %2514 = vmatprep.subr.mxu0 0.0
    %2515 = vmatpush2.msra.mxu0 0.0
    %2516 = vmatprep.subr.mxu0 0.0
    %2517 = vmatpush2.msra.mxu0 0.0
    %2518 = vmatprep.subr.mxu0 0.0
    %2519 = vmatpush2.msra.mxu0 0.0
    %2520 = vmatprep.subr.mxu0 0.0
    %2521 = vmatpush2.msra.mxu0 0.0
    %2522 = vmatprep.subr.mxu0 0.0
    %2523 = vmatpush2.msra.mxu0 0.0
    %2524 = vmatprep.subr.mxu0 0.0
    %2525 = vmatpush2.msra.mxu0 0.0
    %2526 = vmatprep.subr.mxu0 0.0
    %2527 = vmatpush2.msra.mxu0 0.0
    %2528 = vmatprep.subr.mxu0 0.0
    %2529 = vmatpush2.msra.mxu0 0.0
    %2530 = vmatprep.subr.mxu0 0.0
    %2531 = vmatpush2.msra.mxu0 0.0
    %2532 = vmatprep.subr.mxu0 0.0
    %2533 = vmatpush2.msra.mxu0 0.0
    %2534 = vmatprep.mubr.f32.mxu0 0.0
    %2535 = vmatmul.mubr.f32.gmra.mxu0 %v2390
    %v2536 = vpop.f32.mrf.mxu0
    %v2537 = vadd.f32 0.0, %v2536
    %v2538 = vpop.f32.mrf.mxu0
    %2539 = vdwg.mxu0
    %v2541 = vrot.slane %v2537, 2
    %2542 = vrot.lane.b32.xlu0 %v2541, 32
    %v2543 = vpop.permute.xlu0 %2542
    %v2545 = vadd.f32 %v185, %v2543
    %v2546 = vld [vmem:[#allocation8] sm:$0xff]
    %v2547 = vld [vmem:[#allocation8 + $0x8] sm:$0xff]
    %v2548 = vld [vmem:[#allocation8 + $0x10] sm:$0xff]
    %v2549 = vld [vmem:[#allocation8 + $0x18] sm:$0xff]
    %2550 = vmatprep.subr.mxu0 0.0
    %2551 = vmatpush1.msra.mxu0 0.0
    %2552 = vmatprep.subr.mxu0 0.0
    %2553 = vmatpush1.msra.mxu0 0.0
    %2554 = vmatprep.subr.mxu0 0.0
    %2555 = vmatpush1.msra.mxu0 0.0
    %2556 = vmatprep.subr.mxu0 0.0
    %2557 = vmatpush1.msra.mxu0 0.0
    %2558 = vmatprep.subr.mxu0 0.0
    %2559 = vmatpush1.msra.mxu0 0.0
    %2560 = vmatprep.subr.mxu0 0.0
    %2561 = vmatpush1.msra.mxu0 0.0
    %2562 = vmatprep.subr.mxu0 0.0
    %2563 = vmatpush1.msra.mxu0 0.0
    %2564 = vmatprep.subr.mxu0 0.0
    %2565 = vmatpush1.msra.mxu0 0.0
    %2566 = vmatprep.subr.mxu0 0.0
    %2567 = vmatpush1.msra.mxu0 0.0
    %2568 = vmatprep.subr.mxu0 0.0
    %2569 = vmatpush1.msra.mxu0 0.0
    %2570 = vmatprep.subr.mxu0 0.0
    %2571 = vmatpush1.msra.mxu0 0.0
    %2572 = vmatprep.subr.mxu0 0.0
    %2573 = vmatpush1.msra.mxu0 0.0
    %2574 = vmatprep.subr.mxu0 0.0
    %2575 = vmatpush1.msra.mxu0 %v2549
    %2576 = vmatprep.subr.mxu0 0.0
    %2577 = vmatpush1.msra.mxu0 %v2548
    %2578 = vmatprep.subr.mxu0 0.0
    %2579 = vmatpush1.msra.mxu0 %v2547
    %2580 = vmatprep.subr.mxu0 0.0
    %2581 = vmatpush1.msra.mxu0 %v2546
    %2582 = vmatprep.subr.mxu0 0.0
    %2583 = vmatpush2.msra.mxu0 0.0
    %2584 = vmatprep.subr.mxu0 0.0
    %2585 = vmatpush2.msra.mxu0 0.0
    %2586 = vmatprep.subr.mxu0 0.0
    %2587 = vmatpush2.msra.mxu0 0.0
    %2588 = vmatprep.subr.mxu0 0.0
    %2589 = vmatpush2.msra.mxu0 0.0
    %2590 = vmatprep.subr.mxu0 0.0
    %2591 = vmatpush2.msra.mxu0 0.0
    %2592 = vmatprep.subr.mxu0 0.0
    %2593 = vmatpush2.msra.mxu0 0.0
    %2594 = vmatprep.subr.mxu0 0.0
    %2595 = vmatpush2.msra.mxu0 0.0
    %2596 = vmatprep.subr.mxu0 0.0
    %2597 = vmatpush2.msra.mxu0 0.0
    %2598 = vmatprep.subr.mxu0 0.0
    %2599 = vmatpush2.msra.mxu0 0.0
    %2600 = vmatprep.subr.mxu0 0.0
    %2601 = vmatpush2.msra.mxu0 0.0
    %2602 = vmatprep.subr.mxu0 0.0
    %2603 = vmatpush2.msra.mxu0 0.0
    %2604 = vmatprep.subr.mxu0 0.0
    %2605 = vmatpush2.msra.mxu0 0.0
    %2606 = vmatprep.subr.mxu0 0.0
    %2607 = vmatpush2.msra.mxu0 0.0
    %2608 = vmatprep.subr.mxu0 0.0
    %2609 = vmatpush2.msra.mxu0 0.0
    %2610 = vmatprep.subr.mxu0 0.0
    %2611 = vmatpush2.msra.mxu0 0.0
    %2612 = vmatprep.subr.mxu0 0.0
    %2613 = vmatpush2.msra.mxu0 0.0
    %2614 = vmatprep.mubr.f32.mxu0 0.0
    %2615 = vmatmul.mubr.f32.gmra.mxu0 %v2390
    %v2616 = vpop.f32.mrf.mxu0
    %v2617 = vadd.f32 0.0, %v2616
    %v2618 = vpop.f32.mrf.mxu0
    %2619 = vdwg.mxu0
    %v2621 = vrot.slane %v2617, 2
    %2622 = vrot.lane.b32.xlu0 %v2621, 64
    %v2623 = vpop.permute.xlu0 %2622
    %v2625 = vadd.f32 %v185, %v2623
    %v2626 = vld [vmem:[#allocation9] sm:$0xff]
    %v2627 = vld [vmem:[#allocation9 + $0x8] sm:$0xff]
    %v2628 = vld [vmem:[#allocation9 + $0x10] sm:$0xff]
    %v2629 = vld [vmem:[#allocation9 + $0x18] sm:$0xff]
    %2630 = vmatprep.subr.mxu0 0.0
    %2631 = vmatpush1.msra.mxu0 0.0
    %2632 = vmatprep.subr.mxu0 0.0
    %2633 = vmatpush1.msra.mxu0 0.0
    %2634 = vmatprep.subr.mxu0 0.0
    %2635 = vmatpush1.msra.mxu0 0.0
    %2636 = vmatprep.subr.mxu0 0.0
    %2637 = vmatpush1.msra.mxu0 0.0
    %2638 = vmatprep.subr.mxu0 0.0
    %2639 = vmatpush1.msra.mxu0 0.0
    %2640 = vmatprep.subr.mxu0 0.0
    %2641 = vmatpush1.msra.mxu0 0.0
    %2642 = vmatprep.subr.mxu0 0.0
    %2643 = vmatpush1.msra.mxu0 0.0
    %2644 = vmatprep.subr.mxu0 0.0
    %2645 = vmatpush1.msra.mxu0 0.0
    %2646 = vmatprep.subr.mxu0 0.0
    %2647 = vmatpush1.msra.mxu0 0.0
    %2648 = vmatprep.subr.mxu0 0.0
    %2649 = vmatpush1.msra.mxu0 0.0
    %2650 = vmatprep.subr.mxu0 0.0
    %2651 = vmatpush1.msra.mxu0 0.0
    %2652 = vmatprep.subr.mxu0 0.0
    %2653 = vmatpush1.msra.mxu0 0.0
    %2654 = vmatprep.subr.mxu0 0.0
    %2655 = vmatpush1.msra.mxu0 %v2629
    %2656 = vmatprep.subr.mxu0 0.0
    %2657 = vmatpush1.msra.mxu0 %v2628
    %2658 = vmatprep.subr.mxu0 0.0
    %2659 = vmatpush1.msra.mxu0 %v2627
    %2660 = vmatprep.subr.mxu0 0.0
    %2661 = vmatpush1.msra.mxu0 %v2626
    %2662 = vmatprep.subr.mxu0 0.0
    %2663 = vmatpush2.msra.mxu0 0.0
    %2664 = vmatprep.subr.mxu0 0.0
    %2665 = vmatpush2.msra.mxu0 0.0
    %2666 = vmatprep.subr.mxu0 0.0
    %2667 = vmatpush2.msra.mxu0 0.0
    %2668 = vmatprep.subr.mxu0 0.0
    %2669 = vmatpush2.msra.mxu0 0.0
    %2670 = vmatprep.subr.mxu0 0.0
    %2671 = vmatpush2.msra.mxu0 0.0
    %2672 = vmatprep.subr.mxu0 0.0
    %2673 = vmatpush2.msra.mxu0 0.0
    %2674 = vmatprep.subr.mxu0 0.0
    %2675 = vmatpush2.msra.mxu0 0.0
    %2676 = vmatprep.subr.mxu0 0.0
    %2677 = vmatpush2.msra.mxu0 0.0
    %2678 = vmatprep.subr.mxu0 0.0
    %2679 = vmatpush2.msra.mxu0 0.0
    %2680 = vmatprep.subr.mxu0 0.0
    %2681 = vmatpush2.msra.mxu0 0.0
    %2682 = vmatprep.subr.mxu0 0.0
    %2683 = vmatpush2.msra.mxu0 0.0
    %2684 = vmatprep.subr.mxu0 0.0
    %2685 = vmatpush2.msra.mxu0 0.0
    %2686 = vmatprep.subr.mxu0 0.0
    %2687 = vmatpush2.msra.mxu0 0.0
    %2688 = vmatprep.subr.mxu0 0.0
    %2689 = vmatpush2.msra.mxu0 0.0
    %2690 = vmatprep.subr.mxu0 0.0
    %2691 = vmatpush2.msra.mxu0 0.0
    %2692 = vmatprep.subr.mxu0 0.0
    %2693 = vmatpush2.msra.mxu0 0.0
    %2694 = vmatprep.mubr.f32.mxu0 0.0
    %2695 = vmatmul.mubr.f32.gmra.mxu0 %v2390
    %v2696 = vpop.f32.mrf.mxu0
    %v2697 = vadd.f32 0.0, %v2696
    %v2698 = vpop.f32.mrf.mxu0
    %2699 = vdwg.mxu0
    %v2701 = vrot.slane %v2697, 2
    %2702 = vrot.lane.b32.xlu0 %v2701, 96
    %v2703 = vpop.permute.xlu0 %2702
    %v2705 = vadd.f32 %v185, %v2703
    %v2706 = vxor.u32 %v2465, 2147483648
    %v2707 = vmul.f32 %v2706, 1.442695
    %v2708 = vpow.pop %v2707
    %v2709 = vadd.f32 %v2708, 1.0
    %v2710 = vrcp.pop %v2709
    %v2711 = vmul.f32 1.0, %v2710
    %v2712 = vxor.u32 %v2545, 2147483648
    %v2713 = vmul.f32 %v2712, 1.442695
    %v2714 = vpow.pop %v2713
    %v2715 = vadd.f32 %v2714, 1.0
    %v2716 = vrcp.pop %v2715
    %v2717 = vmul.f32 1.0, %v2716
    %v2718 = vtanh.pop %v2625
    %v2719 = vxor.u32 %v2705, 2147483648
    %v2720 = vmul.f32 %v2719, 1.442695
    %v2721 = vpow.pop %v2720
    %v2722 = vadd.f32 %v2721, 1.0
    %v2723 = vrcp.pop %v2722
    %v2724 = vmul.f32 1.0, %v2723
    %v2726 = vrot.slane %v2370, 7
    %v2728 = vmul.f32 %v2717, %v2726
    %2730 = vrot.lane.b32.xlu0 %v2718, 64
    %v2731 = vpop.permute.xlu0 %2730
    %v2733 = vmul.f32 %v2711, %v2731
    %2735 = vrot.lane.b32.xlu0 %v2733, 32
    %v2736 = vpop.permute.xlu0 %2735
    %v2738 = vadd.f32 %v2728, %v2736
    %v2739 = vtanh.pop %v2738
    %2741 = vrot.lane.b32.xlu0 %v2739, 64
    %v2742 = vpop.permute.xlu0 %2741
    %v2744 = vmul.f32 %v2724, %v2742
    %2746 = vrot.lane.b32.xlu0 %v2744, 32
    %v2747 = vpop.permute.xlu0 %2746
    %vm2749 = vcmask 260102
    %2750 = vst.msk [vmem:[#allocation2] sm:$0x40] %vm2749, %v2747
    %v2751 = vld [vmem:[#allocation3] sm:$0xff]
    %v2752 = vld [vmem:[#allocation3 + $0x8] sm:$0xff]
    %v2753 = vld [vmem:[#allocation3 + $0x10] sm:$0xff]
    %v2754 = vld [vmem:[#allocation3 + $0x18] sm:$0xff]
    %v2755 = vrot.slane %v2744, 6
    %2756 = vrot.lane.b32.xlu0 %v2755, 32
    %v2757 = vpop.permute.xlu0 %2756
    %v2758 = vsel %vm192, %v2757, 0
    %2760 = vmatprep.subr.mxu0 0.0
    %2761 = vmatpush1.msra.mxu0 0.0
    %2762 = vmatprep.subr.mxu0 0.0
    %2763 = vmatpush1.msra.mxu0 0.0
    %2764 = vmatprep.subr.mxu0 0.0
    %2765 = vmatpush1.msra.mxu0 0.0
    %2766 = vmatprep.subr.mxu0 0.0
    %2767 = vmatpush1.msra.mxu0 0.0
    %2768 = vmatprep.subr.mxu0 0.0
    %2769 = vmatpush1.msra.mxu0 0.0
    %2770 = vmatprep.subr.mxu0 0.0
    %2771 = vmatpush1.msra.mxu0 0.0
    %2772 = vmatprep.subr.mxu0 0.0
    %2773 = vmatpush1.msra.mxu0 0.0
    %2774 = vmatprep.subr.mxu0 0.0
    %2775 = vmatpush1.msra.mxu0 0.0
    %2776 = vmatprep.subr.mxu0 0.0
    %2777 = vmatpush1.msra.mxu0 0.0
    %2778 = vmatprep.subr.mxu0 0.0
    %2779 = vmatpush1.msra.mxu0 0.0
    %2780 = vmatprep.subr.mxu0 0.0
    %2781 = vmatpush1.msra.mxu0 0.0
    %2782 = vmatprep.subr.mxu0 0.0
    %2783 = vmatpush1.msra.mxu0 0.0
    %2784 = vmatprep.subr.mxu0 0.0
    %2785 = vmatpush1.msra.mxu0 %v2754
    %2786 = vmatprep.subr.mxu0 0.0
    %2787 = vmatpush1.msra.mxu0 %v2753
    %2788 = vmatprep.subr.mxu0 0.0
    %2789 = vmatpush1.msra.mxu0 %v2752
    %2790 = vmatprep.subr.mxu0 0.0
    %2791 = vmatpush1.msra.mxu0 %v2751
    %2792 = vmatprep.subr.mxu0 0.0
    %2793 = vmatpush2.msra.mxu0 0.0
    %2794 = vmatprep.subr.mxu0 0.0
    %2795 = vmatpush2.msra.mxu0 0.0
    %2796 = vmatprep.subr.mxu0 0.0
    %2797 = vmatpush2.msra.mxu0 0.0
    %2798 = vmatprep.subr.mxu0 0.0
    %2799 = vmatpush2.msra.mxu0 0.0
    %2800 = vmatprep.subr.mxu0 0.0
    %2801 = vmatpush2.msra.mxu0 0.0
    %2802 = vmatprep.subr.mxu0 0.0
    %2803 = vmatpush2.msra.mxu0 0.0
    %2804 = vmatprep.subr.mxu0 0.0
    %2805 = vmatpush2.msra.mxu0 0.0
    %2806 = vmatprep.subr.mxu0 0.0
    %2807 = vmatpush2.msra.mxu0 0.0
    %2808 = vmatprep.subr.mxu0 0.0
    %2809 = vmatpush2.msra.mxu0 0.0
    %2810 = vmatprep.subr.mxu0 0.0
    %2811 = vmatpush2.msra.mxu0 0.0
    %2812 = vmatprep.subr.mxu0 0.0
    %2813 = vmatpush2.msra.mxu0 0.0
    %2814 = vmatprep.subr.mxu0 0.0
    %2815 = vmatpush2.msra.mxu0 0.0
    %2816 = vmatprep.subr.mxu0 0.0
    %2817 = vmatpush2.msra.mxu0 0.0
    %2818 = vmatprep.subr.mxu0 0.0
    %2819 = vmatpush2.msra.mxu0 0.0
    %2820 = vmatprep.subr.mxu0 0.0
    %2821 = vmatpush2.msra.mxu0 0.0
    %2822 = vmatprep.subr.mxu0 0.0
    %2823 = vmatpush2.msra.mxu0 0.0
    %2824 = vmatprep.mubr.f32.mxu0 0.0
    %2825 = vmatmul.mubr.f32.gmra.mxu0 %v2758
    %v2826 = vpop.f32.mrf.mxu0
    %v2827 = vadd.f32 0.0, %v2826
    %v2828 = vpop.f32.mrf.mxu0
    %2829 = vdwg.mxu0
    %v2831 = vrot.slane %v2827, 1
    %v2833 = vadd.f32 %v185, %v2831
    %v2834 = vld [vmem:[#allocation6] sm:$0xff]
    %v2835 = vld [vmem:[#allocation6 + $0x8] sm:$0xff]
    %v2836 = vld [vmem:[#allocation6 + $0x10] sm:$0xff]
    %v2837 = vld [vmem:[#allocation6 + $0x18] sm:$0xff]
    %2838 = vmatprep.subr.mxu0 0.0
    %2839 = vmatpush1.msra.mxu0 0.0
    %2840 = vmatprep.subr.mxu0 0.0
    %2841 = vmatpush1.msra.mxu0 0.0
    %2842 = vmatprep.subr.mxu0 0.0
    %2843 = vmatpush1.msra.mxu0 0.0
    %2844 = vmatprep.subr.mxu0 0.0
    %2845 = vmatpush1.msra.mxu0 0.0
    %2846 = vmatprep.subr.mxu0 0.0
    %2847 = vmatpush1.msra.mxu0 0.0
    %2848 = vmatprep.subr.mxu0 0.0
    %2849 = vmatpush1.msra.mxu0 0.0
    %2850 = vmatprep.subr.mxu0 0.0
    %2851 = vmatpush1.msra.mxu0 0.0
    %2852 = vmatprep.subr.mxu0 0.0
    %2853 = vmatpush1.msra.mxu0 0.0
    %2854 = vmatprep.subr.mxu0 0.0
    %2855 = vmatpush1.msra.mxu0 0.0
    %2856 = vmatprep.subr.mxu0 0.0
    %2857 = vmatpush1.msra.mxu0 0.0
    %2858 = vmatprep.subr.mxu0 0.0
    %2859 = vmatpush1.msra.mxu0 0.0
    %2860 = vmatprep.subr.mxu0 0.0
    %2861 = vmatpush1.msra.mxu0 0.0
    %2862 = vmatprep.subr.mxu0 0.0
    %2863 = vmatpush1.msra.mxu0 %v2837
    %2864 = vmatprep.subr.mxu0 0.0
    %2865 = vmatpush1.msra.mxu0 %v2836
    %2866 = vmatprep.subr.mxu0 0.0
    %2867 = vmatpush1.msra.mxu0 %v2835
    %2868 = vmatprep.subr.mxu0 0.0
    %2869 = vmatpush1.msra.mxu0 %v2834
    %2870 = vmatprep.subr.mxu0 0.0
    %2871 = vmatpush2.msra.mxu0 0.0
    %2872 = vmatprep.subr.mxu0 0.0
    %2873 = vmatpush2.msra.mxu0 0.0
    %2874 = vmatprep.subr.mxu0 0.0
    %2875 = vmatpush2.msra.mxu0 0.0
    %2876 = vmatprep.subr.mxu0 0.0
    %2877 = vmatpush2.msra.mxu0 0.0
    %2878 = vmatprep.subr.mxu0 0.0
    %2879 = vmatpush2.msra.mxu0 0.0
    %2880 = vmatprep.subr.mxu0 0.0
    %2881 = vmatpush2.msra.mxu0 0.0
    %2882 = vmatprep.subr.mxu0 0.0
    %2883 = vmatpush2.msra.mxu0 0.0
    %2884 = vmatprep.subr.mxu0 0.0
    %2885 = vmatpush2.msra.mxu0 0.0
    %2886 = vmatprep.subr.mxu0 0.0
    %2887 = vmatpush2.msra.mxu0 0.0
    %2888 = vmatprep.subr.mxu0 0.0
    %2889 = vmatpush2.msra.mxu0 0.0
    %2890 = vmatprep.subr.mxu0 0.0
    %2891 = vmatpush2.msra.mxu0 0.0
    %2892 = vmatprep.subr.mxu0 0.0
    %2893 = vmatpush2.msra.mxu0 0.0
    %2894 = vmatprep.subr.mxu0 0.0
    %2895 = vmatpush2.msra.mxu0 0.0
    %2896 = vmatprep.subr.mxu0 0.0
    %2897 = vmatpush2.msra.mxu0 0.0
    %2898 = vmatprep.subr.mxu0 0.0
    %2899 = vmatpush2.msra.mxu0 0.0
    %2900 = vmatprep.subr.mxu0 0.0
    %2901 = vmatpush2.msra.mxu0 0.0
    %2902 = vmatprep.mubr.f32.mxu0 0.0
    %2903 = vmatmul.mubr.f32.gmra.mxu0 %v2758
    %v2904 = vpop.f32.mrf.mxu0
    %v2905 = vadd.f32 0.0, %v2904
    %v2906 = vpop.f32.mrf.mxu0
    %2907 = vdwg.mxu0
    %v2909 = vrot.slane %v2905, 1
    %2910 = vrot.lane.b32.xlu0 %v2909, 32
    %v2911 = vpop.permute.xlu0 %2910
    %v2913 = vadd.f32 %v185, %v2911
    %v2914 = vld [vmem:[#allocation8] sm:$0xff]
    %v2915 = vld [vmem:[#allocation8 + $0x8] sm:$0xff]
    %v2916 = vld [vmem:[#allocation8 + $0x10] sm:$0xff]
    %v2917 = vld [vmem:[#allocation8 + $0x18] sm:$0xff]
    %2918 = vmatprep.subr.mxu0 0.0
    %2919 = vmatpush1.msra.mxu0 0.0
    %2920 = vmatprep.subr.mxu0 0.0
    %2921 = vmatpush1.msra.mxu0 0.0
    %2922 = vmatprep.subr.mxu0 0.0
    %2923 = vmatpush1.msra.mxu0 0.0
    %2924 = vmatprep.subr.mxu0 0.0
    %2925 = vmatpush1.msra.mxu0 0.0
    %2926 = vmatprep.subr.mxu0 0.0
    %2927 = vmatpush1.msra.mxu0 0.0
    %2928 = vmatprep.subr.mxu0 0.0
    %2929 = vmatpush1.msra.mxu0 0.0
    %2930 = vmatprep.subr.mxu0 0.0
    %2931 = vmatpush1.msra.mxu0 0.0
    %2932 = vmatprep.subr.mxu0 0.0
    %2933 = vmatpush1.msra.mxu0 0.0
    %2934 = vmatprep.subr.mxu0 0.0
    %2935 = vmatpush1.msra.mxu0 0.0
    %2936 = vmatprep.subr.mxu0 0.0
    %2937 = vmatpush1.msra.mxu0 0.0
    %2938 = vmatprep.subr.mxu0 0.0
    %2939 = vmatpush1.msra.mxu0 0.0
    %2940 = vmatprep.subr.mxu0 0.0
    %2941 = vmatpush1.msra.mxu0 0.0
    %2942 = vmatprep.subr.mxu0 0.0
    %2943 = vmatpush1.msra.mxu0 %v2917
    %2944 = vmatprep.subr.mxu0 0.0
    %2945 = vmatpush1.msra.mxu0 %v2916
    %2946 = vmatprep.subr.mxu0 0.0
    %2947 = vmatpush1.msra.mxu0 %v2915
    %2948 = vmatprep.subr.mxu0 0.0
    %2949 = vmatpush1.msra.mxu0 %v2914
    %2950 = vmatprep.subr.mxu0 0.0
    %2951 = vmatpush2.msra.mxu0 0.0
    %2952 = vmatprep.subr.mxu0 0.0
    %2953 = vmatpush2.msra.mxu0 0.0
    %2954 = vmatprep.subr.mxu0 0.0
    %2955 = vmatpush2.msra.mxu0 0.0
    %2956 = vmatprep.subr.mxu0 0.0
    %2957 = vmatpush2.msra.mxu0 0.0
    %2958 = vmatprep.subr.mxu0 0.0
    %2959 = vmatpush2.msra.mxu0 0.0
    %2960 = vmatprep.subr.mxu0 0.0
    %2961 = vmatpush2.msra.mxu0 0.0
    %2962 = vmatprep.subr.mxu0 0.0
    %2963 = vmatpush2.msra.mxu0 0.0
    %2964 = vmatprep.subr.mxu0 0.0
    %2965 = vmatpush2.msra.mxu0 0.0
    %2966 = vmatprep.subr.mxu0 0.0
    %2967 = vmatpush2.msra.mxu0 0.0
    %2968 = vmatprep.subr.mxu0 0.0
    %2969 = vmatpush2.msra.mxu0 0.0
    %2970 = vmatprep.subr.mxu0 0.0
    %2971 = vmatpush2.msra.mxu0 0.0
    %2972 = vmatprep.subr.mxu0 0.0
    %2973 = vmatpush2.msra.mxu0 0.0
    %2974 = vmatprep.subr.mxu0 0.0
    %2975 = vmatpush2.msra.mxu0 0.0
    %2976 = vmatprep.subr.mxu0 0.0
    %2977 = vmatpush2.msra.mxu0 0.0
    %2978 = vmatprep.subr.mxu0 0.0
    %2979 = vmatpush2.msra.mxu0 0.0
    %2980 = vmatprep.subr.mxu0 0.0
    %2981 = vmatpush2.msra.mxu0 0.0
    %2982 = vmatprep.mubr.f32.mxu0 0.0
    %2983 = vmatmul.mubr.f32.gmra.mxu0 %v2758
    %v2984 = vpop.f32.mrf.mxu0
    %v2985 = vadd.f32 0.0, %v2984
    %v2986 = vpop.f32.mrf.mxu0
    %2987 = vdwg.mxu0
    %v2989 = vrot.slane %v2985, 1
    %2990 = vrot.lane.b32.xlu0 %v2989, 64
    %v2991 = vpop.permute.xlu0 %2990
    %v2993 = vadd.f32 %v185, %v2991
    %v2994 = vld [vmem:[#allocation9] sm:$0xff]
    %v2995 = vld [vmem:[#allocation9 + $0x8] sm:$0xff]
    %v2996 = vld [vmem:[#allocation9 + $0x10] sm:$0xff]
    %v2997 = vld [vmem:[#allocation9 + $0x18] sm:$0xff]
    %2998 = vmatprep.subr.mxu0 0.0
    %2999 = vmatpush1.msra.mxu0 0.0
    %3000 = vmatprep.subr.mxu0 0.0
    %3001 = vmatpush1.msra.mxu0 0.0
    %3002 = vmatprep.subr.mxu0 0.0
    %3003 = vmatpush1.msra.mxu0 0.0
    %3004 = vmatprep.subr.mxu0 0.0
    %3005 = vmatpush1.msra.mxu0 0.0
    %3006 = vmatprep.subr.mxu0 0.0
    %3007 = vmatpush1.msra.mxu0 0.0
    %3008 = vmatprep.subr.mxu0 0.0
    %3009 = vmatpush1.msra.mxu0 0.0
    %3010 = vmatprep.subr.mxu0 0.0
    %3011 = vmatpush1.msra.mxu0 0.0
    %3012 = vmatprep.subr.mxu0 0.0
    %3013 = vmatpush1.msra.mxu0 0.0
    %3014 = vmatprep.subr.mxu0 0.0
    %3015 = vmatpush1.msra.mxu0 0.0
    %3016 = vmatprep.subr.mxu0 0.0
    %3017 = vmatpush1.msra.mxu0 0.0
    %3018 = vmatprep.subr.mxu0 0.0
    %3019 = vmatpush1.msra.mxu0 0.0
    %3020 = vmatprep.subr.mxu0 0.0
    %3021 = vmatpush1.msra.mxu0 0.0
    %3022 = vmatprep.subr.mxu0 0.0
    %3023 = vmatpush1.msra.mxu0 %v2997
    %3024 = vmatprep.subr.mxu0 0.0
    %3025 = vmatpush1.msra.mxu0 %v2996
    %3026 = vmatprep.subr.mxu0 0.0
    %3027 = vmatpush1.msra.mxu0 %v2995
    %3028 = vmatprep.subr.mxu0 0.0
    %3029 = vmatpush1.msra.mxu0 %v2994
    %3030 = vmatprep.subr.mxu0 0.0
    %3031 = vmatpush2.msra.mxu0 0.0
    %3032 = vmatprep.subr.mxu0 0.0
    %3033 = vmatpush2.msra.mxu0 0.0
    %3034 = vmatprep.subr.mxu0 0.0
    %3035 = vmatpush2.msra.mxu0 0.0
    %3036 = vmatprep.subr.mxu0 0.0
    %3037 = vmatpush2.msra.mxu0 0.0
    %3038 = vmatprep.subr.mxu0 0.0
    %3039 = vmatpush2.msra.mxu0 0.0
    %3040 = vmatprep.subr.mxu0 0.0
    %3041 = vmatpush2.msra.mxu0 0.0
    %3042 = vmatprep.subr.mxu0 0.0
    %3043 = vmatpush2.msra.mxu0 0.0
    %3044 = vmatprep.subr.mxu0 0.0
    %3045 = vmatpush2.msra.mxu0 0.0
    %3046 = vmatprep.subr.mxu0 0.0
    %3047 = vmatpush2.msra.mxu0 0.0
    %3048 = vmatprep.subr.mxu0 0.0
    %3049 = vmatpush2.msra.mxu0 0.0
    %3050 = vmatprep.subr.mxu0 0.0
    %3051 = vmatpush2.msra.mxu0 0.0
    %3052 = vmatprep.subr.mxu0 0.0
    %3053 = vmatpush2.msra.mxu0 0.0
    %3054 = vmatprep.subr.mxu0 0.0
    %3055 = vmatpush2.msra.mxu0 0.0
    %3056 = vmatprep.subr.mxu0 0.0
    %3057 = vmatpush2.msra.mxu0 0.0
    %3058 = vmatprep.subr.mxu0 0.0
    %3059 = vmatpush2.msra.mxu0 0.0
    %3060 = vmatprep.subr.mxu0 0.0
    %3061 = vmatpush2.msra.mxu0 0.0
    %3062 = vmatprep.mubr.f32.mxu0 0.0
    %3063 = vmatmul.mubr.f32.gmra.mxu0 %v2758
    %v3064 = vpop.f32.mrf.mxu0
    %v3065 = vadd.f32 0.0, %v3064
    %v3066 = vpop.f32.mrf.mxu0
    %3067 = vdwg.mxu0
    %v3069 = vrot.slane %v3065, 1
    %3070 = vrot.lane.b32.xlu0 %v3069, 96
    %v3071 = vpop.permute.xlu0 %3070
    %v3073 = vadd.f32 %v185, %v3071
    %v3074 = vxor.u32 %v2833, 2147483648
    %v3075 = vmul.f32 %v3074, 1.442695
    %v3076 = vpow.pop %v3075
    %v3077 = vadd.f32 %v3076, 1.0
    %v3078 = vrcp.pop %v3077
    %v3079 = vmul.f32 1.0, %v3078
    %v3080 = vxor.u32 %v2913, 2147483648
    %v3081 = vmul.f32 %v3080, 1.442695
    %v3082 = vpow.pop %v3081
    %v3083 = vadd.f32 %v3082, 1.0
    %v3084 = vrcp.pop %v3083
    %v3085 = vmul.f32 1.0, %v3084
    %v3086 = vtanh.pop %v2993
    %v3087 = vxor.u32 %v3073, 2147483648
    %v3088 = vmul.f32 %v3087, 1.442695
    %v3089 = vpow.pop %v3088
    %v3090 = vadd.f32 %v3089, 1.0
    %v3091 = vrcp.pop %v3090
    %v3092 = vmul.f32 1.0, %v3091
    %v3094 = vrot.slane %v2738, 7
    %v3096 = vmul.f32 %v3085, %v3094
    %3098 = vrot.lane.b32.xlu0 %v3086, 64
    %v3099 = vpop.permute.xlu0 %3098
    %v3101 = vmul.f32 %v3079, %v3099
    %3103 = vrot.lane.b32.xlu0 %v3101, 32
    %v3104 = vpop.permute.xlu0 %3103
    %v3106 = vadd.f32 %v3096, %v3104
    %v3107 = vtanh.pop %v3106
    %3109 = vrot.lane.b32.xlu0 %v3107, 64
    %v3110 = vpop.permute.xlu0 %3109
    %v3112 = vmul.f32 %v3092, %v3110
    %3114 = vrot.lane.b32.xlu0 %v3112, 32
    %v3115 = vpop.permute.xlu0 %3114
    %vm3117 = vcmask 261127
    %3118 = vst.msk [vmem:[#allocation2] sm:$0x80] %vm3117, %v3115
    %v3119 = vld [vmem:[#allocation2] sm:$0xff]
    %v3120 = vld [vmem:[#allocation11] sm:$0xff]
    %v3121 = vld [vmem:[#allocation11 + $0x8] sm:$0xff]
    %v3122 = vld [vmem:[#allocation11 + $0x10] sm:$0xff]
    %v3123 = vld [vmem:[#allocation11 + $0x18] sm:$0xff]
    %v3124 = vld [vmem:[%s8] sm:$0x1]
    %v3126 = vlaneseq
    %v3127 = vshrl.u32 %v3126, 7
    %v3128 = vsub.s32 0, %v3127
    %v3129 = vrot.slane %v3124, %v3128
    %v3132 = vsel %vm192, %v3119, 0
    %3134 = vmatprep.subr.mxu0 0.0
    %3135 = vmatpush1.msra.mxu0 0.0
    %3136 = vmatprep.subr.mxu0 0.0
    %3137 = vmatpush1.msra.mxu0 0.0
    %3138 = vmatprep.subr.mxu0 0.0
    %3139 = vmatpush1.msra.mxu0 0.0
    %3140 = vmatprep.subr.mxu0 0.0
    %3141 = vmatpush1.msra.mxu0 0.0
    %3142 = vmatprep.subr.mxu0 0.0
    %3143 = vmatpush1.msra.mxu0 0.0
    %3144 = vmatprep.subr.mxu0 0.0
    %3145 = vmatpush1.msra.mxu0 0.0
    %3146 = vmatprep.subr.mxu0 0.0
    %3147 = vmatpush1.msra.mxu0 0.0
    %3148 = vmatprep.subr.mxu0 0.0
    %3149 = vmatpush1.msra.mxu0 0.0
    %3150 = vmatprep.subr.mxu0 0.0
    %3151 = vmatpush1.msra.mxu0 0.0
    %3152 = vmatprep.subr.mxu0 0.0
    %3153 = vmatpush1.msra.mxu0 0.0
    %3154 = vmatprep.subr.mxu0 0.0
    %3155 = vmatpush1.msra.mxu0 0.0
    %3156 = vmatprep.subr.mxu0 0.0
    %3157 = vmatpush1.msra.mxu0 0.0
    %3158 = vmatprep.subr.mxu0 0.0
    %3159 = vmatpush1.msra.mxu0 %v3123
    %3160 = vmatprep.subr.mxu0 0.0
    %3161 = vmatpush1.msra.mxu0 %v3122
    %3162 = vmatprep.subr.mxu0 0.0
    %3163 = vmatpush1.msra.mxu0 %v3121
    %3164 = vmatprep.subr.mxu0 0.0
    %3165 = vmatpush1.msra.mxu0 %v3120
    %3166 = vmatprep.subr.mxu0 0.0
    %3167 = vmatpush2.msra.mxu0 0.0
    %3168 = vmatprep.subr.mxu0 0.0
    %3169 = vmatpush2.msra.mxu0 0.0
    %3170 = vmatprep.subr.mxu0 0.0
    %3171 = vmatpush2.msra.mxu0 0.0
    %3172 = vmatprep.subr.mxu0 0.0
    %3173 = vmatpush2.msra.mxu0 0.0
    %3174 = vmatprep.subr.mxu0 0.0
    %3175 = vmatpush2.msra.mxu0 0.0
    %3176 = vmatprep.subr.mxu0 0.0
    %3177 = vmatpush2.msra.mxu0 0.0
    %3178 = vmatprep.subr.mxu0 0.0
    %3179 = vmatpush2.msra.mxu0 0.0
    %3180 = vmatprep.subr.mxu0 0.0
    %3181 = vmatpush2.msra.mxu0 0.0
    %3182 = vmatprep.subr.mxu0 0.0
    %3183 = vmatpush2.msra.mxu0 0.0
    %3184 = vmatprep.subr.mxu0 0.0
    %3185 = vmatpush2.msra.mxu0 0.0
    %3186 = vmatprep.subr.mxu0 0.0
    %3187 = vmatpush2.msra.mxu0 0.0
    %3188 = vmatprep.subr.mxu0 0.0
    %3189 = vmatpush2.msra.mxu0 0.0
    %3190 = vmatprep.subr.mxu0 0.0
    %3191 = vmatpush2.msra.mxu0 0.0
    %3192 = vmatprep.subr.mxu0 0.0
    %3193 = vmatpush2.msra.mxu0 0.0
    %3194 = vmatprep.subr.mxu0 0.0
    %3195 = vmatpush2.msra.mxu0 0.0
    %3196 = vmatprep.subr.mxu0 0.0
    %3197 = vmatpush2.msra.mxu0 0.0
    %3198 = vmatprep.mubr.f32.mxu0 0.0
    %3199 = vmatmul.mubr.f32.gmra.mxu0 %v3132
    %v3200 = vpop.f32.mrf.mxu0
    %v3201 = vadd.f32 %v3129, %v3200
    %v3202 = vpop.f32.mrf.mxu0
    %3203 = vdwg.mxu0
    %3204 = vst [vmem:[#allocation12] sm:$0xff] %v3201
    // Predicated region
    $region58: #{tpu_custom_call.1} parent=1 // pred_check
      _
    $region59: #{tpu_custom_call.1} parent=1 // pred_check_branch
      %3206 = sbr.rel (0) target = $region61
    $region60: #{tpu_custom_call.1} parent=1 // pred_region
      %s3208 = ssub.s32 128, 128
      %3209 = vsyncadd [#allocation5], %s3208
      %s3211 = sshll.u32 [#allocation12], 4
      %s3212 = int_to_ptr.vmem [resolvable:$true] %s3211
      %3214 = dma.vmem_to_hbm [thread:$0]  %s3212, 128, %s9, [#allocation5]
    $region61: #{tpu_custom_call.1} parent=1 // pred_fallthru
      _
    // Predicated region
    $region62: #{tpu_custom_call.1} parent=1 // pred_check
      _
    $region63: #{tpu_custom_call.1} parent=1 // pred_check_branch
      %3216 = sbr.rel (0) target = $region65
    $region64: #{tpu_custom_call.1} parent=1 // pred_region
      %3217 = dma.done [#allocation5], 128
    $region65: #{tpu_custom_call.1} parent=1 // pred_fallthru
      _
    %3218 = vsyncpa [#allocation4], 1
    %3219 = vsyncpa [#allocation7], 1
    %3220 = vsyncpa [#allocation10], 1
    %3221 = vsyncpa [#allocation5], 1

</llo_original>
